<compile_context>
chip_gen: v5e
topology: v5e:2x2
jax: 0.10.0
libtpu: 0.0.40
codegen_flags: <defaults>
</compile_context>

<pallas_src>
import jax
import jax.numpy as jnp
from jax.experimental import pallas as pl
from jax.experimental.pallas import tpu as pltpu

# ----- config (synthetic, small) ------------------------------------------------
MODEL_SIZE = 32      # config.MODEL_SIZE
NUM_LAYER = 2        # config.NUM_LAYER
MAX_SBT_LEN = 10     # config.MAX_SBT_LEN
DICT_SIZE_1 = 50     # config.DICT_SIZE_1
K = 4                # config.K (paths per example)

# TODO(synk): at production sizes make MODEL_SIZE a multiple of 128 (lane-dense
#   gates/stores), time-tile the one-hot embedding + hoisted gates_x buffers to
#   the VMEM budget (64 MiB physical on v7x), move the t loop to lax.fori_loop,
#   and optionally feed the two big hoisted matmuls in bf16 with f32 accumulation.
# TODO(synk): on 2-TC v7x the two directions could instead be split across the
#   TensorCores (grid=(2,), "parallel"); skipped here because the lane-stacked
#   formulation already has the same serial-chain length per step and saves a
#   kernel launch at these latency-bound sizes.


# ----- single fused kernel -------------------------------------------------------
def _encoder_fused_kernel(len_ref, idsa_ref, idsb_ref, emb2_ref,
                          wih_ref, whh_ref, b_ref, fcw_ref, fcb_ref,
                          out_ref, gx_buf, y_buf):
    """Fused Encoder forward.

    Layouts (M = MODEL_SIZE):
      * state h/c, embeddings x, per-step outputs y: (rows, 2M), lanes [fw | bw]
      * gate pre-activations: (rows, 8M), lanes [i_fw i_bw | f_fw f_bw | g_fw g_bw | o_fw o_bw]
      * packed weights wih/whh: (L, 2M, 8M), block-diagonal in the fw/bw blocks
      * emb2: (2*V_pad, 2M), block-diagonal; fw ids index [0, V_pad), bw ids are
        pre-shifted by V_pad, so ONE one-hot matmul embeds both directions.
    """
    N = len_ref.shape[0]
    M = out_ref.shape[1]
    TN = idsa_ref.shape[0]
    T = TN // N
    V2 = emb2_ref.shape[0]
    L = wih_ref.shape[0]

    # --- embedding lookup for BOTH directions: one gather-free one-hot matmul ---
    vocab_iota = jax.lax.broadcasted_iota(jnp.int32, (TN, V2), 1)
    onehot = ((vocab_iota == idsa_ref[...]) |
              (vocab_iota == idsb_ref[...])).astype(jnp.float32)        # (TN, 2V)
    x = jnp.dot(onehot, emb2_ref[...],
                preferred_element_type=jnp.float32)                     # (TN, 2M)

    # first-timestep embeddings: `start` in the fw lanes, `end` in the bw lanes
    # (assumes lengths >= 1, as in the reference module)
    x_first = x[0:N, :]

    # --- hoisted masks (computed once, shared by both layers) -------------------
    len_b = jnp.broadcast_to(len_ref[...], (N, 2 * M))                  # (N, 2M) i32
    valid = [t < len_b for t in range(T)]                               # T x (N, 2M) bool
    lane = jax.lax.broadcasted_iota(jnp.int32, (N, 8 * M), 1)
    g_lane = (lane >= 4 * M) & (lane < 6 * M)     # tanh lanes (g gate) of the 8M gates

    for layer in range(L):
        # Input projection hoisted out of the recurrence: one (TN,2M)x(2M,8M)
        # matmul per layer, kept in VMEM scratch.
        gx_buf[...] = (jnp.dot(x, wih_ref[layer],
                               preferred_element_type=jnp.float32) + b_ref[layer])
        whh = whh_ref[layer]                                            # (2M, 8M)

        # The last layer's per-step output is never consumed downstream (only
        # its final hidden state feeds the FC), so skip its y stores.
        keep_y = (layer + 1) < L

        h = jnp.zeros((N, 2 * M), jnp.float32)
        c = jnp.zeros((N, 2 * M), jnp.float32)
        for t in range(T):                      # static unroll; T is tiny
            # TODO(synk): pltpu.matmul_push_rhs/acc_lhs could keep W_hh
            # stationary in the MXU across the T steps; jnp.dot kept for robustness.
            g = gx_buf[t * N:(t + 1) * N, :] + jnp.dot(
                h, whh, preferred_element_type=jnp.float32)             # (N, 8M)
            # full-vreg sigmoid + tanh, then blend the g-gate lanes
            act = jnp.where(g_lane, jnp.tanh(g), jax.nn.sigmoid(g))
            i_g = act[:, 0:2 * M]
            f_g = act[:, 2 * M:4 * M]
            g_g = act[:, 4 * M:6 * M]
            o_g = act[:, 6 * M:8 * M]
            c_new = f_g * c + i_g * g_g
            h_new = o_g * jnp.tanh(c_new)
            # pack_padded semantics: freeze state past each row's length
            c = jnp.where(valid[t], c_new, c)
            h = jnp.where(valid[t], h_new, h)
            if keep_y:
                # zero past length (pad_packed) + residual add, folded into one store
                y_buf[t * N:(t + 1) * N, :] = (
                    jnp.where(valid[t], h_new, 0.0) + x[t * N:(t + 1) * N, :])

        if keep_y:
            x = y_buf[...]            # next layer input = padded output + skip

    # --- fused epilogue: cat([start, fh, bh, end]) @ W_fc^T + b -> tanh ----------
    # h is already cat([fh, bh], -1) thanks to the [fw | bw] lane layout.
    start = x_first[:, 0:M]
    end = x_first[:, M:2 * M]
    acc = jnp.dot(start, fcw_ref[0:M, :], preferred_element_type=jnp.float32)
    acc = acc + jnp.dot(h, fcw_ref[M:3 * M, :], preferred_element_type=jnp.float32)
    acc = acc + jnp.dot(end, fcw_ref[3 * M:4 * M, :], preferred_element_type=jnp.float32)
    out_ref[...] = jnp.tanh(acc + fcb_ref[...]).astype(out_ref.dtype)


# ----- host-side parameter packing (layouts documented in the kernel) ------------
def pack_params(emb, wih_t, whh_t, bias, fc_w_t, fc_b):
    """emb: (V, M); wih_t/whh_t: (2, L, M, 4M) (= per-direction W^T, gates [i,f,g,o]);
    bias: (2, L, 1, 4M) (= b_ih + b_hh); fc_w_t: (4M, M); fc_b: (1, M)."""
    M = emb.shape[1]
    V = emb.shape[0]
    V_pad = ((V + 127) // 128) * 128

    emb2 = jnp.zeros((2 * V_pad, 2 * M), jnp.float32)
    emb2 = emb2.at[0:V, 0:M].set(emb)
    emb2 = emb2.at[V_pad:V_pad + V, M:2 * M].set(emb)

    def pack_w(w):            # (2, L, M, 4M) -> (L, 2M, 8M) block-diag, gate-major
        L = w.shape[1]
        out = jnp.zeros((L, 2 * M, 8 * M), jnp.float32)
        for k in range(4):
            out = out.at[:, 0:M, 2 * M * k:2 * M * k + M].set(
                w[0, :, :, k * M:(k + 1) * M])
            out = out.at[:, M:2 * M, 2 * M * k + M:2 * M * (k + 1)].set(
                w[1, :, :, k * M:(k + 1) * M])
        return out

    def pack_b(b):            # (2, L, 1, 4M) -> (L, 1, 8M) gate-major
        L = b.shape[1]
        out = jnp.zeros((L, 1, 8 * M), jnp.float32)
        for k in range(4):
            out = out.at[:, :, 2 * M * k:2 * M * k + M].set(
                b[0, :, :, k * M:(k + 1) * M])
            out = out.at[:, :, 2 * M * k + M:2 * M * (k + 1)].set(
                b[1, :, :, k * M:(k + 1) * M])
        return out

    return {
        'emb2': emb2,                 # (2*V_pad, 2M)
        'wih': pack_w(wih_t),         # (L, 2M, 8M)
        'whh': pack_w(whh_t),         # (L, 2M, 8M)
        'b': pack_b(bias),            # (L, 1, 8M)
        'fc_w_t': fc_w_t,             # (4M, M)  (Linear(4M, M).weight^T)
        'fc_b': fc_b,                 # (1, M)
    }


# ----- Encoder forward ------------------------------------------------------------
def encoder_forward(params, fw_ids, bw_ids, lengths):
    """fw_ids, bw_ids: (T, N) int32 padded token ids (time-major); lengths: (N,)."""
    # TODO(synk): the ragged Python list-of-lists handling (flatten paths,
    # truncate to MAX_SBT_LEN, pad_sequence) is host-side preprocessing here.
    T, N = fw_ids.shape
    M = MODEL_SIZE
    V_pad = params['emb2'].shape[0] // 2

    ids_a = fw_ids.astype(jnp.int32).reshape(T * N, 1)
    ids_b = (bw_ids.astype(jnp.int32) + V_pad).reshape(T * N, 1)
    len2d = lengths.astype(jnp.int32).reshape(N, 1)

    out = pl.pallas_call(
        _encoder_fused_kernel,
        out_shape=jax.ShapeDtypeStruct((N, M), jnp.float32),
        grid_spec=pltpu.PrefetchScalarGridSpec(
            num_scalar_prefetch=0,
            grid=(1,),
            in_specs=[
                pl.BlockSpec((N, 1), lambda i: (0, 0)),                 # lengths
                pl.BlockSpec((T * N, 1), lambda i: (0, 0)),             # fw ids
                pl.BlockSpec((T * N, 1), lambda i: (0, 0)),             # bw ids (+V_pad)
                pl.BlockSpec(params['emb2'].shape, lambda i: (0, 0)),   # packed embedding
                pl.BlockSpec(params['wih'].shape, lambda i: (0, 0, 0)), # packed W_ih^T
                pl.BlockSpec(params['whh'].shape, lambda i: (0, 0, 0)), # packed W_hh^T
                pl.BlockSpec(params['b'].shape, lambda i: (0, 0, 0)),   # packed bias
                pl.BlockSpec(params['fc_w_t'].shape, lambda i: (0, 0)),
                pl.BlockSpec(params['fc_b'].shape, lambda i: (0, 0)),
            ],
            out_specs=pl.BlockSpec((N, M), lambda i: (0, 0)),
            scratch_shapes=[
                pltpu.VMEM((T * N, 8 * MODEL_SIZE), jnp.float32),       # gates_x
                pltpu.VMEM((T * N, 2 * MODEL_SIZE), jnp.float32),       # per-layer y
            ],
        ),
    )(len2d, ids_a, ids_b, params['emb2'], params['wih'], params['whh'],
      params['b'], params['fc_w_t'], params['fc_b'])

    # unbind over paths, regroup into chunks of K (one tensor per example)
    grouped = out.reshape(N // K, K, M)
    return [grouped[i] for i in range(grouped.shape[0])]


# ----- pure-JAX reference (mirrors the PyTorch module) ----------------------------
def encoder_reference(emb, wih_t, whh_t, bias, fc_w_t, fc_b, fw_ids, bw_ids, lengths):
    T, N = fw_ids.shape
    M = emb.shape[1]
    hp = jax.lax.Precision.HIGHEST

    def run_dir(ids, d):
        x = emb[ids]                              # (T, N, M)
        x0 = x[0]
        cur = x
        h_last = None
        for l in range(NUM_LAYER):
            h = jnp.zeros((N, M), jnp.float32)
            c = jnp.zeros((N, M), jnp.float32)
            ys = []
            for t in range(T):
                g = (jnp.dot(cur[t], wih_t[d, l], precision=hp)
                     + jnp.dot(h, whh_t[d, l], precision=hp) + bias[d, l])
                i = jax.nn.sigmoid(g[:, 0:M])
                f = jax.nn.sigmoid(g[:, M:2 * M])
                gg = jnp.tanh(g[:, 2 * M:3 * M])
                o = jax.nn.sigmoid(g[:, 3 * M:4 * M])
                c_new = f * c + i * gg
                h_new = o * jnp.tanh(c_new)
                v = (t < lengths)[:, None]
                c = jnp.where(v, c_new, c)
                h = jnp.where(v, h_new, h)
                ys.append(jnp.where(v, h_new, 0.0))
            cur = jnp.stack(ys, axis=0) + cur     # residual (explicit in the module)
            h_last = h
        return x0, h_last

    start, fh = run_dir(fw_ids, 0)
    end, bh = run_dir(bw_ids, 1)
    cat = jnp.concatenate([start, fh, bh, end], axis=-1)
    return jnp.tanh(jnp.dot(cat, fc_w_t, precision=hp) + fc_b)


# ----- deterministic setup & run ---------------------------------------------------
if __name__ == "__main__":
    key = jax.random.PRNGKey(0)
    k_len, k_tok, k_emb, k_lstm, k_fc = jax.random.split(key, 5)

    batch = 2
    N = batch * K                      # 8 paths total
    M = MODEL_SIZE

    # deterministic ragged paths, then pad (time-major, like pad_sequence)
    lengths_np = [int(l) for l in jax.random.randint(k_len, (N,), 3, MAX_SBT_LEN + 1)]
    T = max(lengths_np)
    tok_keys = jax.random.split(k_tok, N)
    fw_cols, bw_cols = [], []
    for n in range(N):
        Ln = lengths_np[n]
        ids_n = jax.random.randint(tok_keys[n], (Ln,), 1, DICT_SIZE_1).astype(jnp.int32)
        pad = jnp.zeros((T - Ln,), jnp.int32)
        fw_cols.append(jnp.concatenate([ids_n, pad]))
        bw_cols.append(jnp.concatenate([ids_n[::-1], pad]))
    fw_ids = jnp.stack(fw_cols, axis=1)          # (T, N)
    bw_ids = jnp.stack(bw_cols, axis=1)          # (T, N)
    lengths = jnp.array(lengths_np, jnp.int32)   # (N,)

    # deterministic parameters (shapes from the module's __init__)
    def init(k, shape, scale=0.1):
        return scale * jax.random.normal(k, shape, jnp.float32)

    emb = init(k_emb, (DICT_SIZE_1, M))

    lstm_keys = jax.random.split(k_lstm, 3 * 2 * NUM_LAYER)
    idx = 0
    wih_dirs, whh_dirs, b_dirs = [], [], []
    for _direction in range(2):                  # 0 = fw, 1 = bw
        wih_l, whh_l, b_l = [], [], []
        for _ in range(NUM_LAYER):
            wih_l.append(init(lstm_keys[idx], (M, 4 * M))); idx += 1    # W_ih^T
            whh_l.append(init(lstm_keys[idx], (M, 4 * M))); idx += 1    # W_hh^T
            b_l.append(init(lstm_keys[idx], (1, 4 * M))); idx += 1      # b_ih + b_hh
        wih_dirs.append(jnp.stack(wih_l))
        whh_dirs.append(jnp.stack(whh_l))
        b_dirs.append(jnp.stack(b_l))
    wih_t = jnp.stack(wih_dirs)                  # (2, NUM_LAYER, M, 4M)
    whh_t = jnp.stack(whh_dirs)                  # (2, NUM_LAYER, M, 4M)
    bias = jnp.stack(b_dirs)                     # (2, NUM_LAYER, 1, 4M)

    fck = jax.random.split(k_fc, 2)
    fc_w_t = init(fck[0], (4 * M, M))            # Linear(4M, M).weight^T
    fc_b = init(fck[1], (1, M))

    params = pack_params(emb, wih_t, whh_t, bias, fc_w_t, fc_b)

    outs = encoder_forward(params, fw_ids, bw_ids, lengths)
    outs = jax.block_until_ready(outs)

    assert len(outs) == N // K
    assert all(o.shape == (K, M) for o in outs)
    assert all(bool(jnp.all(jnp.isfinite(o))) for o in outs)

    # correctness check against a pure-JAX reference of the PyTorch forward
    ref = encoder_reference(emb, wih_t, whh_t, bias, fc_w_t, fc_b,
                            fw_ids, bw_ids, lengths)                    # (N, M)
    got = jnp.concatenate(outs, axis=0)                                 # (N, M)
    max_err = float(jnp.max(jnp.abs(got - ref)))
    assert max_err < 1e-2, f"kernel mismatch vs reference: max_err={max_err}"

    print("KERNEL_OK")
</pallas_src>

<mosaic_0001>
module attributes {stable_mosaic.version = 11 : i64} {
  func.func @_encoder_fused_kernel(%arg0: i32, %arg1: memref<8x1xi32, #tpu.memory_space<vmem>>, %arg2: memref<80x1xi32, #tpu.memory_space<vmem>>, %arg3: memref<80x1xi32, #tpu.memory_space<vmem>>, %arg4: memref<256x64xf32, #tpu.memory_space<vmem>>, %arg5: memref<2x64x256xf32, #tpu.memory_space<vmem>>, %arg6: memref<2x64x256xf32, #tpu.memory_space<vmem>>, %arg7: memref<2x1x256xf32, #tpu.memory_space<vmem>>, %arg8: memref<128x32xf32, #tpu.memory_space<vmem>>, %arg9: memref<1x32xf32, #tpu.memory_space<vmem>>, %arg10: memref<8x32xf32, #tpu.memory_space<vmem>>, %arg11: memref<80x256xf32, #tpu.memory_space<vmem>>, %arg12: memref<80x64xf32, #tpu.memory_space<vmem>>) attributes {dimension_semantics = [#tpu.dimension_semantics<arbitrary>], iteration_bounds = array<i64: 1>, scalar_prefetch = 0 : i64, scratch_operands = 2 : i64, tpu.core_type = #tpu.core_type<tc>, window_params = [{pipeline_mode = #tpu.pipeline_mode<synchronous>, transform_indices = @transform_0, window_bounds = array<i64: 8, 1>}, {pipeline_mode = #tpu.pipeline_mode<synchronous>, transform_indices = @transform_1, window_bounds = array<i64: 80, 1>}, {pipeline_mode = #tpu.pipeline_mode<synchronous>, transform_indices = @transform_2, window_bounds = array<i64: 80, 1>}, {pipeline_mode = #tpu.pipeline_mode<synchronous>, transform_indices = @transform_3, window_bounds = array<i64: 256, 64>}, {pipeline_mode = #tpu.pipeline_mode<synchronous>, transform_indices = @transform_4, window_bounds = array<i64: 2, 64, 256>}, {pipeline_mode = #tpu.pipeline_mode<synchronous>, transform_indices = @transform_5, window_bounds = array<i64: 2, 64, 256>}, {pipeline_mode = #tpu.pipeline_mode<synchronous>, transform_indices = @transform_6, window_bounds = array<i64: 2, 1, 256>}, {pipeline_mode = #tpu.pipeline_mode<synchronous>, transform_indices = @transform_7, window_bounds = array<i64: 128, 32>}, {pipeline_mode = #tpu.pipeline_mode<synchronous>, transform_indices = @transform_8, window_bounds = array<i64: 1, 32>}, {pipeline_mode = #tpu.pipeline_mode<synchronous>, transform_indices = @transform_9, window_bounds = array<i64: 8, 32>}]} {
    %0 = tpu.iota {dimensions = array<i32: 1>} : vector<80x256xi32>
    %c0 = arith.constant 0 : index
    %c0_0 = arith.constant 0 : index
    %1 = vector.load %arg2[%c0, %c0_0] : memref<80x1xi32, #tpu.memory_space<vmem>>, vector<80x1xi32>
    %2 = vector.broadcast %1 : vector<80x1xi32> to vector<80x256xi32>
    %3 = arith.cmpi eq, %0, %2 : vector<80x256xi32>
    %c0_1 = arith.constant 0 : index
    %c0_2 = arith.constant 0 : index
    %4 = vector.load %arg3[%c0_1, %c0_2] : memref<80x1xi32, #tpu.memory_space<vmem>>, vector<80x1xi32>
    %5 = vector.broadcast %4 : vector<80x1xi32> to vector<80x256xi32>
    %6 = arith.cmpi eq, %0, %5 : vector<80x256xi32>
    %7 = arith.ori %3, %6 : vector<80x256xi1>
    %8 = arith.extui %7 : vector<80x256xi1> to vector<80x256xi32>
    %9 = arith.sitofp %8 : vector<80x256xi32> to vector<80x256xf32>
    %c0_3 = arith.constant 0 : index
    %c0_4 = arith.constant 0 : index
    %10 = vector.load %arg4[%c0_3, %c0_4] : memref<256x64xf32, #tpu.memory_space<vmem>>, vector<256x64xf32>
    %cst = arith.constant dense<0.000000e+00> : vector<80x64xf32>
    %11 = tpu.matmul %9, %10, %cst {dimension_numbers = #tpu.dot_dimension_numbers<[1], [0], [0], [1], [0, 0, 1, 1], [], []>} : vector<80x256xf32>, vector<256x64xf32>, vector<80x64xf32> -> vector<80x64xf32>
    %12 = vector.extract_strided_slice %11 {offsets = [0, 0], sizes = [8, 64], strides = [1, 1]} : vector<80x64xf32> to vector<8x64xf32>
    %c0_5 = arith.constant 0 : index
    %c0_6 = arith.constant 0 : index
    %13 = vector.load %arg1[%c0_5, %c0_6] : memref<8x1xi32, #tpu.memory_space<vmem>>, vector<8x1xi32>
    %14 = vector.shape_cast %13 : vector<8x1xi32> to vector<8x1xi32>
    %15 = vector.broadcast %14 : vector<8x1xi32> to vector<8x64xi32>
    %c0_i32 = arith.constant 0 : i32
    %16 = vector.broadcast %c0_i32 : i32 to vector<8x64xi32>
    %17 = arith.cmpi sgt, %15, %16 : vector<8x64xi32>
    %c1_i32 = arith.constant 1 : i32
    %18 = vector.broadcast %c1_i32 : i32 to vector<8x64xi32>
    %19 = arith.cmpi sgt, %15, %18 : vector<8x64xi32>
    %c2_i32 = arith.constant 2 : i32
    %20 = vector.broadcast %c2_i32 : i32 to vector<8x64xi32>
    %21 = arith.cmpi sgt, %15, %20 : vector<8x64xi32>
    %c3_i32 = arith.constant 3 : i32
    %22 = vector.broadcast %c3_i32 : i32 to vector<8x64xi32>
    %23 = arith.cmpi sgt, %15, %22 : vector<8x64xi32>
    %c4_i32 = arith.constant 4 : i32
    %24 = vector.broadcast %c4_i32 : i32 to vector<8x64xi32>
    %25 = arith.cmpi sgt, %15, %24 : vector<8x64xi32>
    %c5_i32 = arith.constant 5 : i32
    %26 = vector.broadcast %c5_i32 : i32 to vector<8x64xi32>
    %27 = arith.cmpi sgt, %15, %26 : vector<8x64xi32>
    %c6_i32 = arith.constant 6 : i32
    %28 = vector.broadcast %c6_i32 : i32 to vector<8x64xi32>
    %29 = arith.cmpi sgt, %15, %28 : vector<8x64xi32>
    %c7_i32 = arith.constant 7 : i32
    %30 = vector.broadcast %c7_i32 : i32 to vector<8x64xi32>
    %31 = arith.cmpi sgt, %15, %30 : vector<8x64xi32>
    %c8_i32 = arith.constant 8 : i32
    %32 = vector.broadcast %c8_i32 : i32 to vector<8x64xi32>
    %33 = arith.cmpi sgt, %15, %32 : vector<8x64xi32>
    %c9_i32 = arith.constant 9 : i32
    %34 = vector.broadcast %c9_i32 : i32 to vector<8x64xi32>
    %35 = arith.cmpi sgt, %15, %34 : vector<8x64xi32>
    %36 = tpu.iota {dimensions = array<i32: 1>} : vector<8x256xi32>
    %c128_i32 = arith.constant 128 : i32
    %37 = vector.broadcast %c128_i32 : i32 to vector<8x256xi32>
    %38 = arith.cmpi sge, %36, %37 : vector<8x256xi32>
    %c192_i32 = arith.constant 192 : i32
    %39 = vector.broadcast %c192_i32 : i32 to vector<8x256xi32>
    %40 = arith.cmpi slt, %36, %39 : vector<8x256xi32>
    %41 = arith.andi %38, %40 : vector<8x256xi1>
    %c0_7 = arith.constant 0 : index
    %c0_8 = arith.constant 0 : index
    %c0_9 = arith.constant 0 : index
    %42 = vector.load %arg5[%c0_7, %c0_8, %c0_9] : memref<2x64x256xf32, #tpu.memory_space<vmem>>, vector<1x64x256xf32>
    %43 = vector.shape_cast %42 : vector<1x64x256xf32> to vector<64x256xf32>
    %cst_10 = arith.constant dense<0.000000e+00> : vector<80x256xf32>
    %44 = tpu.matmul %11, %43, %cst_10 {dimension_numbers = #tpu.dot_dimension_numbers<[1], [0], [0], [1], [0, 0, 1, 1], [], []>} : vector<80x64xf32>, vector<64x256xf32>, vector<80x256xf32> -> vector<80x256xf32>
    %c0_11 = arith.constant 0 : index
    %c0_12 = arith.constant 0 : index
    %c0_13 = arith.constant 0 : index
    %45 = vector.load %arg7[%c0_11, %c0_12, %c0_13] : memref<2x1x256xf32, #tpu.memory_space<vmem>>, vector<1x1x256xf32>
    %46 = vector.shape_cast %45 : vector<1x1x256xf32> to vector<1x256xf32>
    %47 = vector.broadcast %46 : vector<1x256xf32> to vector<80x256xf32>
    %48 = arith.addf %44, %47 : vector<80x256xf32>
    %c0_14 = arith.constant 0 : index
    %c0_15 = arith.constant 0 : index
    %49 = vector.load %arg11[%c0_14, %c0_15] : memref<80x256xf32, #tpu.memory_space<vmem>>, vector<80x256xf32>
    tpu.vector_store %arg11[%c0_14, %c0_15], %48 {strides = array<i32>} : memref<80x256xf32, #tpu.memory_space<vmem>>, vector<80x256xf32>,
    %c0_16 = arith.constant 0 : index
    %c0_17 = arith.constant 0 : index
    %c0_18 = arith.constant 0 : index
    %50 = vector.load %arg6[%c0_16, %c0_17, %c0_18] : memref<2x64x256xf32, #tpu.memory_space<vmem>>, vector<1x64x256xf32>
    %51 = vector.shape_cast %50 : vector<1x64x256xf32> to vector<64x256xf32>
    %cst_19 = arith.constant 0.000000e+00 : f32
    %52 = vector.broadcast %cst_19 : f32 to vector<8x64xf32>
    %cst_20 = arith.constant 0.000000e+00 : f32
    %53 = vector.broadcast %cst_20 : f32 to vector<8x64xf32>
    %c0_21 = arith.constant 0 : index
    %c0_22 = arith.constant 0 : index
    %54 = vector.load %arg11[%c0_21, %c0_22] : memref<80x256xf32, #tpu.memory_space<vmem>>, vector<8x256xf32>
    %cst_23 = arith.constant dense<0.000000e+00> : vector<8x256xf32>
    %55 = tpu.matmul %52, %51, %cst_23 {dimension_numbers = #tpu.dot_dimension_numbers<[1], [0], [0], [1], [0, 0, 1, 1], [], []>} : vector<8x64xf32>, vector<64x256xf32>, vector<8x256xf32> -> vector<8x256xf32>
    %56 = arith.addf %54, %55 : vector<8x256xf32>
    %57 = math.tanh %56 : vector<8x256xf32>
    %58 = arith.negf %56 : vector<8x256xf32>
    %59 = math.exp %58 : vector<8x256xf32>
    %cst_24 = arith.constant 1.000000e+00 : f32
    %60 = vector.broadcast %cst_24 : f32 to vector<8x256xf32>
    %61 = arith.addf %60, %59 : vector<8x256xf32>
    %62 = arith.divf %60, %61 : vector<8x256xf32>
    %63 = arith.select %41, %57, %62 : vector<8x256xi1>, vector<8x256xf32>
    %64 = vector.extract_strided_slice %63 {offsets = [0, 0], sizes = [8, 64], strides = [1, 1]} : vector<8x256xf32> to vector<8x64xf32>
    %65 = vector.extract_strided_slice %63 {offsets = [0, 64], sizes = [8, 64], strides = [1, 1]} : vector<8x256xf32> to vector<8x64xf32>
    %66 = vector.extract_strided_slice %63 {offsets = [0, 128], sizes = [8, 64], strides = [1, 1]} : vector<8x256xf32> to vector<8x64xf32>
    %67 = vector.extract_strided_slice %63 {offsets = [0, 192], sizes = [8, 64], strides = [1, 1]} : vector<8x256xf32> to vector<8x64xf32>
    %68 = arith.mulf %65, %53 : vector<8x64xf32>
    %69 = arith.mulf %64, %66 : vector<8x64xf32>
    %70 = arith.addf %68, %69 : vector<8x64xf32>
    %71 = math.tanh %70 : vector<8x64xf32>
    %72 = arith.mulf %67, %71 : vector<8x64xf32>
    %73 = arith.select %17, %70, %53 : vector<8x64xi1>, vector<8x64xf32>
    %74 = arith.select %17, %72, %52 : vector<8x64xi1>, vector<8x64xf32>
    %cst_25 = arith.constant 0.000000e+00 : f32
    %75 = vector.broadcast %cst_25 : f32 to vector<8x64xf32>
    %76 = arith.select %17, %72, %75 : vector<8x64xi1>, vector<8x64xf32>
    %77 = vector.extract_strided_slice %11 {offsets = [0, 0], sizes = [8, 64], strides = [1, 1]} : vector<80x64xf32> to vector<8x64xf32>
    %78 = arith.addf %76, %77 : vector<8x64xf32>
    %c0_26 = arith.constant 0 : index
    %c0_27 = arith.constant 0 : index
    %79 = vector.load %arg12[%c0_26, %c0_27] : memref<80x64xf32, #tpu.memory_space<vmem>>, vector<8x64xf32>
    tpu.vector_store %arg12[%c0_26, %c0_27], %78 {strides = array<i32>} : memref<80x64xf32, #tpu.memory_space<vmem>>, vector<8x64xf32>,
    %c8 = arith.constant 8 : index
    %c0_28 = arith.constant 0 : index
    %80 = vector.load %arg11[%c8, %c0_28] : memref<80x256xf32, #tpu.memory_space<vmem>>, vector<8x256xf32>
    %cst_29 = arith.constant dense<0.000000e+00> : vector<8x256xf32>
    %81 = tpu.matmul %74, %51, %cst_29 {dimension_numbers = #tpu.dot_dimension_numbers<[1], [0], [0], [1], [0, 0, 1, 1], [], []>} : vector<8x64xf32>, vector<64x256xf32>, vector<8x256xf32> -> vector<8x256xf32>
    %82 = arith.addf %80, %81 : vector<8x256xf32>
    %83 = math.tanh %82 : vector<8x256xf32>
    %84 = arith.negf %82 : vector<8x256xf32>
    %85 = math.exp %84 : vector<8x256xf32>
    %cst_30 = arith.constant 1.000000e+00 : f32
    %86 = vector.broadcast %cst_30 : f32 to vector<8x256xf32>
    %87 = arith.addf %86, %85 : vector<8x256xf32>
    %88 = arith.divf %86, %87 : vector<8x256xf32>
    %89 = arith.select %41, %83, %88 : vector<8x256xi1>, vector<8x256xf32>
    %90 = vector.extract_strided_slice %89 {offsets = [0, 0], sizes = [8, 64], strides = [1, 1]} : vector<8x256xf32> to vector<8x64xf32>
    %91 = vector.extract_strided_slice %89 {offsets = [0, 64], sizes = [8, 64], strides = [1, 1]} : vector<8x256xf32> to vector<8x64xf32>
    %92 = vector.extract_strided_slice %89 {offsets = [0, 128], sizes = [8, 64], strides = [1, 1]} : vector<8x256xf32> to vector<8x64xf32>
    %93 = vector.extract_strided_slice %89 {offsets = [0, 192], sizes = [8, 64], strides = [1, 1]} : vector<8x256xf32> to vector<8x64xf32>
    %94 = arith.mulf %91, %73 : vector<8x64xf32>
    %95 = arith.mulf %90, %92 : vector<8x64xf32>
    %96 = arith.addf %94, %95 : vector<8x64xf32>
    %97 = math.tanh %96 : vector<8x64xf32>
    %98 = arith.mulf %93, %97 : vector<8x64xf32>
    %99 = arith.select %19, %96, %73 : vector<8x64xi1>, vector<8x64xf32>
    %100 = arith.select %19, %98, %74 : vector<8x64xi1>, vector<8x64xf32>
    %cst_31 = arith.constant 0.000000e+00 : f32
    %101 = vector.broadcast %cst_31 : f32 to vector<8x64xf32>
    %102 = arith.select %19, %98, %101 : vector<8x64xi1>, vector<8x64xf32>
    %103 = vector.extract_strided_slice %11 {offsets = [8, 0], sizes = [8, 64], strides = [1, 1]} : vector<80x64xf32> to vector<8x64xf32>
    %104 = arith.addf %102, %103 : vector<8x64xf32>
    %c8_32 = arith.constant 8 : index
    %c0_33 = arith.constant 0 : index
    %105 = vector.load %arg12[%c8_32, %c0_33] : memref<80x64xf32, #tpu.memory_space<vmem>>, vector<8x64xf32>
    tpu.vector_store %arg12[%c8_32, %c0_33], %104 {strides = array<i32>} : memref<80x64xf32, #tpu.memory_space<vmem>>, vector<8x64xf32>,
    %c16 = arith.constant 16 : index
    %c0_34 = arith.constant 0 : index
    %106 = vector.load %arg11[%c16, %c0_34] : memref<80x256xf32, #tpu.memory_space<vmem>>, vector<8x256xf32>
    %cst_35 = arith.constant dense<0.000000e+00> : vector<8x256xf32>
    %107 = tpu.matmul %100, %51, %cst_35 {dimension_numbers = #tpu.dot_dimension_numbers<[1], [0], [0], [1], [0, 0, 1, 1], [], []>} : vector<8x64xf32>, vector<64x256xf32>, vector<8x256xf32> -> vector<8x256xf32>
    %108 = arith.addf %106, %107 : vector<8x256xf32>
    %109 = math.tanh %108 : vector<8x256xf32>
    %110 = arith.negf %108 : vector<8x256xf32>
    %111 = math.exp %110 : vector<8x256xf32>
    %cst_36 = arith.constant 1.000000e+00 : f32
    %112 = vector.broadcast %cst_36 : f32 to vector<8x256xf32>
    %113 = arith.addf %112, %111 : vector<8x256xf32>
    %114 = arith.divf %112, %113 : vector<8x256xf32>
    %115 = arith.select %41, %109, %114 : vector<8x256xi1>, vector<8x256xf32>
    %116 = vector.extract_strided_slice %115 {offsets = [0, 0], sizes = [8, 64], strides = [1, 1]} : vector<8x256xf32> to vector<8x64xf32>
    %117 = vector.extract_strided_slice %115 {offsets = [0, 64], sizes = [8, 64], strides = [1, 1]} : vector<8x256xf32> to vector<8x64xf32>
    %118 = vector.extract_strided_slice %115 {offsets = [0, 128], sizes = [8, 64], strides = [1, 1]} : vector<8x256xf32> to vector<8x64xf32>
    %119 = vector.extract_strided_slice %115 {offsets = [0, 192], sizes = [8, 64], strides = [1, 1]} : vector<8x256xf32> to vector<8x64xf32>
    %120 = arith.mulf %117, %99 : vector<8x64xf32>
    %121 = arith.mulf %116, %118 : vector<8x64xf32>
    %122 = arith.addf %120, %121 : vector<8x64xf32>
    %123 = math.tanh %122 : vector<8x64xf32>
    %124 = arith.mulf %119, %123 : vector<8x64xf32>
    %125 = arith.select %21, %122, %99 : vector<8x64xi1>, vector<8x64xf32>
    %126 = arith.select %21, %124, %100 : vector<8x64xi1>, vector<8x64xf32>
    %cst_37 = arith.constant 0.000000e+00 : f32
    %127 = vector.broadcast %cst_37 : f32 to vector<8x64xf32>
    %128 = arith.select %21, %124, %127 : vector<8x64xi1>, vector<8x64xf32>
    %129 = vector.extract_strided_slice %11 {offsets = [16, 0], sizes = [8, 64], strides = [1, 1]} : vector<80x64xf32> to vector<8x64xf32>
    %130 = arith.addf %128, %129 : vector<8x64xf32>
    %c16_38 = arith.constant 16 : index
    %c0_39 = arith.constant 0 : index
    %131 = vector.load %arg12[%c16_38, %c0_39] : memref<80x64xf32, #tpu.memory_space<vmem>>, vector<8x64xf32>
    tpu.vector_store %arg12[%c16_38, %c0_39], %130 {strides = array<i32>} : memref<80x64xf32, #tpu.memory_space<vmem>>, vector<8x64xf32>,
    %c24 = arith.constant 24 : index
    %c0_40 = arith.constant 0 : index
    %132 = vector.load %arg11[%c24, %c0_40] : memref<80x256xf32, #tpu.memory_space<vmem>>, vector<8x256xf32>
    %cst_41 = arith.constant dense<0.000000e+00> : vector<8x256xf32>
    %133 = tpu.matmul %126, %51, %cst_41 {dimension_numbers = #tpu.dot_dimension_numbers<[1], [0], [0], [1], [0, 0, 1, 1], [], []>} : vector<8x64xf32>, vector<64x256xf32>, vector<8x256xf32> -> vector<8x256xf32>
    %134 = arith.addf %132, %133 : vector<8x256xf32>
    %135 = math.tanh %134 : vector<8x256xf32>
    %136 = arith.negf %134 : vector<8x256xf32>
    %137 = math.exp %136 : vector<8x256xf32>
    %cst_42 = arith.constant 1.000000e+00 : f32
    %138 = vector.broadcast %cst_42 : f32 to vector<8x256xf32>
    %139 = arith.addf %138, %137 : vector<8x256xf32>
    %140 = arith.divf %138, %139 : vector<8x256xf32>
    %141 = arith.select %41, %135, %140 : vector<8x256xi1>, vector<8x256xf32>
    %142 = vector.extract_strided_slice %141 {offsets = [0, 0], sizes = [8, 64], strides = [1, 1]} : vector<8x256xf32> to vector<8x64xf32>
    %143 = vector.extract_strided_slice %141 {offsets = [0, 64], sizes = [8, 64], strides = [1, 1]} : vector<8x256xf32> to vector<8x64xf32>
    %144 = vector.extract_strided_slice %141 {offsets = [0, 128], sizes = [8, 64], strides = [1, 1]} : vector<8x256xf32> to vector<8x64xf32>
    %145 = vector.extract_strided_slice %141 {offsets = [0, 192], sizes = [8, 64], strides = [1, 1]} : vector<8x256xf32> to vector<8x64xf32>
    %146 = arith.mulf %143, %125 : vector<8x64xf32>
    %147 = arith.mulf %142, %144 : vector<8x64xf32>
    %148 = arith.addf %146, %147 : vector<8x64xf32>
    %149 = math.tanh %148 : vector<8x64xf32>
    %150 = arith.mulf %145, %149 : vector<8x64xf32>
    %151 = arith.select %23, %148, %125 : vector<8x64xi1>, vector<8x64xf32>
    %152 = arith.select %23, %150, %126 : vector<8x64xi1>, vector<8x64xf32>
    %cst_43 = arith.constant 0.000000e+00 : f32
    %153 = vector.broadcast %cst_43 : f32 to vector<8x64xf32>
    %154 = arith.select %23, %150, %153 : vector<8x64xi1>, vector<8x64xf32>
    %155 = vector.extract_strided_slice %11 {offsets = [24, 0], sizes = [8, 64], strides = [1, 1]} : vector<80x64xf32> to vector<8x64xf32>
    %156 = arith.addf %154, %155 : vector<8x64xf32>
    %c24_44 = arith.constant 24 : index
    %c0_45 = arith.constant 0 : index
    %157 = vector.load %arg12[%c24_44, %c0_45] : memref<80x64xf32, #tpu.memory_space<vmem>>, vector<8x64xf32>
    tpu.vector_store %arg12[%c24_44, %c0_45], %156 {strides = array<i32>} : memref<80x64xf32, #tpu.memory_space<vmem>>, vector<8x64xf32>,
    %c32 = arith.constant 32 : index
    %c0_46 = arith.constant 0 : index
    %158 = vector.load %arg11[%c32, %c0_46] : memref<80x256xf32, #tpu.memory_space<vmem>>, vector<8x256xf32>
    %cst_47 = arith.constant dense<0.000000e+00> : vector<8x256xf32>
    %159 = tpu.matmul %152, %51, %cst_47 {dimension_numbers = #tpu.dot_dimension_numbers<[1], [0], [0], [1], [0, 0, 1, 1], [], []>} : vector<8x64xf32>, vector<64x256xf32>, vector<8x256xf32> -> vector<8x256xf32>
    %160 = arith.addf %158, %159 : vector<8x256xf32>
    %161 = math.tanh %160 : vector<8x256xf32>
    %162 = arith.negf %160 : vector<8x256xf32>
    %163 = math.exp %162 : vector<8x256xf32>
    %cst_48 = arith.constant 1.000000e+00 : f32
    %164 = vector.broadcast %cst_48 : f32 to vector<8x256xf32>
    %165 = arith.addf %164, %163 : vector<8x256xf32>
    %166 = arith.divf %164, %165 : vector<8x256xf32>
    %167 = arith.select %41, %161, %166 : vector<8x256xi1>, vector<8x256xf32>
    %168 = vector.extract_strided_slice %167 {offsets = [0, 0], sizes = [8, 64], strides = [1, 1]} : vector<8x256xf32> to vector<8x64xf32>
    %169 = vector.extract_strided_slice %167 {offsets = [0, 64], sizes = [8, 64], strides = [1, 1]} : vector<8x256xf32> to vector<8x64xf32>
    %170 = vector.extract_strided_slice %167 {offsets = [0, 128], sizes = [8, 64], strides = [1, 1]} : vector<8x256xf32> to vector<8x64xf32>
    %171 = vector.extract_strided_slice %167 {offsets = [0, 192], sizes = [8, 64], strides = [1, 1]} : vector<8x256xf32> to vector<8x64xf32>
    %172 = arith.mulf %169, %151 : vector<8x64xf32>
    %173 = arith.mulf %168, %170 : vector<8x64xf32>
    %174 = arith.addf %172, %173 : vector<8x64xf32>
    %175 = math.tanh %174 : vector<8x64xf32>
    %176 = arith.mulf %171, %175 : vector<8x64xf32>
    %177 = arith.select %25, %174, %151 : vector<8x64xi1>, vector<8x64xf32>
    %178 = arith.select %25, %176, %152 : vector<8x64xi1>, vector<8x64xf32>
    %cst_49 = arith.constant 0.000000e+00 : f32
    %179 = vector.broadcast %cst_49 : f32 to vector<8x64xf32>
    %180 = arith.select %25, %176, %179 : vector<8x64xi1>, vector<8x64xf32>
    %181 = vector.extract_strided_slice %11 {offsets = [32, 0], sizes = [8, 64], strides = [1, 1]} : vector<80x64xf32> to vector<8x64xf32>
    %182 = arith.addf %180, %181 : vector<8x64xf32>
    %c32_50 = arith.constant 32 : index
    %c0_51 = arith.constant 0 : index
    %183 = vector.load %arg12[%c32_50, %c0_51] : memref<80x64xf32, #tpu.memory_space<vmem>>, vector<8x64xf32>
    tpu.vector_store %arg12[%c32_50, %c0_51], %182 {strides = array<i32>} : memref<80x64xf32, #tpu.memory_space<vmem>>, vector<8x64xf32>,
    %c40 = arith.constant 40 : index
    %c0_52 = arith.constant 0 : index
    %184 = vector.load %arg11[%c40, %c0_52] : memref<80x256xf32, #tpu.memory_space<vmem>>, vector<8x256xf32>
    %cst_53 = arith.constant dense<0.000000e+00> : vector<8x256xf32>
    %185 = tpu.matmul %178, %51, %cst_53 {dimension_numbers = #tpu.dot_dimension_numbers<[1], [0], [0], [1], [0, 0, 1, 1], [], []>} : vector<8x64xf32>, vector<64x256xf32>, vector<8x256xf32> -> vector<8x256xf32>
    %186 = arith.addf %184, %185 : vector<8x256xf32>
    %187 = math.tanh %186 : vector<8x256xf32>
    %188 = arith.negf %186 : vector<8x256xf32>
    %189 = math.exp %188 : vector<8x256xf32>
    %cst_54 = arith.constant 1.000000e+00 : f32
    %190 = vector.broadcast %cst_54 : f32 to vector<8x256xf32>
    %191 = arith.addf %190, %189 : vector<8x256xf32>
    %192 = arith.divf %190, %191 : vector<8x256xf32>
    %193 = arith.select %41, %187, %192 : vector<8x256xi1>, vector<8x256xf32>
    %194 = vector.extract_strided_slice %193 {offsets = [0, 0], sizes = [8, 64], strides = [1, 1]} : vector<8x256xf32> to vector<8x64xf32>
    %195 = vector.extract_strided_slice %193 {offsets = [0, 64], sizes = [8, 64], strides = [1, 1]} : vector<8x256xf32> to vector<8x64xf32>
    %196 = vector.extract_strided_slice %193 {offsets = [0, 128], sizes = [8, 64], strides = [1, 1]} : vector<8x256xf32> to vector<8x64xf32>
    %197 = vector.extract_strided_slice %193 {offsets = [0, 192], sizes = [8, 64], strides = [1, 1]} : vector<8x256xf32> to vector<8x64xf32>
    %198 = arith.mulf %195, %177 : vector<8x64xf32>
    %199 = arith.mulf %194, %196 : vector<8x64xf32>
    %200 = arith.addf %198, %199 : vector<8x64xf32>
    %201 = math.tanh %200 : vector<8x64xf32>
    %202 = arith.mulf %197, %201 : vector<8x64xf32>
    %203 = arith.select %27, %200, %177 : vector<8x64xi1>, vector<8x64xf32>
    %204 = arith.select %27, %202, %178 : vector<8x64xi1>, vector<8x64xf32>
    %cst_55 = arith.constant 0.000000e+00 : f32
    %205 = vector.broadcast %cst_55 : f32 to vector<8x64xf32>
    %206 = arith.select %27, %202, %205 : vector<8x64xi1>, vector<8x64xf32>
    %207 = vector.extract_strided_slice %11 {offsets = [40, 0], sizes = [8, 64], strides = [1, 1]} : vector<80x64xf32> to vector<8x64xf32>
    %208 = arith.addf %206, %207 : vector<8x64xf32>
    %c40_56 = arith.constant 40 : index
    %c0_57 = arith.constant 0 : index
    %209 = vector.load %arg12[%c40_56, %c0_57] : memref<80x64xf32, #tpu.memory_space<vmem>>, vector<8x64xf32>
    tpu.vector_store %arg12[%c40_56, %c0_57], %208 {strides = array<i32>} : memref<80x64xf32, #tpu.memory_space<vmem>>, vector<8x64xf32>,
    %c48 = arith.constant 48 : index
    %c0_58 = arith.constant 0 : index
    %210 = vector.load %arg11[%c48, %c0_58] : memref<80x256xf32, #tpu.memory_space<vmem>>, vector<8x256xf32>
    %cst_59 = arith.constant dense<0.000000e+00> : vector<8x256xf32>
    %211 = tpu.matmul %204, %51, %cst_59 {dimension_numbers = #tpu.dot_dimension_numbers<[1], [0], [0], [1], [0, 0, 1, 1], [], []>} : vector<8x64xf32>, vector<64x256xf32>, vector<8x256xf32> -> vector<8x256xf32>
    %212 = arith.addf %210, %211 : vector<8x256xf32>
    %213 = math.tanh %212 : vector<8x256xf32>
    %214 = arith.negf %212 : vector<8x256xf32>
    %215 = math.exp %214 : vector<8x256xf32>
    %cst_60 = arith.constant 1.000000e+00 : f32
    %216 = vector.broadcast %cst_60 : f32 to vector<8x256xf32>
    %217 = arith.addf %216, %215 : vector<8x256xf32>
    %218 = arith.divf %216, %217 : vector<8x256xf32>
    %219 = arith.select %41, %213, %218 : vector<8x256xi1>, vector<8x256xf32>
    %220 = vector.extract_strided_slice %219 {offsets = [0, 0], sizes = [8, 64], strides = [1, 1]} : vector<8x256xf32> to vector<8x64xf32>
    %221 = vector.extract_strided_slice %219 {offsets = [0, 64], sizes = [8, 64], strides = [1, 1]} : vector<8x256xf32> to vector<8x64xf32>
    %222 = vector.extract_strided_slice %219 {offsets = [0, 128], sizes = [8, 64], strides = [1, 1]} : vector<8x256xf32> to vector<8x64xf32>
    %223 = vector.extract_strided_slice %219 {offsets = [0, 192], sizes = [8, 64], strides = [1, 1]} : vector<8x256xf32> to vector<8x64xf32>
    %224 = arith.mulf %221, %203 : vector<8x64xf32>
    %225 = arith.mulf %220, %222 : vector<8x64xf32>
    %226 = arith.addf %224, %225 : vector<8x64xf32>
    %227 = math.tanh %226 : vector<8x64xf32>
    %228 = arith.mulf %223, %227 : vector<8x64xf32>
    %229 = arith.select %29, %226, %203 : vector<8x64xi1>, vector<8x64xf32>
    %230 = arith.select %29, %228, %204 : vector<8x64xi1>, vector<8x64xf32>
    %cst_61 = arith.constant 0.000000e+00 : f32
    %231 = vector.broadcast %cst_61 : f32 to vector<8x64xf32>
    %232 = arith.select %29, %228, %231 : vector<8x64xi1>, vector<8x64xf32>
    %233 = vector.extract_strided_slice %11 {offsets = [48, 0], sizes = [8, 64], strides = [1, 1]} : vector<80x64xf32> to vector<8x64xf32>
    %234 = arith.addf %232, %233 : vector<8x64xf32>
    %c48_62 = arith.constant 48 : index
    %c0_63 = arith.constant 0 : index
    %235 = vector.load %arg12[%c48_62, %c0_63] : memref<80x64xf32, #tpu.memory_space<vmem>>, vector<8x64xf32>
    tpu.vector_store %arg12[%c48_62, %c0_63], %234 {strides = array<i32>} : memref<80x64xf32, #tpu.memory_space<vmem>>, vector<8x64xf32>,
    %c56 = arith.constant 56 : index
    %c0_64 = arith.constant 0 : index
    %236 = vector.load %arg11[%c56, %c0_64] : memref<80x256xf32, #tpu.memory_space<vmem>>, vector<8x256xf32>
    %cst_65 = arith.constant dense<0.000000e+00> : vector<8x256xf32>
    %237 = tpu.matmul %230, %51, %cst_65 {dimension_numbers = #tpu.dot_dimension_numbers<[1], [0], [0], [1], [0, 0, 1, 1], [], []>} : vector<8x64xf32>, vector<64x256xf32>, vector<8x256xf32> -> vector<8x256xf32>
    %238 = arith.addf %236, %237 : vector<8x256xf32>
    %239 = math.tanh %238 : vector<8x256xf32>
    %240 = arith.negf %238 : vector<8x256xf32>
    %241 = math.exp %240 : vector<8x256xf32>
    %cst_66 = arith.constant 1.000000e+00 : f32
    %242 = vector.broadcast %cst_66 : f32 to vector<8x256xf32>
    %243 = arith.addf %242, %241 : vector<8x256xf32>
    %244 = arith.divf %242, %243 : vector<8x256xf32>
    %245 = arith.select %41, %239, %244 : vector<8x256xi1>, vector<8x256xf32>
    %246 = vector.extract_strided_slice %245 {offsets = [0, 0], sizes = [8, 64], strides = [1, 1]} : vector<8x256xf32> to vector<8x64xf32>
    %247 = vector.extract_strided_slice %245 {offsets = [0, 64], sizes = [8, 64], strides = [1, 1]} : vector<8x256xf32> to vector<8x64xf32>
    %248 = vector.extract_strided_slice %245 {offsets = [0, 128], sizes = [8, 64], strides = [1, 1]} : vector<8x256xf32> to vector<8x64xf32>
    %249 = vector.extract_strided_slice %245 {offsets = [0, 192], sizes = [8, 64], strides = [1, 1]} : vector<8x256xf32> to vector<8x64xf32>
    %250 = arith.mulf %247, %229 : vector<8x64xf32>
    %251 = arith.mulf %246, %248 : vector<8x64xf32>
    %252 = arith.addf %250, %251 : vector<8x64xf32>
    %253 = math.tanh %252 : vector<8x64xf32>
    %254 = arith.mulf %249, %253 : vector<8x64xf32>
    %255 = arith.select %31, %252, %229 : vector<8x64xi1>, vector<8x64xf32>
    %256 = arith.select %31, %254, %230 : vector<8x64xi1>, vector<8x64xf32>
    %cst_67 = arith.constant 0.000000e+00 : f32
    %257 = vector.broadcast %cst_67 : f32 to vector<8x64xf32>
    %258 = arith.select %31, %254, %257 : vector<8x64xi1>, vector<8x64xf32>
    %259 = vector.extract_strided_slice %11 {offsets = [56, 0], sizes = [8, 64], strides = [1, 1]} : vector<80x64xf32> to vector<8x64xf32>
    %260 = arith.addf %258, %259 : vector<8x64xf32>
    %c56_68 = arith.constant 56 : index
    %c0_69 = arith.constant 0 : index
    %261 = vector.load %arg12[%c56_68, %c0_69] : memref<80x64xf32, #tpu.memory_space<vmem>>, vector<8x64xf32>
    tpu.vector_store %arg12[%c56_68, %c0_69], %260 {strides = array<i32>} : memref<80x64xf32, #tpu.memory_space<vmem>>, vector<8x64xf32>,
    %c64 = arith.constant 64 : index
    %c0_70 = arith.constant 0 : index
    %262 = vector.load %arg11[%c64, %c0_70] : memref<80x256xf32, #tpu.memory_space<vmem>>, vector<8x256xf32>
    %cst_71 = arith.constant dense<0.000000e+00> : vector<8x256xf32>
    %263 = tpu.matmul %256, %51, %cst_71 {dimension_numbers = #tpu.dot_dimension_numbers<[1], [0], [0], [1], [0, 0, 1, 1], [], []>} : vector<8x64xf32>, vector<64x256xf32>, vector<8x256xf32> -> vector<8x256xf32>
    %264 = arith.addf %262, %263 : vector<8x256xf32>
    %265 = math.tanh %264 : vector<8x256xf32>
    %266 = arith.negf %264 : vector<8x256xf32>
    %267 = math.exp %266 : vector<8x256xf32>
    %cst_72 = arith.constant 1.000000e+00 : f32
    %268 = vector.broadcast %cst_72 : f32 to vector<8x256xf32>
    %269 = arith.addf %268, %267 : vector<8x256xf32>
    %270 = arith.divf %268, %269 : vector<8x256xf32>
    %271 = arith.select %41, %265, %270 : vector<8x256xi1>, vector<8x256xf32>
    %272 = vector.extract_strided_slice %271 {offsets = [0, 0], sizes = [8, 64], strides = [1, 1]} : vector<8x256xf32> to vector<8x64xf32>
    %273 = vector.extract_strided_slice %271 {offsets = [0, 64], sizes = [8, 64], strides = [1, 1]} : vector<8x256xf32> to vector<8x64xf32>
    %274 = vector.extract_strided_slice %271 {offsets = [0, 128], sizes = [8, 64], strides = [1, 1]} : vector<8x256xf32> to vector<8x64xf32>
    %275 = vector.extract_strided_slice %271 {offsets = [0, 192], sizes = [8, 64], strides = [1, 1]} : vector<8x256xf32> to vector<8x64xf32>
    %276 = arith.mulf %273, %255 : vector<8x64xf32>
    %277 = arith.mulf %272, %274 : vector<8x64xf32>
    %278 = arith.addf %276, %277 : vector<8x64xf32>
    %279 = math.tanh %278 : vector<8x64xf32>
    %280 = arith.mulf %275, %279 : vector<8x64xf32>
    %281 = arith.select %33, %278, %255 : vector<8x64xi1>, vector<8x64xf32>
    %282 = arith.select %33, %280, %256 : vector<8x64xi1>, vector<8x64xf32>
    %cst_73 = arith.constant 0.000000e+00 : f32
    %283 = vector.broadcast %cst_73 : f32 to vector<8x64xf32>
    %284 = arith.select %33, %280, %283 : vector<8x64xi1>, vector<8x64xf32>
    %285 = vector.extract_strided_slice %11 {offsets = [64, 0], sizes = [8, 64], strides = [1, 1]} : vector<80x64xf32> to vector<8x64xf32>
    %286 = arith.addf %284, %285 : vector<8x64xf32>
    %c64_74 = arith.constant 64 : index
    %c0_75 = arith.constant 0 : index
    %287 = vector.load %arg12[%c64_74, %c0_75] : memref<80x64xf32, #tpu.memory_space<vmem>>, vector<8x64xf32>
    tpu.vector_store %arg12[%c64_74, %c0_75], %286 {strides = array<i32>} : memref<80x64xf32, #tpu.memory_space<vmem>>, vector<8x64xf32>,
    %c72 = arith.constant 72 : index
    %c0_76 = arith.constant 0 : index
    %288 = vector.load %arg11[%c72, %c0_76] : memref<80x256xf32, #tpu.memory_space<vmem>>, vector<8x256xf32>
    %cst_77 = arith.constant dense<0.000000e+00> : vector<8x256xf32>
    %289 = tpu.matmul %282, %51, %cst_77 {dimension_numbers = #tpu.dot_dimension_numbers<[1], [0], [0], [1], [0, 0, 1, 1], [], []>} : vector<8x64xf32>, vector<64x256xf32>, vector<8x256xf32> -> vector<8x256xf32>
    %290 = arith.addf %288, %289 : vector<8x256xf32>
    %291 = math.tanh %290 : vector<8x256xf32>
    %292 = arith.negf %290 : vector<8x256xf32>
    %293 = math.exp %292 : vector<8x256xf32>
    %cst_78 = arith.constant 1.000000e+00 : f32
    %294 = vector.broadcast %cst_78 : f32 to vector<8x256xf32>
    %295 = arith.addf %294, %293 : vector<8x256xf32>
    %296 = arith.divf %294, %295 : vector<8x256xf32>
    %297 = arith.select %41, %291, %296 : vector<8x256xi1>, vector<8x256xf32>
    %298 = vector.extract_strided_slice %297 {offsets = [0, 0], sizes = [8, 64], strides = [1, 1]} : vector<8x256xf32> to vector<8x64xf32>
    %299 = vector.extract_strided_slice %297 {offsets = [0, 64], sizes = [8, 64], strides = [1, 1]} : vector<8x256xf32> to vector<8x64xf32>
    %300 = vector.extract_strided_slice %297 {offsets = [0, 128], sizes = [8, 64], strides = [1, 1]} : vector<8x256xf32> to vector<8x64xf32>
    %301 = vector.extract_strided_slice %297 {offsets = [0, 192], sizes = [8, 64], strides = [1, 1]} : vector<8x256xf32> to vector<8x64xf32>
    %302 = arith.mulf %299, %281 : vector<8x64xf32>
    %303 = arith.mulf %298, %300 : vector<8x64xf32>
    %304 = arith.addf %302, %303 : vector<8x64xf32>
    %305 = math.tanh %304 : vector<8x64xf32>
    %306 = arith.mulf %301, %305 : vector<8x64xf32>
    %cst_79 = arith.constant 0.000000e+00 : f32
    %307 = vector.broadcast %cst_79 : f32 to vector<8x64xf32>
    %308 = arith.select %35, %306, %307 : vector<8x64xi1>, vector<8x64xf32>
    %309 = vector.extract_strided_slice %11 {offsets = [72, 0], sizes = [8, 64], strides = [1, 1]} : vector<80x64xf32> to vector<8x64xf32>
    %310 = arith.addf %308, %309 : vector<8x64xf32>
    %c72_80 = arith.constant 72 : index
    %c0_81 = arith.constant 0 : index
    %311 = vector.load %arg12[%c72_80, %c0_81] : memref<80x64xf32, #tpu.memory_space<vmem>>, vector<8x64xf32>
    tpu.vector_store %arg12[%c72_80, %c0_81], %310 {strides = array<i32>} : memref<80x64xf32, #tpu.memory_space<vmem>>, vector<8x64xf32>,
    %c0_82 = arith.constant 0 : index
    %c0_83 = arith.constant 0 : index
    %312 = vector.load %arg12[%c0_82, %c0_83] : memref<80x64xf32, #tpu.memory_space<vmem>>, vector<80x64xf32>
    %c1 = arith.constant 1 : index
    %c0_84 = arith.constant 0 : index
    %c0_85 = arith.constant 0 : index
    %313 = vector.load %arg5[%c1, %c0_84, %c0_85] : memref<2x64x256xf32, #tpu.memory_space<vmem>>, vector<1x64x256xf32>
    %314 = vector.shape_cast %313 : vector<1x64x256xf32> to vector<64x256xf32>
    %cst_86 = arith.constant dense<0.000000e+00> : vector<80x256xf32>
    %315 = tpu.matmul %312, %314, %cst_86 {dimension_numbers = #tpu.dot_dimension_numbers<[1], [0], [0], [1], [0, 0, 1, 1], [], []>} : vector<80x64xf32>, vector<64x256xf32>, vector<80x256xf32> -> vector<80x256xf32>
    %c1_87 = arith.constant 1 : index
    %c0_88 = arith.constant 0 : index
    %c0_89 = arith.constant 0 : index
    %316 = vector.load %arg7[%c1_87, %c0_88, %c0_89] : memref<2x1x256xf32, #tpu.memory_space<vmem>>, vector<1x1x256xf32>
    %317 = vector.shape_cast %316 : vector<1x1x256xf32> to vector<1x256xf32>
    %318 = vector.broadcast %317 : vector<1x256xf32> to vector<80x256xf32>
    %319 = arith.addf %315, %318 : vector<80x256xf32>
    %c0_90 = arith.constant 0 : index
    %c0_91 = arith.constant 0 : index
    %320 = vector.load %arg11[%c0_90, %c0_91] : memref<80x256xf32, #tpu.memory_space<vmem>>, vector<80x256xf32>
    tpu.vector_store %arg11[%c0_90, %c0_91], %319 {strides = array<i32>} : memref<80x256xf32, #tpu.memory_space<vmem>>, vector<80x256xf32>,
    %c1_92 = arith.constant 1 : index
    %c0_93 = arith.constant 0 : index
    %c0_94 = arith.constant 0 : index
    %321 = vector.load %arg6[%c1_92, %c0_93, %c0_94] : memref<2x64x256xf32, #tpu.memory_space<vmem>>, vector<1x64x256xf32>
    %322 = vector.shape_cast %321 : vector<1x64x256xf32> to vector<64x256xf32>
    %cst_95 = arith.constant 0.000000e+00 : f32
    %323 = vector.broadcast %cst_95 : f32 to vector<8x64xf32>
    %cst_96 = arith.constant 0.000000e+00 : f32
    %324 = vector.broadcast %cst_96 : f32 to vector<8x64xf32>
    %c0_97 = arith.constant 0 : index
    %c0_98 = arith.constant 0 : index
    %325 = vector.load %arg11[%c0_97, %c0_98] : memref<80x256xf32, #tpu.memory_space<vmem>>, vector<8x256xf32>
    %cst_99 = arith.constant dense<0.000000e+00> : vector<8x256xf32>
    %326 = tpu.matmul %323, %322, %cst_99 {dimension_numbers = #tpu.dot_dimension_numbers<[1], [0], [0], [1], [0, 0, 1, 1], [], []>} : vector<8x64xf32>, vector<64x256xf32>, vector<8x256xf32> -> vector<8x256xf32>
    %327 = arith.addf %325, %326 : vector<8x256xf32>
    %328 = math.tanh %327 : vector<8x256xf32>
    %329 = arith.negf %327 : vector<8x256xf32>
    %330 = math.exp %329 : vector<8x256xf32>
    %cst_100 = arith.constant 1.000000e+00 : f32
    %331 = vector.broadcast %cst_100 : f32 to vector<8x256xf32>
    %332 = arith.addf %331, %330 : vector<8x256xf32>
    %333 = arith.divf %331, %332 : vector<8x256xf32>
    %334 = arith.select %41, %328, %333 : vector<8x256xi1>, vector<8x256xf32>
    %335 = vector.extract_strided_slice %334 {offsets = [0, 0], sizes = [8, 64], strides = [1, 1]} : vector<8x256xf32> to vector<8x64xf32>
    %336 = vector.extract_strided_slice %334 {offsets = [0, 64], sizes = [8, 64], strides = [1, 1]} : vector<8x256xf32> to vector<8x64xf32>
    %337 = vector.extract_strided_slice %334 {offsets = [0, 128], sizes = [8, 64], strides = [1, 1]} : vector<8x256xf32> to vector<8x64xf32>
    %338 = vector.extract_strided_slice %334 {offsets = [0, 192], sizes = [8, 64], strides = [1, 1]} : vector<8x256xf32> to vector<8x64xf32>
    %339 = arith.mulf %336, %324 : vector<8x64xf32>
    %340 = arith.mulf %335, %337 : vector<8x64xf32>
    %341 = arith.addf %339, %340 : vector<8x64xf32>
    %342 = math.tanh %341 : vector<8x64xf32>
    %343 = arith.mulf %338, %342 : vector<8x64xf32>
    %344 = arith.select %17, %341, %324 : vector<8x64xi1>, vector<8x64xf32>
    %345 = arith.select %17, %343, %323 : vector<8x64xi1>, vector<8x64xf32>
    %c8_101 = arith.constant 8 : index
    %c0_102 = arith.constant 0 : index
    %346 = vector.load %arg11[%c8_101, %c0_102] : memref<80x256xf32, #tpu.memory_space<vmem>>, vector<8x256xf32>
    %cst_103 = arith.constant dense<0.000000e+00> : vector<8x256xf32>
    %347 = tpu.matmul %345, %322, %cst_103 {dimension_numbers = #tpu.dot_dimension_numbers<[1], [0], [0], [1], [0, 0, 1, 1], [], []>} : vector<8x64xf32>, vector<64x256xf32>, vector<8x256xf32> -> vector<8x256xf32>
    %348 = arith.addf %346, %347 : vector<8x256xf32>
    %349 = math.tanh %348 : vector<8x256xf32>
    %350 = arith.negf %348 : vector<8x256xf32>
    %351 = math.exp %350 : vector<8x256xf32>
    %cst_104 = arith.constant 1.000000e+00 : f32
    %352 = vector.broadcast %cst_104 : f32 to vector<8x256xf32>
    %353 = arith.addf %352, %351 : vector<8x256xf32>
    %354 = arith.divf %352, %353 : vector<8x256xf32>
    %355 = arith.select %41, %349, %354 : vector<8x256xi1>, vector<8x256xf32>
    %356 = vector.extract_strided_slice %355 {offsets = [0, 0], sizes = [8, 64], strides = [1, 1]} : vector<8x256xf32> to vector<8x64xf32>
    %357 = vector.extract_strided_slice %355 {offsets = [0, 64], sizes = [8, 64], strides = [1, 1]} : vector<8x256xf32> to vector<8x64xf32>
    %358 = vector.extract_strided_slice %355 {offsets = [0, 128], sizes = [8, 64], strides = [1, 1]} : vector<8x256xf32> to vector<8x64xf32>
    %359 = vector.extract_strided_slice %355 {offsets = [0, 192], sizes = [8, 64], strides = [1, 1]} : vector<8x256xf32> to vector<8x64xf32>
    %360 = arith.mulf %357, %344 : vector<8x64xf32>
    %361 = arith.mulf %356, %358 : vector<8x64xf32>
    %362 = arith.addf %360, %361 : vector<8x64xf32>
    %363 = math.tanh %362 : vector<8x64xf32>
    %364 = arith.mulf %359, %363 : vector<8x64xf32>
    %365 = arith.select %19, %362, %344 : vector<8x64xi1>, vector<8x64xf32>
    %366 = arith.select %19, %364, %345 : vector<8x64xi1>, vector<8x64xf32>
    %c16_105 = arith.constant 16 : index
    %c0_106 = arith.constant 0 : index
    %367 = vector.load %arg11[%c16_105, %c0_106] : memref<80x256xf32, #tpu.memory_space<vmem>>, vector<8x256xf32>
    %cst_107 = arith.constant dense<0.000000e+00> : vector<8x256xf32>
    %368 = tpu.matmul %366, %322, %cst_107 {dimension_numbers = #tpu.dot_dimension_numbers<[1], [0], [0], [1], [0, 0, 1, 1], [], []>} : vector<8x64xf32>, vector<64x256xf32>, vector<8x256xf32> -> vector<8x256xf32>
    %369 = arith.addf %367, %368 : vector<8x256xf32>
    %370 = math.tanh %369 : vector<8x256xf32>
    %371 = arith.negf %369 : vector<8x256xf32>
    %372 = math.exp %371 : vector<8x256xf32>
    %cst_108 = arith.constant 1.000000e+00 : f32
    %373 = vector.broadcast %cst_108 : f32 to vector<8x256xf32>
    %374 = arith.addf %373, %372 : vector<8x256xf32>
    %375 = arith.divf %373, %374 : vector<8x256xf32>
    %376 = arith.select %41, %370, %375 : vector<8x256xi1>, vector<8x256xf32>
    %377 = vector.extract_strided_slice %376 {offsets = [0, 0], sizes = [8, 64], strides = [1, 1]} : vector<8x256xf32> to vector<8x64xf32>
    %378 = vector.extract_strided_slice %376 {offsets = [0, 64], sizes = [8, 64], strides = [1, 1]} : vector<8x256xf32> to vector<8x64xf32>
    %379 = vector.extract_strided_slice %376 {offsets = [0, 128], sizes = [8, 64], strides = [1, 1]} : vector<8x256xf32> to vector<8x64xf32>
    %380 = vector.extract_strided_slice %376 {offsets = [0, 192], sizes = [8, 64], strides = [1, 1]} : vector<8x256xf32> to vector<8x64xf32>
    %381 = arith.mulf %378, %365 : vector<8x64xf32>
    %382 = arith.mulf %377, %379 : vector<8x64xf32>
    %383 = arith.addf %381, %382 : vector<8x64xf32>
    %384 = math.tanh %383 : vector<8x64xf32>
    %385 = arith.mulf %380, %384 : vector<8x64xf32>
    %386 = arith.select %21, %383, %365 : vector<8x64xi1>, vector<8x64xf32>
    %387 = arith.select %21, %385, %366 : vector<8x64xi1>, vector<8x64xf32>
    %c24_109 = arith.constant 24 : index
    %c0_110 = arith.constant 0 : index
    %388 = vector.load %arg11[%c24_109, %c0_110] : memref<80x256xf32, #tpu.memory_space<vmem>>, vector<8x256xf32>
    %cst_111 = arith.constant dense<0.000000e+00> : vector<8x256xf32>
    %389 = tpu.matmul %387, %322, %cst_111 {dimension_numbers = #tpu.dot_dimension_numbers<[1], [0], [0], [1], [0, 0, 1, 1], [], []>} : vector<8x64xf32>, vector<64x256xf32>, vector<8x256xf32> -> vector<8x256xf32>
    %390 = arith.addf %388, %389 : vector<8x256xf32>
    %391 = math.tanh %390 : vector<8x256xf32>
    %392 = arith.negf %390 : vector<8x256xf32>
    %393 = math.exp %392 : vector<8x256xf32>
    %cst_112 = arith.constant 1.000000e+00 : f32
    %394 = vector.broadcast %cst_112 : f32 to vector<8x256xf32>
    %395 = arith.addf %394, %393 : vector<8x256xf32>
    %396 = arith.divf %394, %395 : vector<8x256xf32>
    %397 = arith.select %41, %391, %396 : vector<8x256xi1>, vector<8x256xf32>
    %398 = vector.extract_strided_slice %397 {offsets = [0, 0], sizes = [8, 64], strides = [1, 1]} : vector<8x256xf32> to vector<8x64xf32>
    %399 = vector.extract_strided_slice %397 {offsets = [0, 64], sizes = [8, 64], strides = [1, 1]} : vector<8x256xf32> to vector<8x64xf32>
    %400 = vector.extract_strided_slice %397 {offsets = [0, 128], sizes = [8, 64], strides = [1, 1]} : vector<8x256xf32> to vector<8x64xf32>
    %401 = vector.extract_strided_slice %397 {offsets = [0, 192], sizes = [8, 64], strides = [1, 1]} : vector<8x256xf32> to vector<8x64xf32>
    %402 = arith.mulf %399, %386 : vector<8x64xf32>
    %403 = arith.mulf %398, %400 : vector<8x64xf32>
    %404 = arith.addf %402, %403 : vector<8x64xf32>
    %405 = math.tanh %404 : vector<8x64xf32>
    %406 = arith.mulf %401, %405 : vector<8x64xf32>
    %407 = arith.select %23, %404, %386 : vector<8x64xi1>, vector<8x64xf32>
    %408 = arith.select %23, %406, %387 : vector<8x64xi1>, vector<8x64xf32>
    %c32_113 = arith.constant 32 : index
    %c0_114 = arith.constant 0 : index
    %409 = vector.load %arg11[%c32_113, %c0_114] : memref<80x256xf32, #tpu.memory_space<vmem>>, vector<8x256xf32>
    %cst_115 = arith.constant dense<0.000000e+00> : vector<8x256xf32>
    %410 = tpu.matmul %408, %322, %cst_115 {dimension_numbers = #tpu.dot_dimension_numbers<[1], [0], [0], [1], [0, 0, 1, 1], [], []>} : vector<8x64xf32>, vector<64x256xf32>, vector<8x256xf32> -> vector<8x256xf32>
    %411 = arith.addf %409, %410 : vector<8x256xf32>
    %412 = math.tanh %411 : vector<8x256xf32>
    %413 = arith.negf %411 : vector<8x256xf32>
    %414 = math.exp %413 : vector<8x256xf32>
    %cst_116 = arith.constant 1.000000e+00 : f32
    %415 = vector.broadcast %cst_116 : f32 to vector<8x256xf32>
    %416 = arith.addf %415, %414 : vector<8x256xf32>
    %417 = arith.divf %415, %416 : vector<8x256xf32>
    %418 = arith.select %41, %412, %417 : vector<8x256xi1>, vector<8x256xf32>
    %419 = vector.extract_strided_slice %418 {offsets = [0, 0], sizes = [8, 64], strides = [1, 1]} : vector<8x256xf32> to vector<8x64xf32>
    %420 = vector.extract_strided_slice %418 {offsets = [0, 64], sizes = [8, 64], strides = [1, 1]} : vector<8x256xf32> to vector<8x64xf32>
    %421 = vector.extract_strided_slice %418 {offsets = [0, 128], sizes = [8, 64], strides = [1, 1]} : vector<8x256xf32> to vector<8x64xf32>
    %422 = vector.extract_strided_slice %418 {offsets = [0, 192], sizes = [8, 64], strides = [1, 1]} : vector<8x256xf32> to vector<8x64xf32>
    %423 = arith.mulf %420, %407 : vector<8x64xf32>
    %424 = arith.mulf %419, %421 : vector<8x64xf32>
    %425 = arith.addf %423, %424 : vector<8x64xf32>
    %426 = math.tanh %425 : vector<8x64xf32>
    %427 = arith.mulf %422, %426 : vector<8x64xf32>
    %428 = arith.select %25, %425, %407 : vector<8x64xi1>, vector<8x64xf32>
    %429 = arith.select %25, %427, %408 : vector<8x64xi1>, vector<8x64xf32>
    %c40_117 = arith.constant 40 : index
    %c0_118 = arith.constant 0 : index
    %430 = vector.load %arg11[%c40_117, %c0_118] : memref<80x256xf32, #tpu.memory_space<vmem>>, vector<8x256xf32>
    %cst_119 = arith.constant dense<0.000000e+00> : vector<8x256xf32>
    %431 = tpu.matmul %429, %322, %cst_119 {dimension_numbers = #tpu.dot_dimension_numbers<[1], [0], [0], [1], [0, 0, 1, 1], [], []>} : vector<8x64xf32>, vector<64x256xf32>, vector<8x256xf32> -> vector<8x256xf32>
    %432 = arith.addf %430, %431 : vector<8x256xf32>
    %433 = math.tanh %432 : vector<8x256xf32>
    %434 = arith.negf %432 : vector<8x256xf32>
    %435 = math.exp %434 : vector<8x256xf32>
    %cst_120 = arith.constant 1.000000e+00 : f32
    %436 = vector.broadcast %cst_120 : f32 to vector<8x256xf32>
    %437 = arith.addf %436, %435 : vector<8x256xf32>
    %438 = arith.divf %436, %437 : vector<8x256xf32>
    %439 = arith.select %41, %433, %438 : vector<8x256xi1>, vector<8x256xf32>
    %440 = vector.extract_strided_slice %439 {offsets = [0, 0], sizes = [8, 64], strides = [1, 1]} : vector<8x256xf32> to vector<8x64xf32>
    %441 = vector.extract_strided_slice %439 {offsets = [0, 64], sizes = [8, 64], strides = [1, 1]} : vector<8x256xf32> to vector<8x64xf32>
    %442 = vector.extract_strided_slice %439 {offsets = [0, 128], sizes = [8, 64], strides = [1, 1]} : vector<8x256xf32> to vector<8x64xf32>
    %443 = vector.extract_strided_slice %439 {offsets = [0, 192], sizes = [8, 64], strides = [1, 1]} : vector<8x256xf32> to vector<8x64xf32>
    %444 = arith.mulf %441, %428 : vector<8x64xf32>
    %445 = arith.mulf %440, %442 : vector<8x64xf32>
    %446 = arith.addf %444, %445 : vector<8x64xf32>
    %447 = math.tanh %446 : vector<8x64xf32>
    %448 = arith.mulf %443, %447 : vector<8x64xf32>
    %449 = arith.select %27, %446, %428 : vector<8x64xi1>, vector<8x64xf32>
    %450 = arith.select %27, %448, %429 : vector<8x64xi1>, vector<8x64xf32>
    %c48_121 = arith.constant 48 : index
    %c0_122 = arith.constant 0 : index
    %451 = vector.load %arg11[%c48_121, %c0_122] : memref<80x256xf32, #tpu.memory_space<vmem>>, vector<8x256xf32>
    %cst_123 = arith.constant dense<0.000000e+00> : vector<8x256xf32>
    %452 = tpu.matmul %450, %322, %cst_123 {dimension_numbers = #tpu.dot_dimension_numbers<[1], [0], [0], [1], [0, 0, 1, 1], [], []>} : vector<8x64xf32>, vector<64x256xf32>, vector<8x256xf32> -> vector<8x256xf32>
    %453 = arith.addf %451, %452 : vector<8x256xf32>
    %454 = math.tanh %453 : vector<8x256xf32>
    %455 = arith.negf %453 : vector<8x256xf32>
    %456 = math.exp %455 : vector<8x256xf32>
    %cst_124 = arith.constant 1.000000e+00 : f32
    %457 = vector.broadcast %cst_124 : f32 to vector<8x256xf32>
    %458 = arith.addf %457, %456 : vector<8x256xf32>
    %459 = arith.divf %457, %458 : vector<8x256xf32>
    %460 = arith.select %41, %454, %459 : vector<8x256xi1>, vector<8x256xf32>
    %461 = vector.extract_strided_slice %460 {offsets = [0, 0], sizes = [8, 64], strides = [1, 1]} : vector<8x256xf32> to vector<8x64xf32>
    %462 = vector.extract_strided_slice %460 {offsets = [0, 64], sizes = [8, 64], strides = [1, 1]} : vector<8x256xf32> to vector<8x64xf32>
    %463 = vector.extract_strided_slice %460 {offsets = [0, 128], sizes = [8, 64], strides = [1, 1]} : vector<8x256xf32> to vector<8x64xf32>
    %464 = vector.extract_strided_slice %460 {offsets = [0, 192], sizes = [8, 64], strides = [1, 1]} : vector<8x256xf32> to vector<8x64xf32>
    %465 = arith.mulf %462, %449 : vector<8x64xf32>
    %466 = arith.mulf %461, %463 : vector<8x64xf32>
    %467 = arith.addf %465, %466 : vector<8x64xf32>
    %468 = math.tanh %467 : vector<8x64xf32>
    %469 = arith.mulf %464, %468 : vector<8x64xf32>
    %470 = arith.select %29, %467, %449 : vector<8x64xi1>, vector<8x64xf32>
    %471 = arith.select %29, %469, %450 : vector<8x64xi1>, vector<8x64xf32>
    %c56_125 = arith.constant 56 : index
    %c0_126 = arith.constant 0 : index
    %472 = vector.load %arg11[%c56_125, %c0_126] : memref<80x256xf32, #tpu.memory_space<vmem>>, vector<8x256xf32>
    %cst_127 = arith.constant dense<0.000000e+00> : vector<8x256xf32>
    %473 = tpu.matmul %471, %322, %cst_127 {dimension_numbers = #tpu.dot_dimension_numbers<[1], [0], [0], [1], [0, 0, 1, 1], [], []>} : vector<8x64xf32>, vector<64x256xf32>, vector<8x256xf32> -> vector<8x256xf32>
    %474 = arith.addf %472, %473 : vector<8x256xf32>
    %475 = math.tanh %474 : vector<8x256xf32>
    %476 = arith.negf %474 : vector<8x256xf32>
    %477 = math.exp %476 : vector<8x256xf32>
    %cst_128 = arith.constant 1.000000e+00 : f32
    %478 = vector.broadcast %cst_128 : f32 to vector<8x256xf32>
    %479 = arith.addf %478, %477 : vector<8x256xf32>
    %480 = arith.divf %478, %479 : vector<8x256xf32>
    %481 = arith.select %41, %475, %480 : vector<8x256xi1>, vector<8x256xf32>
    %482 = vector.extract_strided_slice %481 {offsets = [0, 0], sizes = [8, 64], strides = [1, 1]} : vector<8x256xf32> to vector<8x64xf32>
    %483 = vector.extract_strided_slice %481 {offsets = [0, 64], sizes = [8, 64], strides = [1, 1]} : vector<8x256xf32> to vector<8x64xf32>
    %484 = vector.extract_strided_slice %481 {offsets = [0, 128], sizes = [8, 64], strides = [1, 1]} : vector<8x256xf32> to vector<8x64xf32>
    %485 = vector.extract_strided_slice %481 {offsets = [0, 192], sizes = [8, 64], strides = [1, 1]} : vector<8x256xf32> to vector<8x64xf32>
    %486 = arith.mulf %483, %470 : vector<8x64xf32>
    %487 = arith.mulf %482, %484 : vector<8x64xf32>
    %488 = arith.addf %486, %487 : vector<8x64xf32>
    %489 = math.tanh %488 : vector<8x64xf32>
    %490 = arith.mulf %485, %489 : vector<8x64xf32>
    %491 = arith.select %31, %488, %470 : vector<8x64xi1>, vector<8x64xf32>
    %492 = arith.select %31, %490, %471 : vector<8x64xi1>, vector<8x64xf32>
    %c64_129 = arith.constant 64 : index
    %c0_130 = arith.constant 0 : index
    %493 = vector.load %arg11[%c64_129, %c0_130] : memref<80x256xf32, #tpu.memory_space<vmem>>, vector<8x256xf32>
    %cst_131 = arith.constant dense<0.000000e+00> : vector<8x256xf32>
    %494 = tpu.matmul %492, %322, %cst_131 {dimension_numbers = #tpu.dot_dimension_numbers<[1], [0], [0], [1], [0, 0, 1, 1], [], []>} : vector<8x64xf32>, vector<64x256xf32>, vector<8x256xf32> -> vector<8x256xf32>
    %495 = arith.addf %493, %494 : vector<8x256xf32>
    %496 = math.tanh %495 : vector<8x256xf32>
    %497 = arith.negf %495 : vector<8x256xf32>
    %498 = math.exp %497 : vector<8x256xf32>
    %cst_132 = arith.constant 1.000000e+00 : f32
    %499 = vector.broadcast %cst_132 : f32 to vector<8x256xf32>
    %500 = arith.addf %499, %498 : vector<8x256xf32>
    %501 = arith.divf %499, %500 : vector<8x256xf32>
    %502 = arith.select %41, %496, %501 : vector<8x256xi1>, vector<8x256xf32>
    %503 = vector.extract_strided_slice %502 {offsets = [0, 0], sizes = [8, 64], strides = [1, 1]} : vector<8x256xf32> to vector<8x64xf32>
    %504 = vector.extract_strided_slice %502 {offsets = [0, 64], sizes = [8, 64], strides = [1, 1]} : vector<8x256xf32> to vector<8x64xf32>
    %505 = vector.extract_strided_slice %502 {offsets = [0, 128], sizes = [8, 64], strides = [1, 1]} : vector<8x256xf32> to vector<8x64xf32>
    %506 = vector.extract_strided_slice %502 {offsets = [0, 192], sizes = [8, 64], strides = [1, 1]} : vector<8x256xf32> to vector<8x64xf32>
    %507 = arith.mulf %504, %491 : vector<8x64xf32>
    %508 = arith.mulf %503, %505 : vector<8x64xf32>
    %509 = arith.addf %507, %508 : vector<8x64xf32>
    %510 = math.tanh %509 : vector<8x64xf32>
    %511 = arith.mulf %506, %510 : vector<8x64xf32>
    %512 = arith.select %33, %509, %491 : vector<8x64xi1>, vector<8x64xf32>
    %513 = arith.select %33, %511, %492 : vector<8x64xi1>, vector<8x64xf32>
    %c72_133 = arith.constant 72 : index
    %c0_134 = arith.constant 0 : index
    %514 = vector.load %arg11[%c72_133, %c0_134] : memref<80x256xf32, #tpu.memory_space<vmem>>, vector<8x256xf32>
    %cst_135 = arith.constant dense<0.000000e+00> : vector<8x256xf32>
    %515 = tpu.matmul %513, %322, %cst_135 {dimension_numbers = #tpu.dot_dimension_numbers<[1], [0], [0], [1], [0, 0, 1, 1], [], []>} : vector<8x64xf32>, vector<64x256xf32>, vector<8x256xf32> -> vector<8x256xf32>
    %516 = arith.addf %514, %515 : vector<8x256xf32>
    %517 = math.tanh %516 : vector<8x256xf32>
    %518 = arith.negf %516 : vector<8x256xf32>
    %519 = math.exp %518 : vector<8x256xf32>
    %cst_136 = arith.constant 1.000000e+00 : f32
    %520 = vector.broadcast %cst_136 : f32 to vector<8x256xf32>
    %521 = arith.addf %520, %519 : vector<8x256xf32>
    %522 = arith.divf %520, %521 : vector<8x256xf32>
    %523 = arith.select %41, %517, %522 : vector<8x256xi1>, vector<8x256xf32>
    %524 = vector.extract_strided_slice %523 {offsets = [0, 0], sizes = [8, 64], strides = [1, 1]} : vector<8x256xf32> to vector<8x64xf32>
    %525 = vector.extract_strided_slice %523 {offsets = [0, 64], sizes = [8, 64], strides = [1, 1]} : vector<8x256xf32> to vector<8x64xf32>
    %526 = vector.extract_strided_slice %523 {offsets = [0, 128], sizes = [8, 64], strides = [1, 1]} : vector<8x256xf32> to vector<8x64xf32>
    %527 = vector.extract_strided_slice %523 {offsets = [0, 192], sizes = [8, 64], strides = [1, 1]} : vector<8x256xf32> to vector<8x64xf32>
    %528 = arith.mulf %525, %512 : vector<8x64xf32>
    %529 = arith.mulf %524, %526 : vector<8x64xf32>
    %530 = arith.addf %528, %529 : vector<8x64xf32>
    %531 = math.tanh %530 : vector<8x64xf32>
    %532 = arith.mulf %527, %531 : vector<8x64xf32>
    %533 = arith.select %35, %532, %513 : vector<8x64xi1>, vector<8x64xf32>
    %534 = vector.extract_strided_slice %12 {offsets = [0, 0], sizes = [8, 32], strides = [1, 1]} : vector<8x64xf32> to vector<8x32xf32>
    %535 = vector.extract_strided_slice %12 {offsets = [0, 32], sizes = [8, 32], strides = [1, 1]} : vector<8x64xf32> to vector<8x32xf32>
    %c0_137 = arith.constant 0 : index
    %c0_138 = arith.constant 0 : index
    %536 = vector.load %arg8[%c0_137, %c0_138] : memref<128x32xf32, #tpu.memory_space<vmem>>, vector<32x32xf32>
    %cst_139 = arith.constant dense<0.000000e+00> : vector<8x32xf32>
    %537 = tpu.matmul %534, %536, %cst_139 {dimension_numbers = #tpu.dot_dimension_numbers<[1], [0], [0], [1], [0, 0, 1, 1], [], []>} : vector<8x32xf32>, vector<32x32xf32>, vector<8x32xf32> -> vector<8x32xf32>
    %c32_140 = arith.constant 32 : index
    %c0_141 = arith.constant 0 : index
    %538 = vector.load %arg8[%c32_140, %c0_141] : memref<128x32xf32, #tpu.memory_space<vmem>>, vector<64x32xf32>
    %cst_142 = arith.constant dense<0.000000e+00> : vector<8x32xf32>
    %539 = tpu.matmul %533, %538, %cst_142 {dimension_numbers = #tpu.dot_dimension_numbers<[1], [0], [0], [1], [0, 0, 1, 1], [], []>} : vector<8x64xf32>, vector<64x32xf32>, vector<8x32xf32> -> vector<8x32xf32>
    %540 = arith.addf %537, %539 : vector<8x32xf32>
    %c96 = arith.constant 96 : index
    %c0_143 = arith.constant 0 : index
    %541 = vector.load %arg8[%c96, %c0_143] : memref<128x32xf32, #tpu.memory_space<vmem>>, vector<32x32xf32>
    %cst_144 = arith.constant dense<0.000000e+00> : vector<8x32xf32>
    %542 = tpu.matmul %535, %541, %cst_144 {dimension_numbers = #tpu.dot_dimension_numbers<[1], [0], [0], [1], [0, 0, 1, 1], [], []>} : vector<8x32xf32>, vector<32x32xf32>, vector<8x32xf32> -> vector<8x32xf32>
    %543 = arith.addf %540, %542 : vector<8x32xf32>
    %c0_145 = arith.constant 0 : index
    %c0_146 = arith.constant 0 : index
    %544 = vector.load %arg9[%c0_145, %c0_146] : memref<1x32xf32, #tpu.memory_space<vmem>>, vector<1x32xf32>
    %545 = vector.broadcast %544 : vector<1x32xf32> to vector<8x32xf32>
    %546 = arith.addf %543, %545 : vector<8x32xf32>
    %547 = math.tanh %546 : vector<8x32xf32>
    %c0_147 = arith.constant 0 : index
    %c0_148 = arith.constant 0 : index
    %548 = vector.load %arg10[%c0_147, %c0_148] : memref<8x32xf32, #tpu.memory_space<vmem>>, vector<8x32xf32>
    tpu.vector_store %arg10[%c0_147, %c0_148], %547 {strides = array<i32>} : memref<8x32xf32, #tpu.memory_space<vmem>>, vector<8x32xf32>,
    return
  }
  func.func @transform_0(%arg0: i32) -> (i32, i32) {
    %c0_i32 = arith.constant 0 : i32
    %c0_i32_0 = arith.constant 0 : i32
    %c0_i32_1 = arith.constant 0 : i32
    return %c0_i32, %c0_i32_0 : i32, i32
  }
  func.func @transform_1(%arg0: i32) -> (i32, i32) {
    %c0_i32 = arith.constant 0 : i32
    %c0_i32_0 = arith.constant 0 : i32
    %c0_i32_1 = arith.constant 0 : i32
    return %c0_i32, %c0_i32_0 : i32, i32
  }
  func.func @transform_2(%arg0: i32) -> (i32, i32) {
    %c0_i32 = arith.constant 0 : i32
    %c0_i32_0 = arith.constant 0 : i32
    %c0_i32_1 = arith.constant 0 : i32
    return %c0_i32, %c0_i32_0 : i32, i32
  }
  func.func @transform_3(%arg0: i32) -> (i32, i32) {
    %c0_i32 = arith.constant 0 : i32
    %c0_i32_0 = arith.constant 0 : i32
    %c0_i32_1 = arith.constant 0 : i32
    return %c0_i32, %c0_i32_0 : i32, i32
  }
  func.func @transform_4(%arg0: i32) -> (i32, i32, i32) {
    %c0_i32 = arith.constant 0 : i32
    %c0_i32_0 = arith.constant 0 : i32
    %c0_i32_1 = arith.constant 0 : i32
    %c0_i32_2 = arith.constant 0 : i32
    return %c0_i32, %c0_i32_0, %c0_i32_1 : i32, i32, i32
  }
  func.func @transform_5(%arg0: i32) -> (i32, i32, i32) {
    %c0_i32 = arith.constant 0 : i32
    %c0_i32_0 = arith.constant 0 : i32
    %c0_i32_1 = arith.constant 0 : i32
    %c0_i32_2 = arith.constant 0 : i32
    return %c0_i32, %c0_i32_0, %c0_i32_1 : i32, i32, i32
  }
  func.func @transform_6(%arg0: i32) -> (i32, i32, i32) {
    %c0_i32 = arith.constant 0 : i32
    %c0_i32_0 = arith.constant 0 : i32
    %c0_i32_1 = arith.constant 0 : i32
    %c0_i32_2 = arith.constant 0 : i32
    return %c0_i32, %c0_i32_0, %c0_i32_1 : i32, i32, i32
  }
  func.func @transform_7(%arg0: i32) -> (i32, i32) {
    %c0_i32 = arith.constant 0 : i32
    %c0_i32_0 = arith.constant 0 : i32
    %c0_i32_1 = arith.constant 0 : i32
    return %c0_i32, %c0_i32_0 : i32, i32
  }
  func.func @transform_8(%arg0: i32) -> (i32, i32) {
    %c0_i32 = arith.constant 0 : i32
    %c0_i32_0 = arith.constant 0 : i32
    %c0_i32_1 = arith.constant 0 : i32
    return %c0_i32, %c0_i32_0 : i32, i32
  }
  func.func @transform_9(%arg0: i32) -> (i32, i32) {
    %c0_i32 = arith.constant 0 : i32
    %c0_i32_0 = arith.constant 0 : i32
    %c0_i32_1 = arith.constant 0 : i32
    return %c0_i32, %c0_i32_0 : i32, i32
  }
}

</mosaic_0001>

<llo_original>
// kernel: tpu_custom_call.1
$region0: #{tpu_custom_call.1}
  #allocation0 [shape = 'u32[]', space=smem, size = 0x4, offset = 0x4, fixed_abs, tag = 'smem constant byte address 0x4 - core index']
  #allocation1 [shape = 'u32[72,128]{1,0:T(1,128)}', space=vmem, size = 0x9000, scoped, tag = 'internal scratch']
  #allocation2 [shape = 'f32[80,256]{1,0:T(8,128)}', space=vmem, size = 0x14000, scoped, tag = 'scratch operand']
  #allocation3 [shape = 'f32[80,64]{1,0:T(8,128)}', space=vmem, size = 0xa000, scoped, tag = 'scratch operand']
  %s0 = inlined_call_operand.vmem [shape: s32[8,1], index: 0, kind: input, shape index: {}]
  %s1 = inlined_call_operand.vmem [shape: s32[80,1], index: 1, kind: input, shape index: {}]
  %s2 = inlined_call_operand.vmem [shape: s32[80,1], index: 2, kind: input, shape index: {}]
  %s3 = inlined_call_operand.vmem [shape: f32[256,64], index: 3, kind: input, shape index: {}]
  %s4 = inlined_call_operand.vmem [shape: f32[2,64,256], index: 4, kind: input, shape index: {}]
  %s5 = inlined_call_operand.hbm [shape: f32[2,64,256], index: 5, kind: input, shape index: {}]
  %s6 = inlined_call_operand.vmem [shape: f32[2,1,256], index: 6, kind: input, shape index: {}]
  %s7 = inlined_call_operand.vmem [shape: f32[128,32], index: 7, kind: input, shape index: {}]
  %s8 = inlined_call_operand.vmem [shape: f32[1,32], index: 8, kind: input, shape index: {}]
  %s9 = inlined_call_operand.hbm [shape: f32[8,32], index: 9, kind: output, shape index: {}]
  %s10 = sld [smem:[#allocation0]]
  $region50: #{tpu_custom_call.1} parent=0
    _
  %s12 = ssub.s32 1, %s10
  %s13 = scalar_select 0, %s12, %s10
  $region1: #{tpu_custom_call.1} parent=0
    #allocation4 [shape = 'u8[131072]{0}', space=vmem, size = 0x20000, scoped, tag = 'input window, operand 5, single buffered']
    #allocation5 [shape = 's32[1]{0}', space=sflag, size = 0x4, scoped, tag = 'scoped memory for tpu_custom_call.1']
    #allocation6 [shape = 's32[1]{0}', space=sflag, size = 0x4, scoped, tag = 'scoped memory for tpu_custom_call.1']
    #allocation7 [shape = 'u8[4096]{0}', space=vmem, size = 0x1000, scoped, tag = 'output window, operand 0, single buffered']
    %14 = vsyncpa [#allocation5], 0
    %15 = vsyncpa [#allocation6], 0
    // Predicated region
    $region2: #{tpu_custom_call.1} parent=1 // pred_check
      _
    $region3: #{tpu_custom_call.1} parent=1 // pred_check_branch
      %17 = sbr.rel (0) target = $region5
    $region4: #{tpu_custom_call.1} parent=1 // pred_region
      _
    $region5: #{tpu_custom_call.1} parent=1 // pred_fallthru
      _
    // Predicated region
    $region6: #{tpu_custom_call.1} parent=1 // pred_check
      _
    $region7: #{tpu_custom_call.1} parent=1 // pred_check_branch
      %19 = sbr.rel (0) target = $region9
    $region8: #{tpu_custom_call.1} parent=1 // pred_region
      _
    $region9: #{tpu_custom_call.1} parent=1 // pred_fallthru
      _
    // Predicated region
    $region10: #{tpu_custom_call.1} parent=1 // pred_check
      _
    $region11: #{tpu_custom_call.1} parent=1 // pred_check_branch
      %21 = sbr.rel (0) target = $region13
    $region12: #{tpu_custom_call.1} parent=1 // pred_region
      _
    $region13: #{tpu_custom_call.1} parent=1 // pred_fallthru
      _
    // Predicated region
    $region14: #{tpu_custom_call.1} parent=1 // pred_check
      _
    $region15: #{tpu_custom_call.1} parent=1 // pred_check_branch
      %23 = sbr.rel (0) target = $region17
    $region16: #{tpu_custom_call.1} parent=1 // pred_region
      _
    $region17: #{tpu_custom_call.1} parent=1 // pred_fallthru
      _
    // Predicated region
    $region18: #{tpu_custom_call.1} parent=1 // pred_check
      _
    $region19: #{tpu_custom_call.1} parent=1 // pred_check_branch
      %25 = sbr.rel (0) target = $region21
    $region20: #{tpu_custom_call.1} parent=1 // pred_region
      _
    $region21: #{tpu_custom_call.1} parent=1 // pred_fallthru
      _
    // Predicated region
    $region22: #{tpu_custom_call.1} parent=1 // pred_check
      _
    $region23: #{tpu_custom_call.1} parent=1 // pred_check_branch
      %27 = sbr.rel (0) target = $region25
    $region24: #{tpu_custom_call.1} parent=1 // pred_region
      %29 = vsyncadd [#allocation5], 0
      %s30 = sshll.u32 %s5, 4
      %s31 = int_to_ptr.hbm [resolvable:$true] %s30
      %s32 = sshll.u32 [#allocation4], 4
      %s33 = int_to_ptr.vmem [resolvable:$true] %s32
      %38 = dma.hbm_to_vmem [thread:$0]  %s31, 4096, %s33, [#allocation5], 256, 256, 16
    $region25: #{tpu_custom_call.1} parent=1 // pred_fallthru
      _
    // Predicated region
    $region26: #{tpu_custom_call.1} parent=1 // pred_check
      _
    $region27: #{tpu_custom_call.1} parent=1 // pred_check_branch
      %40 = sbr.rel (0) target = $region29
    $region28: #{tpu_custom_call.1} parent=1 // pred_region
      _
    $region29: #{tpu_custom_call.1} parent=1 // pred_fallthru
      _
    // Predicated region
    $region30: #{tpu_custom_call.1} parent=1 // pred_check
      _
    $region31: #{tpu_custom_call.1} parent=1 // pred_check_branch
      %42 = sbr.rel (0) target = $region33
    $region32: #{tpu_custom_call.1} parent=1 // pred_region
      _
    $region33: #{tpu_custom_call.1} parent=1 // pred_fallthru
      _
    // Predicated region
    $region34: #{tpu_custom_call.1} parent=1 // pred_check
      _
    $region35: #{tpu_custom_call.1} parent=1 // pred_check_branch
      %44 = sbr.rel (0) target = $region37
    $region36: #{tpu_custom_call.1} parent=1 // pred_region
      _
    $region37: #{tpu_custom_call.1} parent=1 // pred_fallthru
      _
    // Predicated region
    $region38: #{tpu_custom_call.1} parent=1 // pred_check
      _
    $region39: #{tpu_custom_call.1} parent=1 // pred_check_branch
      %46 = sbr.rel (0) target = $region41
    $region40: #{tpu_custom_call.1} parent=1 // pred_region
      %48 = dma.done [#allocation5], 4096
    $region41: #{tpu_custom_call.1} parent=1 // pred_fallthru
      _
    %v49 = vlaneseq
    %v50 = vand.u32 %v49, 127
    %v51 = vadd.s32 %v50, 128
    %v52 = vld [vmem:[%s1] sm:$0xff]
    %v53 = vld [vmem:[%s1 + $0x8] sm:$0xff]
    %v54 = vld [vmem:[%s1 + $0x10] sm:$0xff]
    %v55 = vld [vmem:[%s1 + $0x18] sm:$0xff]
    %v56 = vld [vmem:[%s1 + $0x20] sm:$0xff]
    %v57 = vld [vmem:[%s1 + $0x28] sm:$0xff]
    %v58 = vld [vmem:[%s1 + $0x30] sm:$0xff]
    %v59 = vld [vmem:[%s1 + $0x38] sm:$0xff]
    %v60 = vld [vmem:[%s1 + $0x40] sm:$0xff]
    %v61 = vld [vmem:[%s1 + $0x48] sm:$0xff]
    %62 = vset.pattern.permute.xlu0 0
    %63 = vperm.xlu0 %62, %v52
    %v64 = vpop.permute.xlu0 %63
    %65 = vset.pattern.permute.xlu0 0
    %66 = vperm.xlu0 %65, %v53
    %v67 = vpop.permute.xlu0 %66
    %68 = vset.pattern.permute.xlu0 0
    %69 = vperm.xlu0 %68, %v54
    %v70 = vpop.permute.xlu0 %69
    %71 = vset.pattern.permute.xlu0 0
    %72 = vperm.xlu0 %71, %v55
    %v73 = vpop.permute.xlu0 %72
    %74 = vset.pattern.permute.xlu0 0
    %75 = vperm.xlu0 %74, %v56
    %v76 = vpop.permute.xlu0 %75
    %77 = vset.pattern.permute.xlu0 0
    %78 = vperm.xlu0 %77, %v57
    %v79 = vpop.permute.xlu0 %78
    %80 = vset.pattern.permute.xlu0 0
    %81 = vperm.xlu0 %80, %v58
    %v82 = vpop.permute.xlu0 %81
    %83 = vset.pattern.permute.xlu0 0
    %84 = vperm.xlu0 %83, %v59
    %v85 = vpop.permute.xlu0 %84
    %86 = vset.pattern.permute.xlu0 0
    %87 = vperm.xlu0 %86, %v60
    %v88 = vpop.permute.xlu0 %87
    %89 = vset.pattern.permute.xlu0 0
    %90 = vperm.xlu0 %89, %v61
    %v91 = vpop.permute.xlu0 %90
    %vm92 = vcmp.eq.s32.totalorder %v50, %v64
    %vm93 = vcmp.eq.s32.totalorder %v51, %v64
    %vm94 = vcmp.eq.s32.totalorder %v50, %v67
    %vm95 = vcmp.eq.s32.totalorder %v51, %v67
    %vm96 = vcmp.eq.s32.totalorder %v50, %v70
    %vm97 = vcmp.eq.s32.totalorder %v51, %v70
    %vm98 = vcmp.eq.s32.totalorder %v50, %v73
    %vm99 = vcmp.eq.s32.totalorder %v51, %v73
    %vm100 = vcmp.eq.s32.totalorder %v50, %v76
    %vm101 = vcmp.eq.s32.totalorder %v51, %v76
    %vm102 = vcmp.eq.s32.totalorder %v50, %v79
    %vm103 = vcmp.eq.s32.totalorder %v51, %v79
    %vm104 = vcmp.eq.s32.totalorder %v50, %v82
    %vm105 = vcmp.eq.s32.totalorder %v51, %v82
    %vm106 = vcmp.eq.s32.totalorder %v50, %v85
    %vm107 = vcmp.eq.s32.totalorder %v51, %v85
    %vm108 = vcmp.eq.s32.totalorder %v50, %v88
    %vm109 = vcmp.eq.s32.totalorder %v51, %v88
    %vm110 = vcmp.eq.s32.totalorder %v50, %v91
    %vm111 = vcmp.eq.s32.totalorder %v51, %v91
    %v112 = vld [vmem:[%s2] sm:$0xff]
    %v113 = vld [vmem:[%s2 + $0x8] sm:$0xff]
    %v114 = vld [vmem:[%s2 + $0x10] sm:$0xff]
    %v115 = vld [vmem:[%s2 + $0x18] sm:$0xff]
    %v116 = vld [vmem:[%s2 + $0x20] sm:$0xff]
    %v117 = vld [vmem:[%s2 + $0x28] sm:$0xff]
    %v118 = vld [vmem:[%s2 + $0x30] sm:$0xff]
    %v119 = vld [vmem:[%s2 + $0x38] sm:$0xff]
    %v120 = vld [vmem:[%s2 + $0x40] sm:$0xff]
    %v121 = vld [vmem:[%s2 + $0x48] sm:$0xff]
    %122 = vset.pattern.permute.xlu0 0
    %123 = vperm.xlu0 %122, %v112
    %v124 = vpop.permute.xlu0 %123
    %125 = vset.pattern.permute.xlu0 0
    %126 = vperm.xlu0 %125, %v113
    %v127 = vpop.permute.xlu0 %126
    %128 = vset.pattern.permute.xlu0 0
    %129 = vperm.xlu0 %128, %v114
    %v130 = vpop.permute.xlu0 %129
    %131 = vset.pattern.permute.xlu0 0
    %132 = vperm.xlu0 %131, %v115
    %v133 = vpop.permute.xlu0 %132
    %134 = vset.pattern.permute.xlu0 0
    %135 = vperm.xlu0 %134, %v116
    %v136 = vpop.permute.xlu0 %135
    %137 = vset.pattern.permute.xlu0 0
    %138 = vperm.xlu0 %137, %v117
    %v139 = vpop.permute.xlu0 %138
    %140 = vset.pattern.permute.xlu0 0
    %141 = vperm.xlu0 %140, %v118
    %v142 = vpop.permute.xlu0 %141
    %143 = vset.pattern.permute.xlu0 0
    %144 = vperm.xlu0 %143, %v119
    %v145 = vpop.permute.xlu0 %144
    %146 = vset.pattern.permute.xlu0 0
    %147 = vperm.xlu0 %146, %v120
    %v148 = vpop.permute.xlu0 %147
    %149 = vset.pattern.permute.xlu0 0
    %150 = vperm.xlu0 %149, %v121
    %v151 = vpop.permute.xlu0 %150
    %vm152 = vcmp.eq.s32.totalorder %v50, %v124
    %vm153 = vcmp.eq.s32.totalorder %v51, %v124
    %vm154 = vcmp.eq.s32.totalorder %v50, %v127
    %vm155 = vcmp.eq.s32.totalorder %v51, %v127
    %vm156 = vcmp.eq.s32.totalorder %v50, %v130
    %vm157 = vcmp.eq.s32.totalorder %v51, %v130
    %vm158 = vcmp.eq.s32.totalorder %v50, %v133
    %vm159 = vcmp.eq.s32.totalorder %v51, %v133
    %vm160 = vcmp.eq.s32.totalorder %v50, %v136
    %vm161 = vcmp.eq.s32.totalorder %v51, %v136
    %vm162 = vcmp.eq.s32.totalorder %v50, %v139
    %vm163 = vcmp.eq.s32.totalorder %v51, %v139
    %vm164 = vcmp.eq.s32.totalorder %v50, %v142
    %vm165 = vcmp.eq.s32.totalorder %v51, %v142
    %vm166 = vcmp.eq.s32.totalorder %v50, %v145
    %vm167 = vcmp.eq.s32.totalorder %v51, %v145
    %vm168 = vcmp.eq.s32.totalorder %v50, %v148
    %vm169 = vcmp.eq.s32.totalorder %v51, %v148
    %vm170 = vcmp.eq.s32.totalorder %v50, %v151
    %vm171 = vcmp.eq.s32.totalorder %v51, %v151
    %vm172 = vmor %vm92, %vm152
    %vm173 = vmor %vm93, %vm153
    %vm174 = vmor %vm94, %vm154
    %vm175 = vmor %vm95, %vm155
    %vm176 = vmor %vm96, %vm156
    %vm177 = vmor %vm97, %vm157
    %vm178 = vmor %vm98, %vm158
    %vm179 = vmor %vm99, %vm159
    %vm180 = vmor %vm100, %vm160
    %vm181 = vmor %vm101, %vm161
    %vm182 = vmor %vm102, %vm162
    %vm183 = vmor %vm103, %vm163
    %vm184 = vmor %vm104, %vm164
    %vm185 = vmor %vm105, %vm165
    %vm186 = vmor %vm106, %vm166
    %vm187 = vmor %vm107, %vm167
    %vm188 = vmor %vm108, %vm168
    %vm189 = vmor %vm109, %vm169
    %vm190 = vmor %vm110, %vm170
    %vm191 = vmor %vm111, %vm171
    %v192 = vsel %vm172, 1, 0
    %v193 = vsel %vm173, 1, 0
    %v194 = vsel %vm174, 1, 0
    %v195 = vsel %vm175, 1, 0
    %v196 = vsel %vm176, 1, 0
    %v197 = vsel %vm177, 1, 0
    %v198 = vsel %vm178, 1, 0
    %v199 = vsel %vm179, 1, 0
    %v200 = vsel %vm180, 1, 0
    %v201 = vsel %vm181, 1, 0
    %v202 = vsel %vm182, 1, 0
    %v203 = vsel %vm183, 1, 0
    %v204 = vsel %vm184, 1, 0
    %v205 = vsel %vm185, 1, 0
    %v206 = vsel %vm186, 1, 0
    %v207 = vsel %vm187, 1, 0
    %v208 = vsel %vm188, 1, 0
    %v209 = vsel %vm189, 1, 0
    %v210 = vsel %vm190, 1, 0
    %v211 = vsel %vm191, 1, 0
    %v212 = vcvt.s32.f32 %v192
    %v213 = vcvt.s32.f32 %v193
    %v214 = vcvt.s32.f32 %v194
    %v215 = vcvt.s32.f32 %v195
    %v216 = vcvt.s32.f32 %v196
    %v217 = vcvt.s32.f32 %v197
    %v218 = vcvt.s32.f32 %v198
    %v219 = vcvt.s32.f32 %v199
    %v220 = vcvt.s32.f32 %v200
    %v221 = vcvt.s32.f32 %v201
    %v222 = vcvt.s32.f32 %v202
    %v223 = vcvt.s32.f32 %v203
    %v224 = vcvt.s32.f32 %v204
    %v225 = vcvt.s32.f32 %v205
    %v226 = vcvt.s32.f32 %v206
    %v227 = vcvt.s32.f32 %v207
    %v228 = vcvt.s32.f32 %v208
    %v229 = vcvt.s32.f32 %v209
    %v230 = vcvt.s32.f32 %v210
    %v231 = vcvt.s32.f32 %v211
    %v232 = vld [vmem:[%s3] sm:$0xff]
    %v233 = vld [vmem:[%s3 + $0x8] sm:$0xff]
    %v234 = vld [vmem:[%s3 + $0x10] sm:$0xff]
    %v235 = vld [vmem:[%s3 + $0x18] sm:$0xff]
    %v236 = vld [vmem:[%s3 + $0x20] sm:$0xff]
    %v237 = vld [vmem:[%s3 + $0x28] sm:$0xff]
    %v238 = vld [vmem:[%s3 + $0x30] sm:$0xff]
    %v239 = vld [vmem:[%s3 + $0x38] sm:$0xff]
    %v240 = vld [vmem:[%s3 + $0x40] sm:$0xff]
    %v241 = vld [vmem:[%s3 + $0x48] sm:$0xff]
    %v242 = vld [vmem:[%s3 + $0x50] sm:$0xff]
    %v243 = vld [vmem:[%s3 + $0x58] sm:$0xff]
    %v244 = vld [vmem:[%s3 + $0x60] sm:$0xff]
    %v245 = vld [vmem:[%s3 + $0x68] sm:$0xff]
    %v246 = vld [vmem:[%s3 + $0x70] sm:$0xff]
    %v247 = vld [vmem:[%s3 + $0x78] sm:$0xff]
    %v248 = vld [vmem:[%s3 + $0x80] sm:$0xff]
    %v249 = vld [vmem:[%s3 + $0x88] sm:$0xff]
    %v250 = vld [vmem:[%s3 + $0x90] sm:$0xff]
    %v251 = vld [vmem:[%s3 + $0x98] sm:$0xff]
    %v252 = vld [vmem:[%s3 + $0xa0] sm:$0xff]
    %v253 = vld [vmem:[%s3 + $0xa8] sm:$0xff]
    %v254 = vld [vmem:[%s3 + $0xb0] sm:$0xff]
    %v255 = vld [vmem:[%s3 + $0xb8] sm:$0xff]
    %v256 = vld [vmem:[%s3 + $0xc0] sm:$0xff]
    %v257 = vld [vmem:[%s3 + $0xc8] sm:$0xff]
    %v258 = vld [vmem:[%s3 + $0xd0] sm:$0xff]
    %v259 = vld [vmem:[%s3 + $0xd8] sm:$0xff]
    %v260 = vld [vmem:[%s3 + $0xe0] sm:$0xff]
    %v261 = vld [vmem:[%s3 + $0xe8] sm:$0xff]
    %v262 = vld [vmem:[%s3 + $0xf0] sm:$0xff]
    %v263 = vld [vmem:[%s3 + $0xf8] sm:$0xff]
    %264 = vmatpush.msra.mxu0 %v247
    %265 = vmatpush.msra.mxu0 %v246
    %266 = vmatpush.msra.mxu0 %v245
    %267 = vmatpush.msra.mxu0 %v244
    %268 = vmatpush.msra.mxu0 %v243
    %269 = vmatpush.msra.mxu0 %v242
    %270 = vmatpush.msra.mxu0 %v241
    %271 = vmatpush.msra.mxu0 %v240
    %272 = vmatpush.msra.mxu0 %v239
    %273 = vmatpush.msra.mxu0 %v238
    %274 = vmatpush.msra.mxu0 %v237
    %275 = vmatpush.msra.mxu0 %v236
    %276 = vmatpush.msra.mxu0 %v235
    %277 = vmatpush.msra.mxu0 %v234
    %278 = vmatpush.msra.mxu0 %v233
    %279 = vmatpush.msra.mxu0 %v232
    %280 = vmatmul.f32.gmra.mxu0 %v212
    %v281 = vpop.f32.mrf.mxu0
    %v282 = vadd.f32 0.0, %v281
    %283 = vmatmul.f32.gmra.mxu0 %v214
    %v284 = vpop.f32.mrf.mxu0
    %v285 = vadd.f32 0.0, %v284
    %286 = vmatmul.f32.gmra.mxu0 %v216
    %v287 = vpop.f32.mrf.mxu0
    %v288 = vadd.f32 0.0, %v287
    %289 = vmatmul.f32.gmra.mxu0 %v218
    %v290 = vpop.f32.mrf.mxu0
    %v291 = vadd.f32 0.0, %v290
    %292 = vmatmul.f32.gmra.mxu0 %v220
    %v293 = vpop.f32.mrf.mxu0
    %v294 = vadd.f32 0.0, %v293
    %295 = vmatmul.f32.gmra.mxu0 %v222
    %v296 = vpop.f32.mrf.mxu0
    %v297 = vadd.f32 0.0, %v296
    %298 = vmatmul.f32.gmra.mxu0 %v224
    %v299 = vpop.f32.mrf.mxu0
    %v300 = vadd.f32 0.0, %v299
    %301 = vmatmul.f32.gmra.mxu0 %v226
    %v302 = vpop.f32.mrf.mxu0
    %v303 = vadd.f32 0.0, %v302
    %304 = vmatmul.f32.gmra.mxu0 %v228
    %v305 = vpop.f32.mrf.mxu0
    %v306 = vadd.f32 0.0, %v305
    %307 = vmatmul.f32.gmra.mxu0 %v230
    %v308 = vpop.f32.mrf.mxu0
    %v309 = vadd.f32 0.0, %v308
    %310 = vdwg.mxu0
    %311 = vmatpush.msra.mxu0 %v263
    %312 = vmatpush.msra.mxu0 %v262
    %313 = vmatpush.msra.mxu0 %v261
    %314 = vmatpush.msra.mxu0 %v260
    %315 = vmatpush.msra.mxu0 %v259
    %316 = vmatpush.msra.mxu0 %v258
    %317 = vmatpush.msra.mxu0 %v257
    %318 = vmatpush.msra.mxu0 %v256
    %319 = vmatpush.msra.mxu0 %v255
    %320 = vmatpush.msra.mxu0 %v254
    %321 = vmatpush.msra.mxu0 %v253
    %322 = vmatpush.msra.mxu0 %v252
    %323 = vmatpush.msra.mxu0 %v251
    %324 = vmatpush.msra.mxu0 %v250
    %325 = vmatpush.msra.mxu0 %v249
    %326 = vmatpush.msra.mxu0 %v248
    %327 = vmatmul.f32.gmra.mxu0 %v213
    %v328 = vpop.f32.mrf.mxu0
    %v329 = vadd.f32 %v282, %v328
    %330 = vmatmul.f32.gmra.mxu0 %v215
    %v331 = vpop.f32.mrf.mxu0
    %v332 = vadd.f32 %v285, %v331
    %333 = vmatmul.f32.gmra.mxu0 %v217
    %v334 = vpop.f32.mrf.mxu0
    %v335 = vadd.f32 %v288, %v334
    %336 = vmatmul.f32.gmra.mxu0 %v219
    %v337 = vpop.f32.mrf.mxu0
    %v338 = vadd.f32 %v291, %v337
    %339 = vmatmul.f32.gmra.mxu0 %v221
    %v340 = vpop.f32.mrf.mxu0
    %v341 = vadd.f32 %v294, %v340
    %342 = vmatmul.f32.gmra.mxu0 %v223
    %v343 = vpop.f32.mrf.mxu0
    %v344 = vadd.f32 %v297, %v343
    %345 = vmatmul.f32.gmra.mxu0 %v225
    %v346 = vpop.f32.mrf.mxu0
    %v347 = vadd.f32 %v300, %v346
    %348 = vmatmul.f32.gmra.mxu0 %v227
    %v349 = vpop.f32.mrf.mxu0
    %v350 = vadd.f32 %v303, %v349
    %351 = vmatmul.f32.gmra.mxu0 %v229
    %v352 = vpop.f32.mrf.mxu0
    %v353 = vadd.f32 %v306, %v352
    %354 = vmatmul.f32.gmra.mxu0 %v231
    %v355 = vpop.f32.mrf.mxu0
    %v356 = vadd.f32 %v309, %v355
    %357 = vdwg.mxu0
    %v358 = vld [vmem:[%s0] sm:$0xff]
    %359 = vset.pattern.permute.xlu0 0
    %360 = vperm.xlu0 %359, %v358
    %v361 = vpop.permute.xlu0 %360
    %vm362 = vcmp.gt.s32.totalorder %v361, 0
    %vm363 = vcmp.gt.s32.totalorder %v361, 1
    %vm364 = vcmp.gt.s32.totalorder %v361, 2
    %vm365 = vcmp.gt.s32.totalorder %v361, 3
    %vm366 = vcmp.gt.s32.totalorder %v361, 4
    %vm367 = vcmp.gt.s32.totalorder %v361, 5
    %vm368 = vcmp.gt.s32.totalorder %v361, 6
    %vm369 = vcmp.gt.s32.totalorder %v361, 7
    %vm370 = vcmp.gt.s32.totalorder %v361, 8
    %vm371 = vcmp.gt.s32.totalorder %v361, 9
    %vm372 = vcmp.ge.s32.totalorder %v50, 128
    %vm373 = vcmp.ge.s32.totalorder %v51, 128
    %vm374 = vcmp.lt.s32.totalorder %v50, 192
    %vm375 = vcmp.lt.s32.totalorder %v51, 192
    %vm376 = vmand %vm372, %vm374
    %vm377 = vmand %vm373, %vm375
    %v378 = vld [vmem:[%s4] sm:$0xff]
    %v379 = vld [vmem:[%s4 + $0x8] sm:$0xff]
    %v380 = vld [vmem:[%s4 + $0x10] sm:$0xff]
    %v381 = vld [vmem:[%s4 + $0x18] sm:$0xff]
    %v382 = vld [vmem:[%s4 + $0x20] sm:$0xff]
    %v383 = vld [vmem:[%s4 + $0x28] sm:$0xff]
    %v384 = vld [vmem:[%s4 + $0x30] sm:$0xff]
    %v385 = vld [vmem:[%s4 + $0x38] sm:$0xff]
    %v386 = vld [vmem:[%s4 + $0x40] sm:$0xff]
    %v387 = vld [vmem:[%s4 + $0x48] sm:$0xff]
    %v388 = vld [vmem:[%s4 + $0x50] sm:$0xff]
    %v389 = vld [vmem:[%s4 + $0x58] sm:$0xff]
    %v390 = vld [vmem:[%s4 + $0x60] sm:$0xff]
    %v391 = vld [vmem:[%s4 + $0x68] sm:$0xff]
    %v392 = vld [vmem:[%s4 + $0x70] sm:$0xff]
    %v393 = vld [vmem:[%s4 + $0x78] sm:$0xff]
    %v394 = vld [vmem:[%s6] sm:$0x3]
    %v396 = vperm.slane %v394, 0
    %v397 = vperm.slane %v394, 1
    %vm400 = vcmask 523264
    %v402 = vsel %vm400, %v329, 0
    %v405 = vsel %vm400, %v332, 0
    %v408 = vsel %vm400, %v335, 0
    %v411 = vsel %vm400, %v338, 0
    %v414 = vsel %vm400, %v341, 0
    %v417 = vsel %vm400, %v344, 0
    %v420 = vsel %vm400, %v347, 0
    %v423 = vsel %vm400, %v350, 0
    %v426 = vsel %vm400, %v353, 0
    %v429 = vsel %vm400, %v356, 0
    %431 = vmatpush.msra.mxu0 0.0
    %432 = vmatpush.msra.mxu0 0.0
    %433 = vmatpush.msra.mxu0 0.0
    %434 = vmatpush.msra.mxu0 0.0
    %435 = vmatpush.msra.mxu0 0.0
    %436 = vmatpush.msra.mxu0 0.0
    %437 = vmatpush.msra.mxu0 0.0
    %438 = vmatpush.msra.mxu0 0.0
    %439 = vmatpush.msra.mxu0 %v392
    %440 = vmatpush.msra.mxu0 %v390
    %441 = vmatpush.msra.mxu0 %v388
    %442 = vmatpush.msra.mxu0 %v386
    %443 = vmatpush.msra.mxu0 %v384
    %444 = vmatpush.msra.mxu0 %v382
    %445 = vmatpush.msra.mxu0 %v380
    %446 = vmatpush.msra.mxu0 %v378
    %447 = vmatmul.f32.gmra.mxu0 %v402
    %v448 = vpop.f32.mrf.mxu0
    %v449 = vadd.f32 %v396, %v448
    %450 = vmatmul.f32.gmra.mxu0 %v405
    %v451 = vpop.f32.mrf.mxu0
    %v452 = vadd.f32 %v396, %v451
    %453 = vmatmul.f32.gmra.mxu0 %v408
    %v454 = vpop.f32.mrf.mxu0
    %v455 = vadd.f32 %v396, %v454
    %456 = vmatmul.f32.gmra.mxu0 %v411
    %v457 = vpop.f32.mrf.mxu0
    %v458 = vadd.f32 %v396, %v457
    %459 = vmatmul.f32.gmra.mxu0 %v414
    %v460 = vpop.f32.mrf.mxu0
    %v461 = vadd.f32 %v396, %v460
    %462 = vmatmul.f32.gmra.mxu0 %v417
    %v463 = vpop.f32.mrf.mxu0
    %v464 = vadd.f32 %v396, %v463
    %465 = vmatmul.f32.gmra.mxu0 %v420
    %v466 = vpop.f32.mrf.mxu0
    %v467 = vadd.f32 %v396, %v466
    %468 = vmatmul.f32.gmra.mxu0 %v423
    %v469 = vpop.f32.mrf.mxu0
    %v470 = vadd.f32 %v396, %v469
    %471 = vmatmul.f32.gmra.mxu0 %v426
    %v472 = vpop.f32.mrf.mxu0
    %v473 = vadd.f32 %v396, %v472
    %474 = vmatmul.f32.gmra.mxu0 %v429
    %v475 = vpop.f32.mrf.mxu0
    %v476 = vadd.f32 %v396, %v475
    %477 = vdwg.mxu0
    %478 = vmatpush.msra.mxu0 0.0
    %479 = vmatpush.msra.mxu0 0.0
    %480 = vmatpush.msra.mxu0 0.0
    %481 = vmatpush.msra.mxu0 0.0
    %482 = vmatpush.msra.mxu0 0.0
    %483 = vmatpush.msra.mxu0 0.0
    %484 = vmatpush.msra.mxu0 0.0
    %485 = vmatpush.msra.mxu0 0.0
    %486 = vmatpush.msra.mxu0 %v393
    %487 = vmatpush.msra.mxu0 %v391
    %488 = vmatpush.msra.mxu0 %v389
    %489 = vmatpush.msra.mxu0 %v387
    %490 = vmatpush.msra.mxu0 %v385
    %491 = vmatpush.msra.mxu0 %v383
    %492 = vmatpush.msra.mxu0 %v381
    %493 = vmatpush.msra.mxu0 %v379
    %494 = vmatmul.f32.gmra.mxu0 %v402
    %v495 = vpop.f32.mrf.mxu0
    %v496 = vadd.f32 %v397, %v495
    %497 = vmatmul.f32.gmra.mxu0 %v405
    %v498 = vpop.f32.mrf.mxu0
    %v499 = vadd.f32 %v397, %v498
    %500 = vmatmul.f32.gmra.mxu0 %v408
    %v501 = vpop.f32.mrf.mxu0
    %v502 = vadd.f32 %v397, %v501
    %503 = vmatmul.f32.gmra.mxu0 %v411
    %v504 = vpop.f32.mrf.mxu0
    %v505 = vadd.f32 %v397, %v504
    %506 = vmatmul.f32.gmra.mxu0 %v414
    %v507 = vpop.f32.mrf.mxu0
    %v508 = vadd.f32 %v397, %v507
    %509 = vmatmul.f32.gmra.mxu0 %v417
    %v510 = vpop.f32.mrf.mxu0
    %v511 = vadd.f32 %v397, %v510
    %512 = vmatmul.f32.gmra.mxu0 %v420
    %v513 = vpop.f32.mrf.mxu0
    %v514 = vadd.f32 %v397, %v513
    %515 = vmatmul.f32.gmra.mxu0 %v423
    %v516 = vpop.f32.mrf.mxu0
    %v517 = vadd.f32 %v397, %v516
    %518 = vmatmul.f32.gmra.mxu0 %v426
    %v519 = vpop.f32.mrf.mxu0
    %v520 = vadd.f32 %v397, %v519
    %521 = vmatmul.f32.gmra.mxu0 %v429
    %v522 = vpop.f32.mrf.mxu0
    %v523 = vadd.f32 %v397, %v522
    %524 = vdwg.mxu0
    %525 = vst [vmem:[#allocation2] sm:$0xff] %v449
    %526 = vst [vmem:[#allocation2 + $0x8] sm:$0xff] %v496
    %527 = vst [vmem:[#allocation2 + $0x10] sm:$0xff] %v452
    %528 = vst [vmem:[#allocation2 + $0x18] sm:$0xff] %v499
    %529 = vst [vmem:[#allocation2 + $0x20] sm:$0xff] %v455
    %530 = vst [vmem:[#allocation2 + $0x28] sm:$0xff] %v502
    %531 = vst [vmem:[#allocation2 + $0x30] sm:$0xff] %v458
    %532 = vst [vmem:[#allocation2 + $0x38] sm:$0xff] %v505
    %533 = vst [vmem:[#allocation2 + $0x40] sm:$0xff] %v461
    %534 = vst [vmem:[#allocation2 + $0x48] sm:$0xff] %v508
    %535 = vst [vmem:[#allocation2 + $0x50] sm:$0xff] %v464
    %536 = vst [vmem:[#allocation2 + $0x58] sm:$0xff] %v511
    %537 = vst [vmem:[#allocation2 + $0x60] sm:$0xff] %v467
    %538 = vst [vmem:[#allocation2 + $0x68] sm:$0xff] %v514
    %539 = vst [vmem:[#allocation2 + $0x70] sm:$0xff] %v470
    %540 = vst [vmem:[#allocation2 + $0x78] sm:$0xff] %v517
    %541 = vst [vmem:[#allocation2 + $0x80] sm:$0xff] %v473
    %542 = vst [vmem:[#allocation2 + $0x88] sm:$0xff] %v520
    %543 = vst [vmem:[#allocation2 + $0x90] sm:$0xff] %v476
    %544 = vst [vmem:[#allocation2 + $0x98] sm:$0xff] %v523
    %v545 = vld [vmem:[#allocation4] sm:$0xff]
    %v546 = vld [vmem:[#allocation4 + $0x8] sm:$0xff]
    %v547 = vld [vmem:[#allocation4 + $0x10] sm:$0xff]
    %v548 = vld [vmem:[#allocation4 + $0x18] sm:$0xff]
    %v549 = vld [vmem:[#allocation4 + $0x20] sm:$0xff]
    %v550 = vld [vmem:[#allocation4 + $0x28] sm:$0xff]
    %v551 = vld [vmem:[#allocation4 + $0x30] sm:$0xff]
    %v552 = vld [vmem:[#allocation4 + $0x38] sm:$0xff]
    %v553 = vld [vmem:[#allocation4 + $0x40] sm:$0xff]
    %v554 = vld [vmem:[#allocation4 + $0x48] sm:$0xff]
    %v555 = vld [vmem:[#allocation4 + $0x50] sm:$0xff]
    %v556 = vld [vmem:[#allocation4 + $0x58] sm:$0xff]
    %v557 = vld [vmem:[#allocation4 + $0x60] sm:$0xff]
    %v558 = vld [vmem:[#allocation4 + $0x68] sm:$0xff]
    %v559 = vld [vmem:[#allocation4 + $0x70] sm:$0xff]
    %v560 = vld [vmem:[#allocation4 + $0x78] sm:$0xff]
    %v561 = vld [vmem:[#allocation2] sm:$0xff]
    %v562 = vld [vmem:[#allocation2 + $0x8] sm:$0xff]
    %v564 = vsel %vm400, 0.0, 0
    %566 = vmatpush.msra.mxu0 0.0
    %567 = vmatpush.msra.mxu0 0.0
    %568 = vmatpush.msra.mxu0 0.0
    %569 = vmatpush.msra.mxu0 0.0
    %570 = vmatpush.msra.mxu0 0.0
    %571 = vmatpush.msra.mxu0 0.0
    %572 = vmatpush.msra.mxu0 0.0
    %573 = vmatpush.msra.mxu0 0.0
    %574 = vmatpush.msra.mxu0 %v559
    %575 = vmatpush.msra.mxu0 %v557
    %576 = vmatpush.msra.mxu0 %v555
    %577 = vmatpush.msra.mxu0 %v553
    %578 = vmatpush.msra.mxu0 %v551
    %579 = vmatpush.msra.mxu0 %v549
    %580 = vmatpush.msra.mxu0 %v547
    %581 = vmatpush.msra.mxu0 %v545
    %582 = vmatmul.f32.gmra.mxu0 %v564
    %v583 = vpop.f32.mrf.mxu0
    %v584 = vadd.f32 0.0, %v583
    %585 = vdwg.mxu0
    %586 = vmatpush.msra.mxu0 0.0
    %587 = vmatpush.msra.mxu0 0.0
    %588 = vmatpush.msra.mxu0 0.0
    %589 = vmatpush.msra.mxu0 0.0
    %590 = vmatpush.msra.mxu0 0.0
    %591 = vmatpush.msra.mxu0 0.0
    %592 = vmatpush.msra.mxu0 0.0
    %593 = vmatpush.msra.mxu0 0.0
    %594 = vmatpush.msra.mxu0 %v560
    %595 = vmatpush.msra.mxu0 %v558
    %596 = vmatpush.msra.mxu0 %v556
    %597 = vmatpush.msra.mxu0 %v554
    %598 = vmatpush.msra.mxu0 %v552
    %599 = vmatpush.msra.mxu0 %v550
    %600 = vmatpush.msra.mxu0 %v548
    %601 = vmatpush.msra.mxu0 %v546
    %602 = vmatmul.f32.gmra.mxu0 %v564
    %v603 = vpop.f32.mrf.mxu0
    %v604 = vadd.f32 0.0, %v603
    %605 = vdwg.mxu0
    %v606 = vadd.f32 %v561, %v584
    %v607 = vadd.f32 %v562, %v604
    %v608 = vtanh.pop %v606
    %v609 = vtanh.pop %v607
    %v610 = vxor.u32 %v606, 2147483648
    %v611 = vxor.u32 %v607, 2147483648
    %v612 = vmul.f32 %v610, 1.442695
    %v613 = vpow.pop %v612
    %v614 = vmul.f32 %v611, 1.442695
    %v615 = vpow.pop %v614
    %v616 = vadd.f32 %v613, 1.0
    %v617 = vadd.f32 %v615, 1.0
    %v618 = vrcp.pop %v616
    %v619 = vmul.f32 %v616, %v618
    %v620 = vsub.f32 1.0, %v619
    %v621 = vmul.f32 %v618, %v620
    %v622 = vadd.f32 %v618, %v621
    %vm623 = vweird.f32 %v616
    %vm624 = vweird.f32 %v618
    %vm625 = vmor %vm623, %vm624
    %v626 = vsel %vm625, %v618, %v622
    %v627 = vand.u32 2147483647, %v616
    %vm628 = vcmp.eq.f32.partialorder %v627, 8.507059e+37
    %v629 = vand.u32 %v616, 2147483648
    %v630 = vor.u32 1.1754944e-38, %v629
    %v631 = vsel %vm628, %v630, %v626
    %v632 = vmul.f32 1.0, %v631
    %v633 = vrcp.pop %v617
    %v634 = vmul.f32 %v617, %v633
    %v635 = vsub.f32 1.0, %v634
    %v636 = vmul.f32 %v633, %v635
    %v637 = vadd.f32 %v633, %v636
    %vm638 = vweird.f32 %v617
    %vm639 = vweird.f32 %v633
    %vm640 = vmor %vm638, %vm639
    %v641 = vsel %vm640, %v633, %v637
    %v642 = vand.u32 2147483647, %v617
    %vm643 = vcmp.eq.f32.partialorder %v642, 8.507059e+37
    %v644 = vand.u32 %v617, 2147483648
    %v645 = vor.u32 1.1754944e-38, %v644
    %v646 = vsel %vm643, %v645, %v641
    %v647 = vmul.f32 1.0, %v646
    %v648 = vsel %vm376, %v608, %v632
    %v649 = vsel %vm377, %v609, %v647
    %v650 = vmul.f32 %v648, 0.0
    %v651 = vmul.f32 %v648, %v649
    %653 = vrot.lane.b32.xlu0 %v651, 64
    %v654 = vpop.permute.xlu0 %653
    %v656 = vadd.f32 %v650, %v654
    %v657 = vtanh.pop %v656
    %v658 = vmul.f32 %v649, %v657
    %v659 = vsel %vm362, %v656, 0.0
    %v660 = vsel %vm362, %v658, 0.0
    %661 = vrot.lane.b32.xlu0 %v329, 64
    %v662 = vpop.permute.xlu0 %661
    %v664 = vadd.f32 %v660, %v662
    %666 = vrot.lane.b32.xlu0 %v664, 64
    %v667 = vpop.permute.xlu0 %666
    %669 = vst.msk [vmem:[#allocation3] sm:$0xff] %vm400, %v667
    %v670 = vld [vmem:[#allocation2 + $0x10] sm:$0xff]
    %v671 = vld [vmem:[#allocation2 + $0x18] sm:$0xff]
    %673 = vrot.lane.b32.xlu0 %v660, 64
    %v674 = vpop.permute.xlu0 %673
    %v675 = vsel %vm400, %v674, 0
    %677 = vmatpush.msra.mxu0 0.0
    %678 = vmatpush.msra.mxu0 0.0
    %679 = vmatpush.msra.mxu0 0.0
    %680 = vmatpush.msra.mxu0 0.0
    %681 = vmatpush.msra.mxu0 0.0
    %682 = vmatpush.msra.mxu0 0.0
    %683 = vmatpush.msra.mxu0 0.0
    %684 = vmatpush.msra.mxu0 0.0
    %685 = vmatpush.msra.mxu0 %v559
    %686 = vmatpush.msra.mxu0 %v557
    %687 = vmatpush.msra.mxu0 %v555
    %688 = vmatpush.msra.mxu0 %v553
    %689 = vmatpush.msra.mxu0 %v551
    %690 = vmatpush.msra.mxu0 %v549
    %691 = vmatpush.msra.mxu0 %v547
    %692 = vmatpush.msra.mxu0 %v545
    %693 = vmatmul.f32.gmra.mxu0 %v675
    %v694 = vpop.f32.mrf.mxu0
    %v695 = vadd.f32 0.0, %v694
    %696 = vdwg.mxu0
    %697 = vmatpush.msra.mxu0 0.0
    %698 = vmatpush.msra.mxu0 0.0
    %699 = vmatpush.msra.mxu0 0.0
    %700 = vmatpush.msra.mxu0 0.0
    %701 = vmatpush.msra.mxu0 0.0
    %702 = vmatpush.msra.mxu0 0.0
    %703 = vmatpush.msra.mxu0 0.0
    %704 = vmatpush.msra.mxu0 0.0
    %705 = vmatpush.msra.mxu0 %v560
    %706 = vmatpush.msra.mxu0 %v558
    %707 = vmatpush.msra.mxu0 %v556
    %708 = vmatpush.msra.mxu0 %v554
    %709 = vmatpush.msra.mxu0 %v552
    %710 = vmatpush.msra.mxu0 %v550
    %711 = vmatpush.msra.mxu0 %v548
    %712 = vmatpush.msra.mxu0 %v546
    %713 = vmatmul.f32.gmra.mxu0 %v675
    %v714 = vpop.f32.mrf.mxu0
    %v715 = vadd.f32 0.0, %v714
    %716 = vdwg.mxu0
    %v717 = vadd.f32 %v670, %v695
    %v718 = vadd.f32 %v671, %v715
    %v719 = vtanh.pop %v717
    %v720 = vtanh.pop %v718
    %v721 = vxor.u32 %v717, 2147483648
    %v722 = vxor.u32 %v718, 2147483648
    %v723 = vmul.f32 %v721, 1.442695
    %v724 = vpow.pop %v723
    %v725 = vmul.f32 %v722, 1.442695
    %v726 = vpow.pop %v725
    %v727 = vadd.f32 %v724, 1.0
    %v728 = vadd.f32 %v726, 1.0
    %v729 = vrcp.pop %v727
    %v730 = vmul.f32 %v727, %v729
    %v731 = vsub.f32 1.0, %v730
    %v732 = vmul.f32 %v729, %v731
    %v733 = vadd.f32 %v729, %v732
    %vm734 = vweird.f32 %v727
    %vm735 = vweird.f32 %v729
    %vm736 = vmor %vm734, %vm735
    %v737 = vsel %vm736, %v729, %v733
    %v738 = vand.u32 2147483647, %v727
    %vm739 = vcmp.eq.f32.partialorder %v738, 8.507059e+37
    %v740 = vand.u32 %v727, 2147483648
    %v741 = vor.u32 1.1754944e-38, %v740
    %v742 = vsel %vm739, %v741, %v737
    %v743 = vmul.f32 1.0, %v742
    %v744 = vrcp.pop %v728
    %v745 = vmul.f32 %v728, %v744
    %v746 = vsub.f32 1.0, %v745
    %v747 = vmul.f32 %v744, %v746
    %v748 = vadd.f32 %v744, %v747
    %vm749 = vweird.f32 %v728
    %vm750 = vweird.f32 %v744
    %vm751 = vmor %vm749, %vm750
    %v752 = vsel %vm751, %v744, %v748
    %v753 = vand.u32 2147483647, %v728
    %vm754 = vcmp.eq.f32.partialorder %v753, 8.507059e+37
    %v755 = vand.u32 %v728, 2147483648
    %v756 = vor.u32 1.1754944e-38, %v755
    %v757 = vsel %vm754, %v756, %v752
    %v758 = vmul.f32 1.0, %v757
    %v759 = vsel %vm376, %v719, %v743
    %v760 = vsel %vm377, %v720, %v758
    %v761 = vmul.f32 %v759, %v659
    %v762 = vmul.f32 %v759, %v760
    %764 = vrot.lane.b32.xlu0 %v762, 64
    %v765 = vpop.permute.xlu0 %764
    %v767 = vadd.f32 %v761, %v765
    %v768 = vtanh.pop %v767
    %v769 = vmul.f32 %v760, %v768
    %v770 = vsel %vm363, %v767, %v659
    %v771 = vsel %vm363, %v769, %v660
    %v772 = vsel %vm363, %v769, 0.0
    %773 = vrot.lane.b32.xlu0 %v332, 64
    %v774 = vpop.permute.xlu0 %773
    %v776 = vadd.f32 %v772, %v774
    %778 = vrot.lane.b32.xlu0 %v776, 64
    %v779 = vpop.permute.xlu0 %778
    %781 = vst.msk [vmem:[#allocation3 + $0x8] sm:$0xff] %vm400, %v779
    %v782 = vld [vmem:[#allocation2 + $0x20] sm:$0xff]
    %v783 = vld [vmem:[#allocation2 + $0x28] sm:$0xff]
    %785 = vrot.lane.b32.xlu0 %v771, 64
    %v786 = vpop.permute.xlu0 %785
    %v787 = vsel %vm400, %v786, 0
    %789 = vmatpush.msra.mxu0 0.0
    %790 = vmatpush.msra.mxu0 0.0
    %791 = vmatpush.msra.mxu0 0.0
    %792 = vmatpush.msra.mxu0 0.0
    %793 = vmatpush.msra.mxu0 0.0
    %794 = vmatpush.msra.mxu0 0.0
    %795 = vmatpush.msra.mxu0 0.0
    %796 = vmatpush.msra.mxu0 0.0
    %797 = vmatpush.msra.mxu0 %v559
    %798 = vmatpush.msra.mxu0 %v557
    %799 = vmatpush.msra.mxu0 %v555
    %800 = vmatpush.msra.mxu0 %v553
    %801 = vmatpush.msra.mxu0 %v551
    %802 = vmatpush.msra.mxu0 %v549
    %803 = vmatpush.msra.mxu0 %v547
    %804 = vmatpush.msra.mxu0 %v545
    %805 = vmatmul.f32.gmra.mxu0 %v787
    %v806 = vpop.f32.mrf.mxu0
    %v807 = vadd.f32 0.0, %v806
    %808 = vdwg.mxu0
    %809 = vmatpush.msra.mxu0 0.0
    %810 = vmatpush.msra.mxu0 0.0
    %811 = vmatpush.msra.mxu0 0.0
    %812 = vmatpush.msra.mxu0 0.0
    %813 = vmatpush.msra.mxu0 0.0
    %814 = vmatpush.msra.mxu0 0.0
    %815 = vmatpush.msra.mxu0 0.0
    %816 = vmatpush.msra.mxu0 0.0
    %817 = vmatpush.msra.mxu0 %v560
    %818 = vmatpush.msra.mxu0 %v558
    %819 = vmatpush.msra.mxu0 %v556
    %820 = vmatpush.msra.mxu0 %v554
    %821 = vmatpush.msra.mxu0 %v552
    %822 = vmatpush.msra.mxu0 %v550
    %823 = vmatpush.msra.mxu0 %v548
    %824 = vmatpush.msra.mxu0 %v546
    %825 = vmatmul.f32.gmra.mxu0 %v787
    %v826 = vpop.f32.mrf.mxu0
    %v827 = vadd.f32 0.0, %v826
    %828 = vdwg.mxu0
    %v829 = vadd.f32 %v782, %v807
    %v830 = vadd.f32 %v783, %v827
    %v831 = vtanh.pop %v829
    %v832 = vtanh.pop %v830
    %v833 = vxor.u32 %v829, 2147483648
    %v834 = vxor.u32 %v830, 2147483648
    %v835 = vmul.f32 %v833, 1.442695
    %v836 = vpow.pop %v835
    %v837 = vmul.f32 %v834, 1.442695
    %v838 = vpow.pop %v837
    %v839 = vadd.f32 %v836, 1.0
    %v840 = vadd.f32 %v838, 1.0
    %v841 = vrcp.pop %v839
    %v842 = vmul.f32 %v839, %v841
    %v843 = vsub.f32 1.0, %v842
    %v844 = vmul.f32 %v841, %v843
    %v845 = vadd.f32 %v841, %v844
    %vm846 = vweird.f32 %v839
    %vm847 = vweird.f32 %v841
    %vm848 = vmor %vm846, %vm847
    %v849 = vsel %vm848, %v841, %v845
    %v850 = vand.u32 2147483647, %v839
    %vm851 = vcmp.eq.f32.partialorder %v850, 8.507059e+37
    %v852 = vand.u32 %v839, 2147483648
    %v853 = vor.u32 1.1754944e-38, %v852
    %v854 = vsel %vm851, %v853, %v849
    %v855 = vmul.f32 1.0, %v854
    %v856 = vrcp.pop %v840
    %v857 = vmul.f32 %v840, %v856
    %v858 = vsub.f32 1.0, %v857
    %v859 = vmul.f32 %v856, %v858
    %v860 = vadd.f32 %v856, %v859
    %vm861 = vweird.f32 %v840
    %vm862 = vweird.f32 %v856
    %vm863 = vmor %vm861, %vm862
    %v864 = vsel %vm863, %v856, %v860
    %v865 = vand.u32 2147483647, %v840
    %vm866 = vcmp.eq.f32.partialorder %v865, 8.507059e+37
    %v867 = vand.u32 %v840, 2147483648
    %v868 = vor.u32 1.1754944e-38, %v867
    %v869 = vsel %vm866, %v868, %v864
    %v870 = vmul.f32 1.0, %v869
    %v871 = vsel %vm376, %v831, %v855
    %v872 = vsel %vm377, %v832, %v870
    %v873 = vmul.f32 %v871, %v770
    %v874 = vmul.f32 %v871, %v872
    %876 = vrot.lane.b32.xlu0 %v874, 64
    %v877 = vpop.permute.xlu0 %876
    %v879 = vadd.f32 %v873, %v877
    %v880 = vtanh.pop %v879
    %v881 = vmul.f32 %v872, %v880
    %v882 = vsel %vm364, %v879, %v770
    %v883 = vsel %vm364, %v881, %v771
    %v884 = vsel %vm364, %v881, 0.0
    %885 = vrot.lane.b32.xlu0 %v335, 64
    %v886 = vpop.permute.xlu0 %885
    %v888 = vadd.f32 %v884, %v886
    %890 = vrot.lane.b32.xlu0 %v888, 64
    %v891 = vpop.permute.xlu0 %890
    %893 = vst.msk [vmem:[#allocation3 + $0x10] sm:$0xff] %vm400, %v891
    %v894 = vld [vmem:[#allocation2 + $0x30] sm:$0xff]
    %v895 = vld [vmem:[#allocation2 + $0x38] sm:$0xff]
    %897 = vrot.lane.b32.xlu0 %v883, 64
    %v898 = vpop.permute.xlu0 %897
    %v899 = vsel %vm400, %v898, 0
    %901 = vmatpush.msra.mxu0 0.0
    %902 = vmatpush.msra.mxu0 0.0
    %903 = vmatpush.msra.mxu0 0.0
    %904 = vmatpush.msra.mxu0 0.0
    %905 = vmatpush.msra.mxu0 0.0
    %906 = vmatpush.msra.mxu0 0.0
    %907 = vmatpush.msra.mxu0 0.0
    %908 = vmatpush.msra.mxu0 0.0
    %909 = vmatpush.msra.mxu0 %v559
    %910 = vmatpush.msra.mxu0 %v557
    %911 = vmatpush.msra.mxu0 %v555
    %912 = vmatpush.msra.mxu0 %v553
    %913 = vmatpush.msra.mxu0 %v551
    %914 = vmatpush.msra.mxu0 %v549
    %915 = vmatpush.msra.mxu0 %v547
    %916 = vmatpush.msra.mxu0 %v545
    %917 = vmatmul.f32.gmra.mxu0 %v899
    %v918 = vpop.f32.mrf.mxu0
    %v919 = vadd.f32 0.0, %v918
    %920 = vdwg.mxu0
    %921 = vmatpush.msra.mxu0 0.0
    %922 = vmatpush.msra.mxu0 0.0
    %923 = vmatpush.msra.mxu0 0.0
    %924 = vmatpush.msra.mxu0 0.0
    %925 = vmatpush.msra.mxu0 0.0
    %926 = vmatpush.msra.mxu0 0.0
    %927 = vmatpush.msra.mxu0 0.0
    %928 = vmatpush.msra.mxu0 0.0
    %929 = vmatpush.msra.mxu0 %v560
    %930 = vmatpush.msra.mxu0 %v558
    %931 = vmatpush.msra.mxu0 %v556
    %932 = vmatpush.msra.mxu0 %v554
    %933 = vmatpush.msra.mxu0 %v552
    %934 = vmatpush.msra.mxu0 %v550
    %935 = vmatpush.msra.mxu0 %v548
    %936 = vmatpush.msra.mxu0 %v546
    %937 = vmatmul.f32.gmra.mxu0 %v899
    %v938 = vpop.f32.mrf.mxu0
    %v939 = vadd.f32 0.0, %v938
    %940 = vdwg.mxu0
    %v941 = vadd.f32 %v894, %v919
    %v942 = vadd.f32 %v895, %v939
    %v943 = vtanh.pop %v941
    %v944 = vtanh.pop %v942
    %v945 = vxor.u32 %v941, 2147483648
    %v946 = vxor.u32 %v942, 2147483648
    %v947 = vmul.f32 %v945, 1.442695
    %v948 = vpow.pop %v947
    %v949 = vmul.f32 %v946, 1.442695
    %v950 = vpow.pop %v949
    %v951 = vadd.f32 %v948, 1.0
    %v952 = vadd.f32 %v950, 1.0
    %v953 = vrcp.pop %v951
    %v954 = vmul.f32 %v951, %v953
    %v955 = vsub.f32 1.0, %v954
    %v956 = vmul.f32 %v953, %v955
    %v957 = vadd.f32 %v953, %v956
    %vm958 = vweird.f32 %v951
    %vm959 = vweird.f32 %v953
    %vm960 = vmor %vm958, %vm959
    %v961 = vsel %vm960, %v953, %v957
    %v962 = vand.u32 2147483647, %v951
    %vm963 = vcmp.eq.f32.partialorder %v962, 8.507059e+37
    %v964 = vand.u32 %v951, 2147483648
    %v965 = vor.u32 1.1754944e-38, %v964
    %v966 = vsel %vm963, %v965, %v961
    %v967 = vmul.f32 1.0, %v966
    %v968 = vrcp.pop %v952
    %v969 = vmul.f32 %v952, %v968
    %v970 = vsub.f32 1.0, %v969
    %v971 = vmul.f32 %v968, %v970
    %v972 = vadd.f32 %v968, %v971
    %vm973 = vweird.f32 %v952
    %vm974 = vweird.f32 %v968
    %vm975 = vmor %vm973, %vm974
    %v976 = vsel %vm975, %v968, %v972
    %v977 = vand.u32 2147483647, %v952
    %vm978 = vcmp.eq.f32.partialorder %v977, 8.507059e+37
    %v979 = vand.u32 %v952, 2147483648
    %v980 = vor.u32 1.1754944e-38, %v979
    %v981 = vsel %vm978, %v980, %v976
    %v982 = vmul.f32 1.0, %v981
    %v983 = vsel %vm376, %v943, %v967
    %v984 = vsel %vm377, %v944, %v982
    %v985 = vmul.f32 %v983, %v882
    %v986 = vmul.f32 %v983, %v984
    %988 = vrot.lane.b32.xlu0 %v986, 64
    %v989 = vpop.permute.xlu0 %988
    %v991 = vadd.f32 %v985, %v989
    %v992 = vtanh.pop %v991
    %v993 = vmul.f32 %v984, %v992
    %v994 = vsel %vm365, %v991, %v882
    %v995 = vsel %vm365, %v993, %v883
    %v996 = vsel %vm365, %v993, 0.0
    %997 = vrot.lane.b32.xlu0 %v338, 64
    %v998 = vpop.permute.xlu0 %997
    %v1000 = vadd.f32 %v996, %v998
    %1002 = vrot.lane.b32.xlu0 %v1000, 64
    %v1003 = vpop.permute.xlu0 %1002
    %1005 = vst.msk [vmem:[#allocation3 + $0x18] sm:$0xff] %vm400, %v1003
    %v1006 = vld [vmem:[#allocation2 + $0x40] sm:$0xff]
    %v1007 = vld [vmem:[#allocation2 + $0x48] sm:$0xff]
    %1009 = vrot.lane.b32.xlu0 %v995, 64
    %v1010 = vpop.permute.xlu0 %1009
    %v1011 = vsel %vm400, %v1010, 0
    %1013 = vmatpush.msra.mxu0 0.0
    %1014 = vmatpush.msra.mxu0 0.0
    %1015 = vmatpush.msra.mxu0 0.0
    %1016 = vmatpush.msra.mxu0 0.0
    %1017 = vmatpush.msra.mxu0 0.0
    %1018 = vmatpush.msra.mxu0 0.0
    %1019 = vmatpush.msra.mxu0 0.0
    %1020 = vmatpush.msra.mxu0 0.0
    %1021 = vmatpush.msra.mxu0 %v559
    %1022 = vmatpush.msra.mxu0 %v557
    %1023 = vmatpush.msra.mxu0 %v555
    %1024 = vmatpush.msra.mxu0 %v553
    %1025 = vmatpush.msra.mxu0 %v551
    %1026 = vmatpush.msra.mxu0 %v549
    %1027 = vmatpush.msra.mxu0 %v547
    %1028 = vmatpush.msra.mxu0 %v545
    %1029 = vmatmul.f32.gmra.mxu0 %v1011
    %v1030 = vpop.f32.mrf.mxu0
    %v1031 = vadd.f32 0.0, %v1030
    %1032 = vdwg.mxu0
    %1033 = vmatpush.msra.mxu0 0.0
    %1034 = vmatpush.msra.mxu0 0.0
    %1035 = vmatpush.msra.mxu0 0.0
    %1036 = vmatpush.msra.mxu0 0.0
    %1037 = vmatpush.msra.mxu0 0.0
    %1038 = vmatpush.msra.mxu0 0.0
    %1039 = vmatpush.msra.mxu0 0.0
    %1040 = vmatpush.msra.mxu0 0.0
    %1041 = vmatpush.msra.mxu0 %v560
    %1042 = vmatpush.msra.mxu0 %v558
    %1043 = vmatpush.msra.mxu0 %v556
    %1044 = vmatpush.msra.mxu0 %v554
    %1045 = vmatpush.msra.mxu0 %v552
    %1046 = vmatpush.msra.mxu0 %v550
    %1047 = vmatpush.msra.mxu0 %v548
    %1048 = vmatpush.msra.mxu0 %v546
    %1049 = vmatmul.f32.gmra.mxu0 %v1011
    %v1050 = vpop.f32.mrf.mxu0
    %v1051 = vadd.f32 0.0, %v1050
    %1052 = vdwg.mxu0
    %v1053 = vadd.f32 %v1006, %v1031
    %v1054 = vadd.f32 %v1007, %v1051
    %v1055 = vtanh.pop %v1053
    %v1056 = vtanh.pop %v1054
    %v1057 = vxor.u32 %v1053, 2147483648
    %v1058 = vxor.u32 %v1054, 2147483648
    %v1059 = vmul.f32 %v1057, 1.442695
    %v1060 = vpow.pop %v1059
    %v1061 = vmul.f32 %v1058, 1.442695
    %v1062 = vpow.pop %v1061
    %v1063 = vadd.f32 %v1060, 1.0
    %v1064 = vadd.f32 %v1062, 1.0
    %v1065 = vrcp.pop %v1063
    %v1066 = vmul.f32 %v1063, %v1065
    %v1067 = vsub.f32 1.0, %v1066
    %v1068 = vmul.f32 %v1065, %v1067
    %v1069 = vadd.f32 %v1065, %v1068
    %vm1070 = vweird.f32 %v1063
    %vm1071 = vweird.f32 %v1065
    %vm1072 = vmor %vm1070, %vm1071
    %v1073 = vsel %vm1072, %v1065, %v1069
    %v1074 = vand.u32 2147483647, %v1063
    %vm1075 = vcmp.eq.f32.partialorder %v1074, 8.507059e+37
    %v1076 = vand.u32 %v1063, 2147483648
    %v1077 = vor.u32 1.1754944e-38, %v1076
    %v1078 = vsel %vm1075, %v1077, %v1073
    %v1079 = vmul.f32 1.0, %v1078
    %v1080 = vrcp.pop %v1064
    %v1081 = vmul.f32 %v1064, %v1080
    %v1082 = vsub.f32 1.0, %v1081
    %v1083 = vmul.f32 %v1080, %v1082
    %v1084 = vadd.f32 %v1080, %v1083
    %vm1085 = vweird.f32 %v1064
    %vm1086 = vweird.f32 %v1080
    %vm1087 = vmor %vm1085, %vm1086
    %v1088 = vsel %vm1087, %v1080, %v1084
    %v1089 = vand.u32 2147483647, %v1064
    %vm1090 = vcmp.eq.f32.partialorder %v1089, 8.507059e+37
    %v1091 = vand.u32 %v1064, 2147483648
    %v1092 = vor.u32 1.1754944e-38, %v1091
    %v1093 = vsel %vm1090, %v1092, %v1088
    %v1094 = vmul.f32 1.0, %v1093
    %v1095 = vsel %vm376, %v1055, %v1079
    %v1096 = vsel %vm377, %v1056, %v1094
    %v1097 = vmul.f32 %v1095, %v994
    %v1098 = vmul.f32 %v1095, %v1096
    %1100 = vrot.lane.b32.xlu0 %v1098, 64
    %v1101 = vpop.permute.xlu0 %1100
    %v1103 = vadd.f32 %v1097, %v1101
    %v1104 = vtanh.pop %v1103
    %v1105 = vmul.f32 %v1096, %v1104
    %v1106 = vsel %vm366, %v1103, %v994
    %v1107 = vsel %vm366, %v1105, %v995
    %v1108 = vsel %vm366, %v1105, 0.0
    %1109 = vrot.lane.b32.xlu0 %v341, 64
    %v1110 = vpop.permute.xlu0 %1109
    %v1112 = vadd.f32 %v1108, %v1110
    %1114 = vrot.lane.b32.xlu0 %v1112, 64
    %v1115 = vpop.permute.xlu0 %1114
    %1117 = vst.msk [vmem:[#allocation3 + $0x20] sm:$0xff] %vm400, %v1115
    %v1118 = vld [vmem:[#allocation2 + $0x50] sm:$0xff]
    %v1119 = vld [vmem:[#allocation2 + $0x58] sm:$0xff]
    %1121 = vrot.lane.b32.xlu0 %v1107, 64
    %v1122 = vpop.permute.xlu0 %1121
    %v1123 = vsel %vm400, %v1122, 0
    %1125 = vmatpush.msra.mxu0 0.0
    %1126 = vmatpush.msra.mxu0 0.0
    %1127 = vmatpush.msra.mxu0 0.0
    %1128 = vmatpush.msra.mxu0 0.0
    %1129 = vmatpush.msra.mxu0 0.0
    %1130 = vmatpush.msra.mxu0 0.0
    %1131 = vmatpush.msra.mxu0 0.0
    %1132 = vmatpush.msra.mxu0 0.0
    %1133 = vmatpush.msra.mxu0 %v559
    %1134 = vmatpush.msra.mxu0 %v557
    %1135 = vmatpush.msra.mxu0 %v555
    %1136 = vmatpush.msra.mxu0 %v553
    %1137 = vmatpush.msra.mxu0 %v551
    %1138 = vmatpush.msra.mxu0 %v549
    %1139 = vmatpush.msra.mxu0 %v547
    %1140 = vmatpush.msra.mxu0 %v545
    %1141 = vmatmul.f32.gmra.mxu0 %v1123
    %v1142 = vpop.f32.mrf.mxu0
    %v1143 = vadd.f32 0.0, %v1142
    %1144 = vdwg.mxu0
    %1145 = vmatpush.msra.mxu0 0.0
    %1146 = vmatpush.msra.mxu0 0.0
    %1147 = vmatpush.msra.mxu0 0.0
    %1148 = vmatpush.msra.mxu0 0.0
    %1149 = vmatpush.msra.mxu0 0.0
    %1150 = vmatpush.msra.mxu0 0.0
    %1151 = vmatpush.msra.mxu0 0.0
    %1152 = vmatpush.msra.mxu0 0.0
    %1153 = vmatpush.msra.mxu0 %v560
    %1154 = vmatpush.msra.mxu0 %v558
    %1155 = vmatpush.msra.mxu0 %v556
    %1156 = vmatpush.msra.mxu0 %v554
    %1157 = vmatpush.msra.mxu0 %v552
    %1158 = vmatpush.msra.mxu0 %v550
    %1159 = vmatpush.msra.mxu0 %v548
    %1160 = vmatpush.msra.mxu0 %v546
    %1161 = vmatmul.f32.gmra.mxu0 %v1123
    %v1162 = vpop.f32.mrf.mxu0
    %v1163 = vadd.f32 0.0, %v1162
    %1164 = vdwg.mxu0
    %v1165 = vadd.f32 %v1118, %v1143
    %v1166 = vadd.f32 %v1119, %v1163
    %v1167 = vtanh.pop %v1165
    %v1168 = vtanh.pop %v1166
    %v1169 = vxor.u32 %v1165, 2147483648
    %v1170 = vxor.u32 %v1166, 2147483648
    %v1171 = vmul.f32 %v1169, 1.442695
    %v1172 = vpow.pop %v1171
    %v1173 = vmul.f32 %v1170, 1.442695
    %v1174 = vpow.pop %v1173
    %v1175 = vadd.f32 %v1172, 1.0
    %v1176 = vadd.f32 %v1174, 1.0
    %v1177 = vrcp.pop %v1175
    %v1178 = vmul.f32 %v1175, %v1177
    %v1179 = vsub.f32 1.0, %v1178
    %v1180 = vmul.f32 %v1177, %v1179
    %v1181 = vadd.f32 %v1177, %v1180
    %vm1182 = vweird.f32 %v1175
    %vm1183 = vweird.f32 %v1177
    %vm1184 = vmor %vm1182, %vm1183
    %v1185 = vsel %vm1184, %v1177, %v1181
    %v1186 = vand.u32 2147483647, %v1175
    %vm1187 = vcmp.eq.f32.partialorder %v1186, 8.507059e+37
    %v1188 = vand.u32 %v1175, 2147483648
    %v1189 = vor.u32 1.1754944e-38, %v1188
    %v1190 = vsel %vm1187, %v1189, %v1185
    %v1191 = vmul.f32 1.0, %v1190
    %v1192 = vrcp.pop %v1176
    %v1193 = vmul.f32 %v1176, %v1192
    %v1194 = vsub.f32 1.0, %v1193
    %v1195 = vmul.f32 %v1192, %v1194
    %v1196 = vadd.f32 %v1192, %v1195
    %vm1197 = vweird.f32 %v1176
    %vm1198 = vweird.f32 %v1192
    %vm1199 = vmor %vm1197, %vm1198
    %v1200 = vsel %vm1199, %v1192, %v1196
    %v1201 = vand.u32 2147483647, %v1176
    %vm1202 = vcmp.eq.f32.partialorder %v1201, 8.507059e+37
    %v1203 = vand.u32 %v1176, 2147483648
    %v1204 = vor.u32 1.1754944e-38, %v1203
    %v1205 = vsel %vm1202, %v1204, %v1200
    %v1206 = vmul.f32 1.0, %v1205
    %v1207 = vsel %vm376, %v1167, %v1191
    %v1208 = vsel %vm377, %v1168, %v1206
    %v1209 = vmul.f32 %v1207, %v1106
    %v1210 = vmul.f32 %v1207, %v1208
    %1212 = vrot.lane.b32.xlu0 %v1210, 64
    %v1213 = vpop.permute.xlu0 %1212
    %v1215 = vadd.f32 %v1209, %v1213
    %v1216 = vtanh.pop %v1215
    %v1217 = vmul.f32 %v1208, %v1216
    %v1218 = vsel %vm367, %v1215, %v1106
    %v1219 = vsel %vm367, %v1217, %v1107
    %v1220 = vsel %vm367, %v1217, 0.0
    %1221 = vrot.lane.b32.xlu0 %v344, 64
    %v1222 = vpop.permute.xlu0 %1221
    %v1224 = vadd.f32 %v1220, %v1222
    %1226 = vrot.lane.b32.xlu0 %v1224, 64
    %v1227 = vpop.permute.xlu0 %1226
    %1229 = vst.msk [vmem:[#allocation3 + $0x28] sm:$0xff] %vm400, %v1227
    %v1230 = vld [vmem:[#allocation2 + $0x60] sm:$0xff]
    %v1231 = vld [vmem:[#allocation2 + $0x68] sm:$0xff]
    %1233 = vrot.lane.b32.xlu0 %v1219, 64
    %v1234 = vpop.permute.xlu0 %1233
    %v1235 = vsel %vm400, %v1234, 0
    %1237 = vmatpush.msra.mxu0 0.0
    %1238 = vmatpush.msra.mxu0 0.0
    %1239 = vmatpush.msra.mxu0 0.0
    %1240 = vmatpush.msra.mxu0 0.0
    %1241 = vmatpush.msra.mxu0 0.0
    %1242 = vmatpush.msra.mxu0 0.0
    %1243 = vmatpush.msra.mxu0 0.0
    %1244 = vmatpush.msra.mxu0 0.0
    %1245 = vmatpush.msra.mxu0 %v559
    %1246 = vmatpush.msra.mxu0 %v557
    %1247 = vmatpush.msra.mxu0 %v555
    %1248 = vmatpush.msra.mxu0 %v553
    %1249 = vmatpush.msra.mxu0 %v551
    %1250 = vmatpush.msra.mxu0 %v549
    %1251 = vmatpush.msra.mxu0 %v547
    %1252 = vmatpush.msra.mxu0 %v545
    %1253 = vmatmul.f32.gmra.mxu0 %v1235
    %v1254 = vpop.f32.mrf.mxu0
    %v1255 = vadd.f32 0.0, %v1254
    %1256 = vdwg.mxu0
    %1257 = vmatpush.msra.mxu0 0.0
    %1258 = vmatpush.msra.mxu0 0.0
    %1259 = vmatpush.msra.mxu0 0.0
    %1260 = vmatpush.msra.mxu0 0.0
    %1261 = vmatpush.msra.mxu0 0.0
    %1262 = vmatpush.msra.mxu0 0.0
    %1263 = vmatpush.msra.mxu0 0.0
    %1264 = vmatpush.msra.mxu0 0.0
    %1265 = vmatpush.msra.mxu0 %v560
    %1266 = vmatpush.msra.mxu0 %v558
    %1267 = vmatpush.msra.mxu0 %v556
    %1268 = vmatpush.msra.mxu0 %v554
    %1269 = vmatpush.msra.mxu0 %v552
    %1270 = vmatpush.msra.mxu0 %v550
    %1271 = vmatpush.msra.mxu0 %v548
    %1272 = vmatpush.msra.mxu0 %v546
    %1273 = vmatmul.f32.gmra.mxu0 %v1235
    %v1274 = vpop.f32.mrf.mxu0
    %v1275 = vadd.f32 0.0, %v1274
    %1276 = vdwg.mxu0
    %v1277 = vadd.f32 %v1230, %v1255
    %v1278 = vadd.f32 %v1231, %v1275
    %v1279 = vtanh.pop %v1277
    %v1280 = vtanh.pop %v1278
    %v1281 = vxor.u32 %v1277, 2147483648
    %v1282 = vxor.u32 %v1278, 2147483648
    %v1283 = vmul.f32 %v1281, 1.442695
    %v1284 = vpow.pop %v1283
    %v1285 = vmul.f32 %v1282, 1.442695
    %v1286 = vpow.pop %v1285
    %v1287 = vadd.f32 %v1284, 1.0
    %v1288 = vadd.f32 %v1286, 1.0
    %v1289 = vrcp.pop %v1287
    %v1290 = vmul.f32 %v1287, %v1289
    %v1291 = vsub.f32 1.0, %v1290
    %v1292 = vmul.f32 %v1289, %v1291
    %v1293 = vadd.f32 %v1289, %v1292
    %vm1294 = vweird.f32 %v1287
    %vm1295 = vweird.f32 %v1289
    %vm1296 = vmor %vm1294, %vm1295
    %v1297 = vsel %vm1296, %v1289, %v1293
    %v1298 = vand.u32 2147483647, %v1287
    %vm1299 = vcmp.eq.f32.partialorder %v1298, 8.507059e+37
    %v1300 = vand.u32 %v1287, 2147483648
    %v1301 = vor.u32 1.1754944e-38, %v1300
    %v1302 = vsel %vm1299, %v1301, %v1297
    %v1303 = vmul.f32 1.0, %v1302
    %v1304 = vrcp.pop %v1288
    %v1305 = vmul.f32 %v1288, %v1304
    %v1306 = vsub.f32 1.0, %v1305
    %v1307 = vmul.f32 %v1304, %v1306
    %v1308 = vadd.f32 %v1304, %v1307
    %vm1309 = vweird.f32 %v1288
    %vm1310 = vweird.f32 %v1304
    %vm1311 = vmor %vm1309, %vm1310
    %v1312 = vsel %vm1311, %v1304, %v1308
    %v1313 = vand.u32 2147483647, %v1288
    %vm1314 = vcmp.eq.f32.partialorder %v1313, 8.507059e+37
    %v1315 = vand.u32 %v1288, 2147483648
    %v1316 = vor.u32 1.1754944e-38, %v1315
    %v1317 = vsel %vm1314, %v1316, %v1312
    %v1318 = vmul.f32 1.0, %v1317
    %v1319 = vsel %vm376, %v1279, %v1303
    %v1320 = vsel %vm377, %v1280, %v1318
    %v1321 = vmul.f32 %v1319, %v1218
    %v1322 = vmul.f32 %v1319, %v1320
    %1324 = vrot.lane.b32.xlu0 %v1322, 64
    %v1325 = vpop.permute.xlu0 %1324
    %v1327 = vadd.f32 %v1321, %v1325
    %v1328 = vtanh.pop %v1327
    %v1329 = vmul.f32 %v1320, %v1328
    %v1330 = vsel %vm368, %v1327, %v1218
    %v1331 = vsel %vm368, %v1329, %v1219
    %v1332 = vsel %vm368, %v1329, 0.0
    %1333 = vrot.lane.b32.xlu0 %v347, 64
    %v1334 = vpop.permute.xlu0 %1333
    %v1336 = vadd.f32 %v1332, %v1334
    %1338 = vrot.lane.b32.xlu0 %v1336, 64
    %v1339 = vpop.permute.xlu0 %1338
    %1341 = vst.msk [vmem:[#allocation3 + $0x30] sm:$0xff] %vm400, %v1339
    %v1342 = vld [vmem:[#allocation2 + $0x70] sm:$0xff]
    %v1343 = vld [vmem:[#allocation2 + $0x78] sm:$0xff]
    %1345 = vrot.lane.b32.xlu0 %v1331, 64
    %v1346 = vpop.permute.xlu0 %1345
    %v1347 = vsel %vm400, %v1346, 0
    %1349 = vmatpush.msra.mxu0 0.0
    %1350 = vmatpush.msra.mxu0 0.0
    %1351 = vmatpush.msra.mxu0 0.0
    %1352 = vmatpush.msra.mxu0 0.0
    %1353 = vmatpush.msra.mxu0 0.0
    %1354 = vmatpush.msra.mxu0 0.0
    %1355 = vmatpush.msra.mxu0 0.0
    %1356 = vmatpush.msra.mxu0 0.0
    %1357 = vmatpush.msra.mxu0 %v559
    %1358 = vmatpush.msra.mxu0 %v557
    %1359 = vmatpush.msra.mxu0 %v555
    %1360 = vmatpush.msra.mxu0 %v553
    %1361 = vmatpush.msra.mxu0 %v551
    %1362 = vmatpush.msra.mxu0 %v549
    %1363 = vmatpush.msra.mxu0 %v547
    %1364 = vmatpush.msra.mxu0 %v545
    %1365 = vmatmul.f32.gmra.mxu0 %v1347
    %v1366 = vpop.f32.mrf.mxu0
    %v1367 = vadd.f32 0.0, %v1366
    %1368 = vdwg.mxu0
    %1369 = vmatpush.msra.mxu0 0.0
    %1370 = vmatpush.msra.mxu0 0.0
    %1371 = vmatpush.msra.mxu0 0.0
    %1372 = vmatpush.msra.mxu0 0.0
    %1373 = vmatpush.msra.mxu0 0.0
    %1374 = vmatpush.msra.mxu0 0.0
    %1375 = vmatpush.msra.mxu0 0.0
    %1376 = vmatpush.msra.mxu0 0.0
    %1377 = vmatpush.msra.mxu0 %v560
    %1378 = vmatpush.msra.mxu0 %v558
    %1379 = vmatpush.msra.mxu0 %v556
    %1380 = vmatpush.msra.mxu0 %v554
    %1381 = vmatpush.msra.mxu0 %v552
    %1382 = vmatpush.msra.mxu0 %v550
    %1383 = vmatpush.msra.mxu0 %v548
    %1384 = vmatpush.msra.mxu0 %v546
    %1385 = vmatmul.f32.gmra.mxu0 %v1347
    %v1386 = vpop.f32.mrf.mxu0
    %v1387 = vadd.f32 0.0, %v1386
    %1388 = vdwg.mxu0
    %v1389 = vadd.f32 %v1342, %v1367
    %v1390 = vadd.f32 %v1343, %v1387
    %v1391 = vtanh.pop %v1389
    %v1392 = vtanh.pop %v1390
    %v1393 = vxor.u32 %v1389, 2147483648
    %v1394 = vxor.u32 %v1390, 2147483648
    %v1395 = vmul.f32 %v1393, 1.442695
    %v1396 = vpow.pop %v1395
    %v1397 = vmul.f32 %v1394, 1.442695
    %v1398 = vpow.pop %v1397
    %v1399 = vadd.f32 %v1396, 1.0
    %v1400 = vadd.f32 %v1398, 1.0
    %v1401 = vrcp.pop %v1399
    %v1402 = vmul.f32 %v1399, %v1401
    %v1403 = vsub.f32 1.0, %v1402
    %v1404 = vmul.f32 %v1401, %v1403
    %v1405 = vadd.f32 %v1401, %v1404
    %vm1406 = vweird.f32 %v1399
    %vm1407 = vweird.f32 %v1401
    %vm1408 = vmor %vm1406, %vm1407
    %v1409 = vsel %vm1408, %v1401, %v1405
    %v1410 = vand.u32 2147483647, %v1399
    %vm1411 = vcmp.eq.f32.partialorder %v1410, 8.507059e+37
    %v1412 = vand.u32 %v1399, 2147483648
    %v1413 = vor.u32 1.1754944e-38, %v1412
    %v1414 = vsel %vm1411, %v1413, %v1409
    %v1415 = vmul.f32 1.0, %v1414
    %v1416 = vrcp.pop %v1400
    %v1417 = vmul.f32 %v1400, %v1416
    %v1418 = vsub.f32 1.0, %v1417
    %v1419 = vmul.f32 %v1416, %v1418
    %v1420 = vadd.f32 %v1416, %v1419
    %vm1421 = vweird.f32 %v1400
    %vm1422 = vweird.f32 %v1416
    %vm1423 = vmor %vm1421, %vm1422
    %v1424 = vsel %vm1423, %v1416, %v1420
    %v1425 = vand.u32 2147483647, %v1400
    %vm1426 = vcmp.eq.f32.partialorder %v1425, 8.507059e+37
    %v1427 = vand.u32 %v1400, 2147483648
    %v1428 = vor.u32 1.1754944e-38, %v1427
    %v1429 = vsel %vm1426, %v1428, %v1424
    %v1430 = vmul.f32 1.0, %v1429
    %v1431 = vsel %vm376, %v1391, %v1415
    %v1432 = vsel %vm377, %v1392, %v1430
    %v1433 = vmul.f32 %v1431, %v1330
    %v1434 = vmul.f32 %v1431, %v1432
    %1436 = vrot.lane.b32.xlu0 %v1434, 64
    %v1437 = vpop.permute.xlu0 %1436
    %v1439 = vadd.f32 %v1433, %v1437
    %v1440 = vtanh.pop %v1439
    %v1441 = vmul.f32 %v1432, %v1440
    %v1442 = vsel %vm369, %v1439, %v1330
    %v1443 = vsel %vm369, %v1441, %v1331
    %v1444 = vsel %vm369, %v1441, 0.0
    %1445 = vrot.lane.b32.xlu0 %v350, 64
    %v1446 = vpop.permute.xlu0 %1445
    %v1448 = vadd.f32 %v1444, %v1446
    %1450 = vrot.lane.b32.xlu0 %v1448, 64
    %v1451 = vpop.permute.xlu0 %1450
    %1453 = vst.msk [vmem:[#allocation3 + $0x38] sm:$0xff] %vm400, %v1451
    %v1454 = vld [vmem:[#allocation2 + $0x80] sm:$0xff]
    %v1455 = vld [vmem:[#allocation2 + $0x88] sm:$0xff]
    %1457 = vrot.lane.b32.xlu0 %v1443, 64
    %v1458 = vpop.permute.xlu0 %1457
    %v1459 = vsel %vm400, %v1458, 0
    %1461 = vmatpush.msra.mxu0 0.0
    %1462 = vmatpush.msra.mxu0 0.0
    %1463 = vmatpush.msra.mxu0 0.0
    %1464 = vmatpush.msra.mxu0 0.0
    %1465 = vmatpush.msra.mxu0 0.0
    %1466 = vmatpush.msra.mxu0 0.0
    %1467 = vmatpush.msra.mxu0 0.0
    %1468 = vmatpush.msra.mxu0 0.0
    %1469 = vmatpush.msra.mxu0 %v559
    %1470 = vmatpush.msra.mxu0 %v557
    %1471 = vmatpush.msra.mxu0 %v555
    %1472 = vmatpush.msra.mxu0 %v553
    %1473 = vmatpush.msra.mxu0 %v551
    %1474 = vmatpush.msra.mxu0 %v549
    %1475 = vmatpush.msra.mxu0 %v547
    %1476 = vmatpush.msra.mxu0 %v545
    %1477 = vmatmul.f32.gmra.mxu0 %v1459
    %v1478 = vpop.f32.mrf.mxu0
    %v1479 = vadd.f32 0.0, %v1478
    %1480 = vdwg.mxu0
    %1481 = vmatpush.msra.mxu0 0.0
    %1482 = vmatpush.msra.mxu0 0.0
    %1483 = vmatpush.msra.mxu0 0.0
    %1484 = vmatpush.msra.mxu0 0.0
    %1485 = vmatpush.msra.mxu0 0.0
    %1486 = vmatpush.msra.mxu0 0.0
    %1487 = vmatpush.msra.mxu0 0.0
    %1488 = vmatpush.msra.mxu0 0.0
    %1489 = vmatpush.msra.mxu0 %v560
    %1490 = vmatpush.msra.mxu0 %v558
    %1491 = vmatpush.msra.mxu0 %v556
    %1492 = vmatpush.msra.mxu0 %v554
    %1493 = vmatpush.msra.mxu0 %v552
    %1494 = vmatpush.msra.mxu0 %v550
    %1495 = vmatpush.msra.mxu0 %v548
    %1496 = vmatpush.msra.mxu0 %v546
    %1497 = vmatmul.f32.gmra.mxu0 %v1459
    %v1498 = vpop.f32.mrf.mxu0
    %v1499 = vadd.f32 0.0, %v1498
    %1500 = vdwg.mxu0
    %v1501 = vadd.f32 %v1454, %v1479
    %v1502 = vadd.f32 %v1455, %v1499
    %v1503 = vtanh.pop %v1501
    %v1504 = vtanh.pop %v1502
    %v1505 = vxor.u32 %v1501, 2147483648
    %v1506 = vxor.u32 %v1502, 2147483648
    %v1507 = vmul.f32 %v1505, 1.442695
    %v1508 = vpow.pop %v1507
    %v1509 = vmul.f32 %v1506, 1.442695
    %v1510 = vpow.pop %v1509
    %v1511 = vadd.f32 %v1508, 1.0
    %v1512 = vadd.f32 %v1510, 1.0
    %v1513 = vrcp.pop %v1511
    %v1514 = vmul.f32 %v1511, %v1513
    %v1515 = vsub.f32 1.0, %v1514
    %v1516 = vmul.f32 %v1513, %v1515
    %v1517 = vadd.f32 %v1513, %v1516
    %vm1518 = vweird.f32 %v1511
    %vm1519 = vweird.f32 %v1513
    %vm1520 = vmor %vm1518, %vm1519
    %v1521 = vsel %vm1520, %v1513, %v1517
    %v1522 = vand.u32 2147483647, %v1511
    %vm1523 = vcmp.eq.f32.partialorder %v1522, 8.507059e+37
    %v1524 = vand.u32 %v1511, 2147483648
    %v1525 = vor.u32 1.1754944e-38, %v1524
    %v1526 = vsel %vm1523, %v1525, %v1521
    %v1527 = vmul.f32 1.0, %v1526
    %v1528 = vrcp.pop %v1512
    %v1529 = vmul.f32 %v1512, %v1528
    %v1530 = vsub.f32 1.0, %v1529
    %v1531 = vmul.f32 %v1528, %v1530
    %v1532 = vadd.f32 %v1528, %v1531
    %vm1533 = vweird.f32 %v1512
    %vm1534 = vweird.f32 %v1528
    %vm1535 = vmor %vm1533, %vm1534
    %v1536 = vsel %vm1535, %v1528, %v1532
    %v1537 = vand.u32 2147483647, %v1512
    %vm1538 = vcmp.eq.f32.partialorder %v1537, 8.507059e+37
    %v1539 = vand.u32 %v1512, 2147483648
    %v1540 = vor.u32 1.1754944e-38, %v1539
    %v1541 = vsel %vm1538, %v1540, %v1536
    %v1542 = vmul.f32 1.0, %v1541
    %v1543 = vsel %vm376, %v1503, %v1527
    %v1544 = vsel %vm377, %v1504, %v1542
    %v1545 = vmul.f32 %v1543, %v1442
    %v1546 = vmul.f32 %v1543, %v1544
    %1548 = vrot.lane.b32.xlu0 %v1546, 64
    %v1549 = vpop.permute.xlu0 %1548
    %v1551 = vadd.f32 %v1545, %v1549
    %v1552 = vtanh.pop %v1551
    %v1553 = vmul.f32 %v1544, %v1552
    %v1554 = vsel %vm370, %v1551, %v1442
    %v1555 = vsel %vm370, %v1553, %v1443
    %v1556 = vsel %vm370, %v1553, 0.0
    %1557 = vrot.lane.b32.xlu0 %v353, 64
    %v1558 = vpop.permute.xlu0 %1557
    %v1560 = vadd.f32 %v1556, %v1558
    %1562 = vrot.lane.b32.xlu0 %v1560, 64
    %v1563 = vpop.permute.xlu0 %1562
    %1565 = vst.msk [vmem:[#allocation3 + $0x40] sm:$0xff] %vm400, %v1563
    %v1566 = vld [vmem:[#allocation2 + $0x90] sm:$0xff]
    %v1567 = vld [vmem:[#allocation2 + $0x98] sm:$0xff]
    %1569 = vrot.lane.b32.xlu0 %v1555, 64
    %v1570 = vpop.permute.xlu0 %1569
    %v1571 = vsel %vm400, %v1570, 0
    %1573 = vmatpush.msra.mxu0 0.0
    %1574 = vmatpush.msra.mxu0 0.0
    %1575 = vmatpush.msra.mxu0 0.0
    %1576 = vmatpush.msra.mxu0 0.0
    %1577 = vmatpush.msra.mxu0 0.0
    %1578 = vmatpush.msra.mxu0 0.0
    %1579 = vmatpush.msra.mxu0 0.0
    %1580 = vmatpush.msra.mxu0 0.0
    %1581 = vmatpush.msra.mxu0 %v559
    %1582 = vmatpush.msra.mxu0 %v557
    %1583 = vmatpush.msra.mxu0 %v555
    %1584 = vmatpush.msra.mxu0 %v553
    %1585 = vmatpush.msra.mxu0 %v551
    %1586 = vmatpush.msra.mxu0 %v549
    %1587 = vmatpush.msra.mxu0 %v547
    %1588 = vmatpush.msra.mxu0 %v545
    %1589 = vmatmul.f32.gmra.mxu0 %v1571
    %v1590 = vpop.f32.mrf.mxu0
    %v1591 = vadd.f32 0.0, %v1590
    %1592 = vdwg.mxu0
    %1593 = vmatpush.msra.mxu0 0.0
    %1594 = vmatpush.msra.mxu0 0.0
    %1595 = vmatpush.msra.mxu0 0.0
    %1596 = vmatpush.msra.mxu0 0.0
    %1597 = vmatpush.msra.mxu0 0.0
    %1598 = vmatpush.msra.mxu0 0.0
    %1599 = vmatpush.msra.mxu0 0.0
    %1600 = vmatpush.msra.mxu0 0.0
    %1601 = vmatpush.msra.mxu0 %v560
    %1602 = vmatpush.msra.mxu0 %v558
    %1603 = vmatpush.msra.mxu0 %v556
    %1604 = vmatpush.msra.mxu0 %v554
    %1605 = vmatpush.msra.mxu0 %v552
    %1606 = vmatpush.msra.mxu0 %v550
    %1607 = vmatpush.msra.mxu0 %v548
    %1608 = vmatpush.msra.mxu0 %v546
    %1609 = vmatmul.f32.gmra.mxu0 %v1571
    %v1610 = vpop.f32.mrf.mxu0
    %v1611 = vadd.f32 0.0, %v1610
    %1612 = vdwg.mxu0
    %v1613 = vadd.f32 %v1566, %v1591
    %v1614 = vadd.f32 %v1567, %v1611
    %v1615 = vtanh.pop %v1613
    %v1616 = vtanh.pop %v1614
    %v1617 = vxor.u32 %v1613, 2147483648
    %v1618 = vxor.u32 %v1614, 2147483648
    %v1619 = vmul.f32 %v1617, 1.442695
    %v1620 = vpow.pop %v1619
    %v1621 = vmul.f32 %v1618, 1.442695
    %v1622 = vpow.pop %v1621
    %v1623 = vadd.f32 %v1620, 1.0
    %v1624 = vadd.f32 %v1622, 1.0
    %v1625 = vrcp.pop %v1623
    %v1626 = vmul.f32 %v1623, %v1625
    %v1627 = vsub.f32 1.0, %v1626
    %v1628 = vmul.f32 %v1625, %v1627
    %v1629 = vadd.f32 %v1625, %v1628
    %vm1630 = vweird.f32 %v1623
    %vm1631 = vweird.f32 %v1625
    %vm1632 = vmor %vm1630, %vm1631
    %v1633 = vsel %vm1632, %v1625, %v1629
    %v1634 = vand.u32 2147483647, %v1623
    %vm1635 = vcmp.eq.f32.partialorder %v1634, 8.507059e+37
    %v1636 = vand.u32 %v1623, 2147483648
    %v1637 = vor.u32 1.1754944e-38, %v1636
    %v1638 = vsel %vm1635, %v1637, %v1633
    %v1639 = vmul.f32 1.0, %v1638
    %v1640 = vrcp.pop %v1624
    %v1641 = vmul.f32 %v1624, %v1640
    %v1642 = vsub.f32 1.0, %v1641
    %v1643 = vmul.f32 %v1640, %v1642
    %v1644 = vadd.f32 %v1640, %v1643
    %vm1645 = vweird.f32 %v1624
    %vm1646 = vweird.f32 %v1640
    %vm1647 = vmor %vm1645, %vm1646
    %v1648 = vsel %vm1647, %v1640, %v1644
    %v1649 = vand.u32 2147483647, %v1624
    %vm1650 = vcmp.eq.f32.partialorder %v1649, 8.507059e+37
    %v1651 = vand.u32 %v1624, 2147483648
    %v1652 = vor.u32 1.1754944e-38, %v1651
    %v1653 = vsel %vm1650, %v1652, %v1648
    %v1654 = vmul.f32 1.0, %v1653
    %v1655 = vsel %vm376, %v1615, %v1639
    %v1656 = vsel %vm377, %v1616, %v1654
    %v1657 = vmul.f32 %v1655, %v1554
    %v1658 = vmul.f32 %v1655, %v1656
    %1660 = vrot.lane.b32.xlu0 %v1658, 64
    %v1661 = vpop.permute.xlu0 %1660
    %v1663 = vadd.f32 %v1657, %v1661
    %v1664 = vtanh.pop %v1663
    %v1665 = vmul.f32 %v1656, %v1664
    %v1666 = vsel %vm371, %v1665, 0.0
    %1667 = vrot.lane.b32.xlu0 %v356, 64
    %v1668 = vpop.permute.xlu0 %1667
    %v1670 = vadd.f32 %v1666, %v1668
    %1672 = vrot.lane.b32.xlu0 %v1670, 64
    %v1673 = vpop.permute.xlu0 %1672
    %1675 = vst.msk [vmem:[#allocation3 + $0x48] sm:$0xff] %vm400, %v1673
    %v1676 = vld [vmem:[#allocation3] sm:$0xff]
    %v1677 = vld [vmem:[#allocation3 + $0x8] sm:$0xff]
    %v1678 = vld [vmem:[#allocation3 + $0x10] sm:$0xff]
    %v1679 = vld [vmem:[#allocation3 + $0x18] sm:$0xff]
    %v1680 = vld [vmem:[#allocation3 + $0x20] sm:$0xff]
    %v1681 = vld [vmem:[#allocation3 + $0x28] sm:$0xff]
    %v1682 = vld [vmem:[#allocation3 + $0x30] sm:$0xff]
    %v1683 = vld [vmem:[#allocation3 + $0x38] sm:$0xff]
    %v1684 = vld [vmem:[#allocation3 + $0x40] sm:$0xff]
    %v1685 = vld [vmem:[#allocation3 + $0x48] sm:$0xff]
    %s1686 = scalar_lea.vmem %s4, 128
    %v1687 = vld [vmem:[%s1686] sm:$0xff]
    %v1688 = vld [vmem:[%s1686 + $0x8] sm:$0xff]
    %v1689 = vld [vmem:[%s1686 + $0x10] sm:$0xff]
    %v1690 = vld [vmem:[%s1686 + $0x18] sm:$0xff]
    %v1691 = vld [vmem:[%s1686 + $0x20] sm:$0xff]
    %v1692 = vld [vmem:[%s1686 + $0x28] sm:$0xff]
    %v1693 = vld [vmem:[%s1686 + $0x30] sm:$0xff]
    %v1694 = vld [vmem:[%s1686 + $0x38] sm:$0xff]
    %v1695 = vld [vmem:[%s1686 + $0x40] sm:$0xff]
    %v1696 = vld [vmem:[%s1686 + $0x48] sm:$0xff]
    %v1697 = vld [vmem:[%s1686 + $0x50] sm:$0xff]
    %v1698 = vld [vmem:[%s1686 + $0x58] sm:$0xff]
    %v1699 = vld [vmem:[%s1686 + $0x60] sm:$0xff]
    %v1700 = vld [vmem:[%s1686 + $0x68] sm:$0xff]
    %v1701 = vld [vmem:[%s1686 + $0x70] sm:$0xff]
    %v1702 = vld [vmem:[%s1686 + $0x78] sm:$0xff]
    %s1703 = scalar_lea.vmem %s6, 2
    %v1704 = vld [vmem:[%s1703] sm:$0x3]
    %v1706 = vperm.slane %v1704, 0
    %v1707 = vperm.slane %v1704, 1
    %v1711 = vsel %vm400, %v1676, 0
    %v1714 = vsel %vm400, %v1677, 0
    %v1717 = vsel %vm400, %v1678, 0
    %v1720 = vsel %vm400, %v1679, 0
    %v1723 = vsel %vm400, %v1680, 0
    %v1726 = vsel %vm400, %v1681, 0
    %v1729 = vsel %vm400, %v1682, 0
    %v1732 = vsel %vm400, %v1683, 0
    %v1735 = vsel %vm400, %v1684, 0
    %v1738 = vsel %vm400, %v1685, 0
    %1740 = vmatpush.msra.mxu0 0.0
    %1741 = vmatpush.msra.mxu0 0.0
    %1742 = vmatpush.msra.mxu0 0.0
    %1743 = vmatpush.msra.mxu0 0.0
    %1744 = vmatpush.msra.mxu0 0.0
    %1745 = vmatpush.msra.mxu0 0.0
    %1746 = vmatpush.msra.mxu0 0.0
    %1747 = vmatpush.msra.mxu0 0.0
    %1748 = vmatpush.msra.mxu0 %v1701
    %1749 = vmatpush.msra.mxu0 %v1699
    %1750 = vmatpush.msra.mxu0 %v1697
    %1751 = vmatpush.msra.mxu0 %v1695
    %1752 = vmatpush.msra.mxu0 %v1693
    %1753 = vmatpush.msra.mxu0 %v1691
    %1754 = vmatpush.msra.mxu0 %v1689
    %1755 = vmatpush.msra.mxu0 %v1687
    %1756 = vmatmul.f32.gmra.mxu0 %v1711
    %v1757 = vpop.f32.mrf.mxu0
    %v1758 = vadd.f32 %v1706, %v1757
    %1759 = vmatmul.f32.gmra.mxu0 %v1714
    %v1760 = vpop.f32.mrf.mxu0
    %v1761 = vadd.f32 %v1706, %v1760
    %1762 = vmatmul.f32.gmra.mxu0 %v1717
    %v1763 = vpop.f32.mrf.mxu0
    %v1764 = vadd.f32 %v1706, %v1763
    %1765 = vmatmul.f32.gmra.mxu0 %v1720
    %v1766 = vpop.f32.mrf.mxu0
    %v1767 = vadd.f32 %v1706, %v1766
    %1768 = vmatmul.f32.gmra.mxu0 %v1723
    %v1769 = vpop.f32.mrf.mxu0
    %v1770 = vadd.f32 %v1706, %v1769
    %1771 = vmatmul.f32.gmra.mxu0 %v1726
    %v1772 = vpop.f32.mrf.mxu0
    %v1773 = vadd.f32 %v1706, %v1772
    %1774 = vmatmul.f32.gmra.mxu0 %v1729
    %v1775 = vpop.f32.mrf.mxu0
    %v1776 = vadd.f32 %v1706, %v1775
    %1777 = vmatmul.f32.gmra.mxu0 %v1732
    %v1778 = vpop.f32.mrf.mxu0
    %v1779 = vadd.f32 %v1706, %v1778
    %1780 = vmatmul.f32.gmra.mxu0 %v1735
    %v1781 = vpop.f32.mrf.mxu0
    %v1782 = vadd.f32 %v1706, %v1781
    %1783 = vmatmul.f32.gmra.mxu0 %v1738
    %v1784 = vpop.f32.mrf.mxu0
    %v1785 = vadd.f32 %v1706, %v1784
    %1786 = vdwg.mxu0
    %1787 = vmatpush.msra.mxu0 0.0
    %1788 = vmatpush.msra.mxu0 0.0
    %1789 = vmatpush.msra.mxu0 0.0
    %1790 = vmatpush.msra.mxu0 0.0
    %1791 = vmatpush.msra.mxu0 0.0
    %1792 = vmatpush.msra.mxu0 0.0
    %1793 = vmatpush.msra.mxu0 0.0
    %1794 = vmatpush.msra.mxu0 0.0
    %1795 = vmatpush.msra.mxu0 %v1702
    %1796 = vmatpush.msra.mxu0 %v1700
    %1797 = vmatpush.msra.mxu0 %v1698
    %1798 = vmatpush.msra.mxu0 %v1696
    %1799 = vmatpush.msra.mxu0 %v1694
    %1800 = vmatpush.msra.mxu0 %v1692
    %1801 = vmatpush.msra.mxu0 %v1690
    %1802 = vmatpush.msra.mxu0 %v1688
    %1803 = vmatmul.f32.gmra.mxu0 %v1711
    %v1804 = vpop.f32.mrf.mxu0
    %v1805 = vadd.f32 %v1707, %v1804
    %1806 = vmatmul.f32.gmra.mxu0 %v1714
    %v1807 = vpop.f32.mrf.mxu0
    %v1808 = vadd.f32 %v1707, %v1807
    %1809 = vmatmul.f32.gmra.mxu0 %v1717
    %v1810 = vpop.f32.mrf.mxu0
    %v1811 = vadd.f32 %v1707, %v1810
    %1812 = vmatmul.f32.gmra.mxu0 %v1720
    %v1813 = vpop.f32.mrf.mxu0
    %v1814 = vadd.f32 %v1707, %v1813
    %1815 = vmatmul.f32.gmra.mxu0 %v1723
    %v1816 = vpop.f32.mrf.mxu0
    %v1817 = vadd.f32 %v1707, %v1816
    %1818 = vmatmul.f32.gmra.mxu0 %v1726
    %v1819 = vpop.f32.mrf.mxu0
    %v1820 = vadd.f32 %v1707, %v1819
    %1821 = vmatmul.f32.gmra.mxu0 %v1729
    %v1822 = vpop.f32.mrf.mxu0
    %v1823 = vadd.f32 %v1707, %v1822
    %1824 = vmatmul.f32.gmra.mxu0 %v1732
    %v1825 = vpop.f32.mrf.mxu0
    %v1826 = vadd.f32 %v1707, %v1825
    %1827 = vmatmul.f32.gmra.mxu0 %v1735
    %v1828 = vpop.f32.mrf.mxu0
    %v1829 = vadd.f32 %v1707, %v1828
    %1830 = vmatmul.f32.gmra.mxu0 %v1738
    %v1831 = vpop.f32.mrf.mxu0
    %v1832 = vadd.f32 %v1707, %v1831
    %1833 = vdwg.mxu0
    %1834 = vst [vmem:[#allocation2] sm:$0xff] %v1758
    %1835 = vst [vmem:[#allocation2 + $0x8] sm:$0xff] %v1805
    %1836 = vst [vmem:[#allocation2 + $0x10] sm:$0xff] %v1761
    %1837 = vst [vmem:[#allocation2 + $0x18] sm:$0xff] %v1808
    %1838 = vst [vmem:[#allocation2 + $0x20] sm:$0xff] %v1764
    %1839 = vst [vmem:[#allocation2 + $0x28] sm:$0xff] %v1811
    %1840 = vst [vmem:[#allocation2 + $0x30] sm:$0xff] %v1767
    %1841 = vst [vmem:[#allocation2 + $0x38] sm:$0xff] %v1814
    %1842 = vst [vmem:[#allocation2 + $0x40] sm:$0xff] %v1770
    %1843 = vst [vmem:[#allocation2 + $0x48] sm:$0xff] %v1817
    %1844 = vst [vmem:[#allocation2 + $0x50] sm:$0xff] %v1773
    %1845 = vst [vmem:[#allocation2 + $0x58] sm:$0xff] %v1820
    %1846 = vst [vmem:[#allocation2 + $0x60] sm:$0xff] %v1776
    %1847 = vst [vmem:[#allocation2 + $0x68] sm:$0xff] %v1823
    %1848 = vst [vmem:[#allocation2 + $0x70] sm:$0xff] %v1779
    %1849 = vst [vmem:[#allocation2 + $0x78] sm:$0xff] %v1826
    %1850 = vst [vmem:[#allocation2 + $0x80] sm:$0xff] %v1782
    %1851 = vst [vmem:[#allocation2 + $0x88] sm:$0xff] %v1829
    %1852 = vst [vmem:[#allocation2 + $0x90] sm:$0xff] %v1785
    %1853 = vst [vmem:[#allocation2 + $0x98] sm:$0xff] %v1832
    %s1854 = scalar_lea.vmem [#allocation4], 128
    %v1855 = vld [vmem:[%s1854] sm:$0xff]
    %v1856 = vld [vmem:[%s1854 + $0x8] sm:$0xff]
    %v1857 = vld [vmem:[%s1854 + $0x10] sm:$0xff]
    %v1858 = vld [vmem:[%s1854 + $0x18] sm:$0xff]
    %v1859 = vld [vmem:[%s1854 + $0x20] sm:$0xff]
    %v1860 = vld [vmem:[%s1854 + $0x28] sm:$0xff]
    %v1861 = vld [vmem:[%s1854 + $0x30] sm:$0xff]
    %v1862 = vld [vmem:[%s1854 + $0x38] sm:$0xff]
    %v1863 = vld [vmem:[%s1854 + $0x40] sm:$0xff]
    %v1864 = vld [vmem:[%s1854 + $0x48] sm:$0xff]
    %v1865 = vld [vmem:[%s1854 + $0x50] sm:$0xff]
    %v1866 = vld [vmem:[%s1854 + $0x58] sm:$0xff]
    %v1867 = vld [vmem:[%s1854 + $0x60] sm:$0xff]
    %v1868 = vld [vmem:[%s1854 + $0x68] sm:$0xff]
    %v1869 = vld [vmem:[%s1854 + $0x70] sm:$0xff]
    %v1870 = vld [vmem:[%s1854 + $0x78] sm:$0xff]
    %v1871 = vld [vmem:[#allocation2] sm:$0xff]
    %v1872 = vld [vmem:[#allocation2 + $0x8] sm:$0xff]
    %1873 = vmatpush.msra.mxu0 0.0
    %1874 = vmatpush.msra.mxu0 0.0
    %1875 = vmatpush.msra.mxu0 0.0
    %1876 = vmatpush.msra.mxu0 0.0
    %1877 = vmatpush.msra.mxu0 0.0
    %1878 = vmatpush.msra.mxu0 0.0
    %1879 = vmatpush.msra.mxu0 0.0
    %1880 = vmatpush.msra.mxu0 0.0
    %1881 = vmatpush.msra.mxu0 %v1869
    %1882 = vmatpush.msra.mxu0 %v1867
    %1883 = vmatpush.msra.mxu0 %v1865
    %1884 = vmatpush.msra.mxu0 %v1863
    %1885 = vmatpush.msra.mxu0 %v1861
    %1886 = vmatpush.msra.mxu0 %v1859
    %1887 = vmatpush.msra.mxu0 %v1857
    %1888 = vmatpush.msra.mxu0 %v1855
    %1889 = vmatmul.f32.gmra.mxu0 %v564
    %v1890 = vpop.f32.mrf.mxu0
    %v1891 = vadd.f32 0.0, %v1890
    %1892 = vdwg.mxu0
    %1893 = vmatpush.msra.mxu0 0.0
    %1894 = vmatpush.msra.mxu0 0.0
    %1895 = vmatpush.msra.mxu0 0.0
    %1896 = vmatpush.msra.mxu0 0.0
    %1897 = vmatpush.msra.mxu0 0.0
    %1898 = vmatpush.msra.mxu0 0.0
    %1899 = vmatpush.msra.mxu0 0.0
    %1900 = vmatpush.msra.mxu0 0.0
    %1901 = vmatpush.msra.mxu0 %v1870
    %1902 = vmatpush.msra.mxu0 %v1868
    %1903 = vmatpush.msra.mxu0 %v1866
    %1904 = vmatpush.msra.mxu0 %v1864
    %1905 = vmatpush.msra.mxu0 %v1862
    %1906 = vmatpush.msra.mxu0 %v1860
    %1907 = vmatpush.msra.mxu0 %v1858
    %1908 = vmatpush.msra.mxu0 %v1856
    %1909 = vmatmul.f32.gmra.mxu0 %v564
    %v1910 = vpop.f32.mrf.mxu0
    %v1911 = vadd.f32 0.0, %v1910
    %1912 = vdwg.mxu0
    %v1913 = vadd.f32 %v1871, %v1891
    %v1914 = vadd.f32 %v1872, %v1911
    %v1915 = vtanh.pop %v1913
    %v1916 = vtanh.pop %v1914
    %v1917 = vxor.u32 %v1913, 2147483648
    %v1918 = vxor.u32 %v1914, 2147483648
    %v1919 = vmul.f32 %v1917, 1.442695
    %v1920 = vpow.pop %v1919
    %v1921 = vmul.f32 %v1918, 1.442695
    %v1922 = vpow.pop %v1921
    %v1923 = vadd.f32 %v1920, 1.0
    %v1924 = vadd.f32 %v1922, 1.0
    %v1925 = vrcp.pop %v1923
    %v1926 = vmul.f32 %v1923, %v1925
    %v1927 = vsub.f32 1.0, %v1926
    %v1928 = vmul.f32 %v1925, %v1927
    %v1929 = vadd.f32 %v1925, %v1928
    %vm1930 = vweird.f32 %v1923
    %vm1931 = vweird.f32 %v1925
    %vm1932 = vmor %vm1930, %vm1931
    %v1933 = vsel %vm1932, %v1925, %v1929
    %v1934 = vand.u32 2147483647, %v1923
    %vm1935 = vcmp.eq.f32.partialorder %v1934, 8.507059e+37
    %v1936 = vand.u32 %v1923, 2147483648
    %v1937 = vor.u32 1.1754944e-38, %v1936
    %v1938 = vsel %vm1935, %v1937, %v1933
    %v1939 = vmul.f32 1.0, %v1938
    %v1940 = vrcp.pop %v1924
    %v1941 = vmul.f32 %v1924, %v1940
    %v1942 = vsub.f32 1.0, %v1941
    %v1943 = vmul.f32 %v1940, %v1942
    %v1944 = vadd.f32 %v1940, %v1943
    %vm1945 = vweird.f32 %v1924
    %vm1946 = vweird.f32 %v1940
    %vm1947 = vmor %vm1945, %vm1946
    %v1948 = vsel %vm1947, %v1940, %v1944
    %v1949 = vand.u32 2147483647, %v1924
    %vm1950 = vcmp.eq.f32.partialorder %v1949, 8.507059e+37
    %v1951 = vand.u32 %v1924, 2147483648
    %v1952 = vor.u32 1.1754944e-38, %v1951
    %v1953 = vsel %vm1950, %v1952, %v1948
    %v1954 = vmul.f32 1.0, %v1953
    %v1955 = vsel %vm376, %v1915, %v1939
    %v1956 = vsel %vm377, %v1916, %v1954
    %v1957 = vmul.f32 %v1955, 0.0
    %v1958 = vmul.f32 %v1955, %v1956
    %1960 = vrot.lane.b32.xlu0 %v1958, 64
    %v1961 = vpop.permute.xlu0 %1960
    %v1963 = vadd.f32 %v1957, %v1961
    %v1964 = vtanh.pop %v1963
    %v1965 = vmul.f32 %v1956, %v1964
    %v1966 = vsel %vm362, %v1963, 0.0
    %v1967 = vsel %vm362, %v1965, 0.0
    %v1968 = vld [vmem:[#allocation2 + $0x10] sm:$0xff]
    %v1969 = vld [vmem:[#allocation2 + $0x18] sm:$0xff]
    %1971 = vrot.lane.b32.xlu0 %v1967, 64
    %v1972 = vpop.permute.xlu0 %1971
    %v1973 = vsel %vm400, %v1972, 0
    %1975 = vmatpush.msra.mxu0 0.0
    %1976 = vmatpush.msra.mxu0 0.0
    %1977 = vmatpush.msra.mxu0 0.0
    %1978 = vmatpush.msra.mxu0 0.0
    %1979 = vmatpush.msra.mxu0 0.0
    %1980 = vmatpush.msra.mxu0 0.0
    %1981 = vmatpush.msra.mxu0 0.0
    %1982 = vmatpush.msra.mxu0 0.0
    %1983 = vmatpush.msra.mxu0 %v1869
    %1984 = vmatpush.msra.mxu0 %v1867
    %1985 = vmatpush.msra.mxu0 %v1865
    %1986 = vmatpush.msra.mxu0 %v1863
    %1987 = vmatpush.msra.mxu0 %v1861
    %1988 = vmatpush.msra.mxu0 %v1859
    %1989 = vmatpush.msra.mxu0 %v1857
    %1990 = vmatpush.msra.mxu0 %v1855
    %1991 = vmatmul.f32.gmra.mxu0 %v1973
    %v1992 = vpop.f32.mrf.mxu0
    %v1993 = vadd.f32 0.0, %v1992
    %1994 = vdwg.mxu0
    %1995 = vmatpush.msra.mxu0 0.0
    %1996 = vmatpush.msra.mxu0 0.0
    %1997 = vmatpush.msra.mxu0 0.0
    %1998 = vmatpush.msra.mxu0 0.0
    %1999 = vmatpush.msra.mxu0 0.0
    %2000 = vmatpush.msra.mxu0 0.0
    %2001 = vmatpush.msra.mxu0 0.0
    %2002 = vmatpush.msra.mxu0 0.0
    %2003 = vmatpush.msra.mxu0 %v1870
    %2004 = vmatpush.msra.mxu0 %v1868
    %2005 = vmatpush.msra.mxu0 %v1866
    %2006 = vmatpush.msra.mxu0 %v1864
    %2007 = vmatpush.msra.mxu0 %v1862
    %2008 = vmatpush.msra.mxu0 %v1860
    %2009 = vmatpush.msra.mxu0 %v1858
    %2010 = vmatpush.msra.mxu0 %v1856
    %2011 = vmatmul.f32.gmra.mxu0 %v1973
    %v2012 = vpop.f32.mrf.mxu0
    %v2013 = vadd.f32 0.0, %v2012
    %2014 = vdwg.mxu0
    %v2015 = vadd.f32 %v1968, %v1993
    %v2016 = vadd.f32 %v1969, %v2013
    %v2017 = vtanh.pop %v2015
    %v2018 = vtanh.pop %v2016
    %v2019 = vxor.u32 %v2015, 2147483648
    %v2020 = vxor.u32 %v2016, 2147483648
    %v2021 = vmul.f32 %v2019, 1.442695
    %v2022 = vpow.pop %v2021
    %v2023 = vmul.f32 %v2020, 1.442695
    %v2024 = vpow.pop %v2023
    %v2025 = vadd.f32 %v2022, 1.0
    %v2026 = vadd.f32 %v2024, 1.0
    %v2027 = vrcp.pop %v2025
    %v2028 = vmul.f32 %v2025, %v2027
    %v2029 = vsub.f32 1.0, %v2028
    %v2030 = vmul.f32 %v2027, %v2029
    %v2031 = vadd.f32 %v2027, %v2030
    %vm2032 = vweird.f32 %v2025
    %vm2033 = vweird.f32 %v2027
    %vm2034 = vmor %vm2032, %vm2033
    %v2035 = vsel %vm2034, %v2027, %v2031
    %v2036 = vand.u32 2147483647, %v2025
    %vm2037 = vcmp.eq.f32.partialorder %v2036, 8.507059e+37
    %v2038 = vand.u32 %v2025, 2147483648
    %v2039 = vor.u32 1.1754944e-38, %v2038
    %v2040 = vsel %vm2037, %v2039, %v2035
    %v2041 = vmul.f32 1.0, %v2040
    %v2042 = vrcp.pop %v2026
    %v2043 = vmul.f32 %v2026, %v2042
    %v2044 = vsub.f32 1.0, %v2043
    %v2045 = vmul.f32 %v2042, %v2044
    %v2046 = vadd.f32 %v2042, %v2045
    %vm2047 = vweird.f32 %v2026
    %vm2048 = vweird.f32 %v2042
    %vm2049 = vmor %vm2047, %vm2048
    %v2050 = vsel %vm2049, %v2042, %v2046
    %v2051 = vand.u32 2147483647, %v2026
    %vm2052 = vcmp.eq.f32.partialorder %v2051, 8.507059e+37
    %v2053 = vand.u32 %v2026, 2147483648
    %v2054 = vor.u32 1.1754944e-38, %v2053
    %v2055 = vsel %vm2052, %v2054, %v2050
    %v2056 = vmul.f32 1.0, %v2055
    %v2057 = vsel %vm376, %v2017, %v2041
    %v2058 = vsel %vm377, %v2018, %v2056
    %v2059 = vmul.f32 %v2057, %v1966
    %v2060 = vmul.f32 %v2057, %v2058
    %2062 = vrot.lane.b32.xlu0 %v2060, 64
    %v2063 = vpop.permute.xlu0 %2062
    %v2065 = vadd.f32 %v2059, %v2063
    %v2066 = vtanh.pop %v2065
    %v2067 = vmul.f32 %v2058, %v2066
    %v2068 = vsel %vm363, %v2065, %v1966
    %v2069 = vsel %vm363, %v2067, %v1967
    %v2070 = vld [vmem:[#allocation2 + $0x20] sm:$0xff]
    %v2071 = vld [vmem:[#allocation2 + $0x28] sm:$0xff]
    %2073 = vrot.lane.b32.xlu0 %v2069, 64
    %v2074 = vpop.permute.xlu0 %2073
    %v2075 = vsel %vm400, %v2074, 0
    %2077 = vmatpush.msra.mxu0 0.0
    %2078 = vmatpush.msra.mxu0 0.0
    %2079 = vmatpush.msra.mxu0 0.0
    %2080 = vmatpush.msra.mxu0 0.0
    %2081 = vmatpush.msra.mxu0 0.0
    %2082 = vmatpush.msra.mxu0 0.0
    %2083 = vmatpush.msra.mxu0 0.0
    %2084 = vmatpush.msra.mxu0 0.0
    %2085 = vmatpush.msra.mxu0 %v1869
    %2086 = vmatpush.msra.mxu0 %v1867
    %2087 = vmatpush.msra.mxu0 %v1865
    %2088 = vmatpush.msra.mxu0 %v1863
    %2089 = vmatpush.msra.mxu0 %v1861
    %2090 = vmatpush.msra.mxu0 %v1859
    %2091 = vmatpush.msra.mxu0 %v1857
    %2092 = vmatpush.msra.mxu0 %v1855
    %2093 = vmatmul.f32.gmra.mxu0 %v2075
    %v2094 = vpop.f32.mrf.mxu0
    %v2095 = vadd.f32 0.0, %v2094
    %2096 = vdwg.mxu0
    %2097 = vmatpush.msra.mxu0 0.0
    %2098 = vmatpush.msra.mxu0 0.0
    %2099 = vmatpush.msra.mxu0 0.0
    %2100 = vmatpush.msra.mxu0 0.0
    %2101 = vmatpush.msra.mxu0 0.0
    %2102 = vmatpush.msra.mxu0 0.0
    %2103 = vmatpush.msra.mxu0 0.0
    %2104 = vmatpush.msra.mxu0 0.0
    %2105 = vmatpush.msra.mxu0 %v1870
    %2106 = vmatpush.msra.mxu0 %v1868
    %2107 = vmatpush.msra.mxu0 %v1866
    %2108 = vmatpush.msra.mxu0 %v1864
    %2109 = vmatpush.msra.mxu0 %v1862
    %2110 = vmatpush.msra.mxu0 %v1860
    %2111 = vmatpush.msra.mxu0 %v1858
    %2112 = vmatpush.msra.mxu0 %v1856
    %2113 = vmatmul.f32.gmra.mxu0 %v2075
    %v2114 = vpop.f32.mrf.mxu0
    %v2115 = vadd.f32 0.0, %v2114
    %2116 = vdwg.mxu0
    %v2117 = vadd.f32 %v2070, %v2095
    %v2118 = vadd.f32 %v2071, %v2115
    %v2119 = vtanh.pop %v2117
    %v2120 = vtanh.pop %v2118
    %v2121 = vxor.u32 %v2117, 2147483648
    %v2122 = vxor.u32 %v2118, 2147483648
    %v2123 = vmul.f32 %v2121, 1.442695
    %v2124 = vpow.pop %v2123
    %v2125 = vmul.f32 %v2122, 1.442695
    %v2126 = vpow.pop %v2125
    %v2127 = vadd.f32 %v2124, 1.0
    %v2128 = vadd.f32 %v2126, 1.0
    %v2129 = vrcp.pop %v2127
    %v2130 = vmul.f32 %v2127, %v2129
    %v2131 = vsub.f32 1.0, %v2130
    %v2132 = vmul.f32 %v2129, %v2131
    %v2133 = vadd.f32 %v2129, %v2132
    %vm2134 = vweird.f32 %v2127
    %vm2135 = vweird.f32 %v2129
    %vm2136 = vmor %vm2134, %vm2135
    %v2137 = vsel %vm2136, %v2129, %v2133
    %v2138 = vand.u32 2147483647, %v2127
    %vm2139 = vcmp.eq.f32.partialorder %v2138, 8.507059e+37
    %v2140 = vand.u32 %v2127, 2147483648
    %v2141 = vor.u32 1.1754944e-38, %v2140
    %v2142 = vsel %vm2139, %v2141, %v2137
    %v2143 = vmul.f32 1.0, %v2142
    %v2144 = vrcp.pop %v2128
    %v2145 = vmul.f32 %v2128, %v2144
    %v2146 = vsub.f32 1.0, %v2145
    %v2147 = vmul.f32 %v2144, %v2146
    %v2148 = vadd.f32 %v2144, %v2147
    %vm2149 = vweird.f32 %v2128
    %vm2150 = vweird.f32 %v2144
    %vm2151 = vmor %vm2149, %vm2150
    %v2152 = vsel %vm2151, %v2144, %v2148
    %v2153 = vand.u32 2147483647, %v2128
    %vm2154 = vcmp.eq.f32.partialorder %v2153, 8.507059e+37
    %v2155 = vand.u32 %v2128, 2147483648
    %v2156 = vor.u32 1.1754944e-38, %v2155
    %v2157 = vsel %vm2154, %v2156, %v2152
    %v2158 = vmul.f32 1.0, %v2157
    %v2159 = vsel %vm376, %v2119, %v2143
    %v2160 = vsel %vm377, %v2120, %v2158
    %v2161 = vmul.f32 %v2159, %v2068
    %v2162 = vmul.f32 %v2159, %v2160
    %2164 = vrot.lane.b32.xlu0 %v2162, 64
    %v2165 = vpop.permute.xlu0 %2164
    %v2167 = vadd.f32 %v2161, %v2165
    %v2168 = vtanh.pop %v2167
    %v2169 = vmul.f32 %v2160, %v2168
    %v2170 = vsel %vm364, %v2167, %v2068
    %v2171 = vsel %vm364, %v2169, %v2069
    %v2172 = vld [vmem:[#allocation2 + $0x30] sm:$0xff]
    %v2173 = vld [vmem:[#allocation2 + $0x38] sm:$0xff]
    %2175 = vrot.lane.b32.xlu0 %v2171, 64
    %v2176 = vpop.permute.xlu0 %2175
    %v2177 = vsel %vm400, %v2176, 0
    %2179 = vmatpush.msra.mxu0 0.0
    %2180 = vmatpush.msra.mxu0 0.0
    %2181 = vmatpush.msra.mxu0 0.0
    %2182 = vmatpush.msra.mxu0 0.0
    %2183 = vmatpush.msra.mxu0 0.0
    %2184 = vmatpush.msra.mxu0 0.0
    %2185 = vmatpush.msra.mxu0 0.0
    %2186 = vmatpush.msra.mxu0 0.0
    %2187 = vmatpush.msra.mxu0 %v1869
    %2188 = vmatpush.msra.mxu0 %v1867
    %2189 = vmatpush.msra.mxu0 %v1865
    %2190 = vmatpush.msra.mxu0 %v1863
    %2191 = vmatpush.msra.mxu0 %v1861
    %2192 = vmatpush.msra.mxu0 %v1859
    %2193 = vmatpush.msra.mxu0 %v1857
    %2194 = vmatpush.msra.mxu0 %v1855
    %2195 = vmatmul.f32.gmra.mxu0 %v2177
    %v2196 = vpop.f32.mrf.mxu0
    %v2197 = vadd.f32 0.0, %v2196
    %2198 = vdwg.mxu0
    %2199 = vmatpush.msra.mxu0 0.0
    %2200 = vmatpush.msra.mxu0 0.0
    %2201 = vmatpush.msra.mxu0 0.0
    %2202 = vmatpush.msra.mxu0 0.0
    %2203 = vmatpush.msra.mxu0 0.0
    %2204 = vmatpush.msra.mxu0 0.0
    %2205 = vmatpush.msra.mxu0 0.0
    %2206 = vmatpush.msra.mxu0 0.0
    %2207 = vmatpush.msra.mxu0 %v1870
    %2208 = vmatpush.msra.mxu0 %v1868
    %2209 = vmatpush.msra.mxu0 %v1866
    %2210 = vmatpush.msra.mxu0 %v1864
    %2211 = vmatpush.msra.mxu0 %v1862
    %2212 = vmatpush.msra.mxu0 %v1860
    %2213 = vmatpush.msra.mxu0 %v1858
    %2214 = vmatpush.msra.mxu0 %v1856
    %2215 = vmatmul.f32.gmra.mxu0 %v2177
    %v2216 = vpop.f32.mrf.mxu0
    %v2217 = vadd.f32 0.0, %v2216
    %2218 = vdwg.mxu0
    %v2219 = vadd.f32 %v2172, %v2197
    %v2220 = vadd.f32 %v2173, %v2217
    %v2221 = vtanh.pop %v2219
    %v2222 = vtanh.pop %v2220
    %v2223 = vxor.u32 %v2219, 2147483648
    %v2224 = vxor.u32 %v2220, 2147483648
    %v2225 = vmul.f32 %v2223, 1.442695
    %v2226 = vpow.pop %v2225
    %v2227 = vmul.f32 %v2224, 1.442695
    %v2228 = vpow.pop %v2227
    %v2229 = vadd.f32 %v2226, 1.0
    %v2230 = vadd.f32 %v2228, 1.0
    %v2231 = vrcp.pop %v2229
    %v2232 = vmul.f32 %v2229, %v2231
    %v2233 = vsub.f32 1.0, %v2232
    %v2234 = vmul.f32 %v2231, %v2233
    %v2235 = vadd.f32 %v2231, %v2234
    %vm2236 = vweird.f32 %v2229
    %vm2237 = vweird.f32 %v2231
    %vm2238 = vmor %vm2236, %vm2237
    %v2239 = vsel %vm2238, %v2231, %v2235
    %v2240 = vand.u32 2147483647, %v2229
    %vm2241 = vcmp.eq.f32.partialorder %v2240, 8.507059e+37
    %v2242 = vand.u32 %v2229, 2147483648
    %v2243 = vor.u32 1.1754944e-38, %v2242
    %v2244 = vsel %vm2241, %v2243, %v2239
    %v2245 = vmul.f32 1.0, %v2244
    %v2246 = vrcp.pop %v2230
    %v2247 = vmul.f32 %v2230, %v2246
    %v2248 = vsub.f32 1.0, %v2247
    %v2249 = vmul.f32 %v2246, %v2248
    %v2250 = vadd.f32 %v2246, %v2249
    %vm2251 = vweird.f32 %v2230
    %vm2252 = vweird.f32 %v2246
    %vm2253 = vmor %vm2251, %vm2252
    %v2254 = vsel %vm2253, %v2246, %v2250
    %v2255 = vand.u32 2147483647, %v2230
    %vm2256 = vcmp.eq.f32.partialorder %v2255, 8.507059e+37
    %v2257 = vand.u32 %v2230, 2147483648
    %v2258 = vor.u32 1.1754944e-38, %v2257
    %v2259 = vsel %vm2256, %v2258, %v2254
    %v2260 = vmul.f32 1.0, %v2259
    %v2261 = vsel %vm376, %v2221, %v2245
    %v2262 = vsel %vm377, %v2222, %v2260
    %v2263 = vmul.f32 %v2261, %v2170
    %v2264 = vmul.f32 %v2261, %v2262
    %2266 = vrot.lane.b32.xlu0 %v2264, 64
    %v2267 = vpop.permute.xlu0 %2266
    %v2269 = vadd.f32 %v2263, %v2267
    %v2270 = vtanh.pop %v2269
    %v2271 = vmul.f32 %v2262, %v2270
    %v2272 = vsel %vm365, %v2269, %v2170
    %v2273 = vsel %vm365, %v2271, %v2171
    %v2274 = vld [vmem:[#allocation2 + $0x40] sm:$0xff]
    %v2275 = vld [vmem:[#allocation2 + $0x48] sm:$0xff]
    %2277 = vrot.lane.b32.xlu0 %v2273, 64
    %v2278 = vpop.permute.xlu0 %2277
    %v2279 = vsel %vm400, %v2278, 0
    %2281 = vmatpush.msra.mxu0 0.0
    %2282 = vmatpush.msra.mxu0 0.0
    %2283 = vmatpush.msra.mxu0 0.0
    %2284 = vmatpush.msra.mxu0 0.0
    %2285 = vmatpush.msra.mxu0 0.0
    %2286 = vmatpush.msra.mxu0 0.0
    %2287 = vmatpush.msra.mxu0 0.0
    %2288 = vmatpush.msra.mxu0 0.0
    %2289 = vmatpush.msra.mxu0 %v1869
    %2290 = vmatpush.msra.mxu0 %v1867
    %2291 = vmatpush.msra.mxu0 %v1865
    %2292 = vmatpush.msra.mxu0 %v1863
    %2293 = vmatpush.msra.mxu0 %v1861
    %2294 = vmatpush.msra.mxu0 %v1859
    %2295 = vmatpush.msra.mxu0 %v1857
    %2296 = vmatpush.msra.mxu0 %v1855
    %2297 = vmatmul.f32.gmra.mxu0 %v2279
    %v2298 = vpop.f32.mrf.mxu0
    %v2299 = vadd.f32 0.0, %v2298
    %2300 = vdwg.mxu0
    %2301 = vmatpush.msra.mxu0 0.0
    %2302 = vmatpush.msra.mxu0 0.0
    %2303 = vmatpush.msra.mxu0 0.0
    %2304 = vmatpush.msra.mxu0 0.0
    %2305 = vmatpush.msra.mxu0 0.0
    %2306 = vmatpush.msra.mxu0 0.0
    %2307 = vmatpush.msra.mxu0 0.0
    %2308 = vmatpush.msra.mxu0 0.0
    %2309 = vmatpush.msra.mxu0 %v1870
    %2310 = vmatpush.msra.mxu0 %v1868
    %2311 = vmatpush.msra.mxu0 %v1866
    %2312 = vmatpush.msra.mxu0 %v1864
    %2313 = vmatpush.msra.mxu0 %v1862
    %2314 = vmatpush.msra.mxu0 %v1860
    %2315 = vmatpush.msra.mxu0 %v1858
    %2316 = vmatpush.msra.mxu0 %v1856
    %2317 = vmatmul.f32.gmra.mxu0 %v2279
    %v2318 = vpop.f32.mrf.mxu0
    %v2319 = vadd.f32 0.0, %v2318
    %2320 = vdwg.mxu0
    %v2321 = vadd.f32 %v2274, %v2299
    %v2322 = vadd.f32 %v2275, %v2319
    %v2323 = vtanh.pop %v2321
    %v2324 = vtanh.pop %v2322
    %v2325 = vxor.u32 %v2321, 2147483648
    %v2326 = vxor.u32 %v2322, 2147483648
    %v2327 = vmul.f32 %v2325, 1.442695
    %v2328 = vpow.pop %v2327
    %v2329 = vmul.f32 %v2326, 1.442695
    %v2330 = vpow.pop %v2329
    %v2331 = vadd.f32 %v2328, 1.0
    %v2332 = vadd.f32 %v2330, 1.0
    %v2333 = vrcp.pop %v2331
    %v2334 = vmul.f32 %v2331, %v2333
    %v2335 = vsub.f32 1.0, %v2334
    %v2336 = vmul.f32 %v2333, %v2335
    %v2337 = vadd.f32 %v2333, %v2336
    %vm2338 = vweird.f32 %v2331
    %vm2339 = vweird.f32 %v2333
    %vm2340 = vmor %vm2338, %vm2339
    %v2341 = vsel %vm2340, %v2333, %v2337
    %v2342 = vand.u32 2147483647, %v2331
    %vm2343 = vcmp.eq.f32.partialorder %v2342, 8.507059e+37
    %v2344 = vand.u32 %v2331, 2147483648
    %v2345 = vor.u32 1.1754944e-38, %v2344
    %v2346 = vsel %vm2343, %v2345, %v2341
    %v2347 = vmul.f32 1.0, %v2346
    %v2348 = vrcp.pop %v2332
    %v2349 = vmul.f32 %v2332, %v2348
    %v2350 = vsub.f32 1.0, %v2349
    %v2351 = vmul.f32 %v2348, %v2350
    %v2352 = vadd.f32 %v2348, %v2351
    %vm2353 = vweird.f32 %v2332
    %vm2354 = vweird.f32 %v2348
    %vm2355 = vmor %vm2353, %vm2354
    %v2356 = vsel %vm2355, %v2348, %v2352
    %v2357 = vand.u32 2147483647, %v2332
    %vm2358 = vcmp.eq.f32.partialorder %v2357, 8.507059e+37
    %v2359 = vand.u32 %v2332, 2147483648
    %v2360 = vor.u32 1.1754944e-38, %v2359
    %v2361 = vsel %vm2358, %v2360, %v2356
    %v2362 = vmul.f32 1.0, %v2361
    %v2363 = vsel %vm376, %v2323, %v2347
    %v2364 = vsel %vm377, %v2324, %v2362
    %v2365 = vmul.f32 %v2363, %v2272
    %v2366 = vmul.f32 %v2363, %v2364
    %2368 = vrot.lane.b32.xlu0 %v2366, 64
    %v2369 = vpop.permute.xlu0 %2368
    %v2371 = vadd.f32 %v2365, %v2369
    %v2372 = vtanh.pop %v2371
    %v2373 = vmul.f32 %v2364, %v2372
    %v2374 = vsel %vm366, %v2371, %v2272
    %v2375 = vsel %vm366, %v2373, %v2273
    %v2376 = vld [vmem:[#allocation2 + $0x50] sm:$0xff]
    %v2377 = vld [vmem:[#allocation2 + $0x58] sm:$0xff]
    %2379 = vrot.lane.b32.xlu0 %v2375, 64
    %v2380 = vpop.permute.xlu0 %2379
    %v2381 = vsel %vm400, %v2380, 0
    %2383 = vmatpush.msra.mxu0 0.0
    %2384 = vmatpush.msra.mxu0 0.0
    %2385 = vmatpush.msra.mxu0 0.0
    %2386 = vmatpush.msra.mxu0 0.0
    %2387 = vmatpush.msra.mxu0 0.0
    %2388 = vmatpush.msra.mxu0 0.0
    %2389 = vmatpush.msra.mxu0 0.0
    %2390 = vmatpush.msra.mxu0 0.0
    %2391 = vmatpush.msra.mxu0 %v1869
    %2392 = vmatpush.msra.mxu0 %v1867
    %2393 = vmatpush.msra.mxu0 %v1865
    %2394 = vmatpush.msra.mxu0 %v1863
    %2395 = vmatpush.msra.mxu0 %v1861
    %2396 = vmatpush.msra.mxu0 %v1859
    %2397 = vmatpush.msra.mxu0 %v1857
    %2398 = vmatpush.msra.mxu0 %v1855
    %2399 = vmatmul.f32.gmra.mxu0 %v2381
    %v2400 = vpop.f32.mrf.mxu0
    %v2401 = vadd.f32 0.0, %v2400
    %2402 = vdwg.mxu0
    %2403 = vmatpush.msra.mxu0 0.0
    %2404 = vmatpush.msra.mxu0 0.0
    %2405 = vmatpush.msra.mxu0 0.0
    %2406 = vmatpush.msra.mxu0 0.0
    %2407 = vmatpush.msra.mxu0 0.0
    %2408 = vmatpush.msra.mxu0 0.0
    %2409 = vmatpush.msra.mxu0 0.0
    %2410 = vmatpush.msra.mxu0 0.0
    %2411 = vmatpush.msra.mxu0 %v1870
    %2412 = vmatpush.msra.mxu0 %v1868
    %2413 = vmatpush.msra.mxu0 %v1866
    %2414 = vmatpush.msra.mxu0 %v1864
    %2415 = vmatpush.msra.mxu0 %v1862
    %2416 = vmatpush.msra.mxu0 %v1860
    %2417 = vmatpush.msra.mxu0 %v1858
    %2418 = vmatpush.msra.mxu0 %v1856
    %2419 = vmatmul.f32.gmra.mxu0 %v2381
    %v2420 = vpop.f32.mrf.mxu0
    %v2421 = vadd.f32 0.0, %v2420
    %2422 = vdwg.mxu0
    %v2423 = vadd.f32 %v2376, %v2401
    %v2424 = vadd.f32 %v2377, %v2421
    %v2425 = vtanh.pop %v2423
    %v2426 = vtanh.pop %v2424
    %v2427 = vxor.u32 %v2423, 2147483648
    %v2428 = vxor.u32 %v2424, 2147483648
    %v2429 = vmul.f32 %v2427, 1.442695
    %v2430 = vpow.pop %v2429
    %v2431 = vmul.f32 %v2428, 1.442695
    %v2432 = vpow.pop %v2431
    %v2433 = vadd.f32 %v2430, 1.0
    %v2434 = vadd.f32 %v2432, 1.0
    %v2435 = vrcp.pop %v2433
    %v2436 = vmul.f32 %v2433, %v2435
    %v2437 = vsub.f32 1.0, %v2436
    %v2438 = vmul.f32 %v2435, %v2437
    %v2439 = vadd.f32 %v2435, %v2438
    %vm2440 = vweird.f32 %v2433
    %vm2441 = vweird.f32 %v2435
    %vm2442 = vmor %vm2440, %vm2441
    %v2443 = vsel %vm2442, %v2435, %v2439
    %v2444 = vand.u32 2147483647, %v2433
    %vm2445 = vcmp.eq.f32.partialorder %v2444, 8.507059e+37
    %v2446 = vand.u32 %v2433, 2147483648
    %v2447 = vor.u32 1.1754944e-38, %v2446
    %v2448 = vsel %vm2445, %v2447, %v2443
    %v2449 = vmul.f32 1.0, %v2448
    %v2450 = vrcp.pop %v2434
    %v2451 = vmul.f32 %v2434, %v2450
    %v2452 = vsub.f32 1.0, %v2451
    %v2453 = vmul.f32 %v2450, %v2452
    %v2454 = vadd.f32 %v2450, %v2453
    %vm2455 = vweird.f32 %v2434
    %vm2456 = vweird.f32 %v2450
    %vm2457 = vmor %vm2455, %vm2456
    %v2458 = vsel %vm2457, %v2450, %v2454
    %v2459 = vand.u32 2147483647, %v2434
    %vm2460 = vcmp.eq.f32.partialorder %v2459, 8.507059e+37
    %v2461 = vand.u32 %v2434, 2147483648
    %v2462 = vor.u32 1.1754944e-38, %v2461
    %v2463 = vsel %vm2460, %v2462, %v2458
    %v2464 = vmul.f32 1.0, %v2463
    %v2465 = vsel %vm376, %v2425, %v2449
    %v2466 = vsel %vm377, %v2426, %v2464
    %v2467 = vmul.f32 %v2465, %v2374
    %v2468 = vmul.f32 %v2465, %v2466
    %2470 = vrot.lane.b32.xlu0 %v2468, 64
    %v2471 = vpop.permute.xlu0 %2470
    %v2473 = vadd.f32 %v2467, %v2471
    %v2474 = vtanh.pop %v2473
    %v2475 = vmul.f32 %v2466, %v2474
    %v2476 = vsel %vm367, %v2473, %v2374
    %v2477 = vsel %vm367, %v2475, %v2375
    %v2478 = vld [vmem:[#allocation2 + $0x60] sm:$0xff]
    %v2479 = vld [vmem:[#allocation2 + $0x68] sm:$0xff]
    %2481 = vrot.lane.b32.xlu0 %v2477, 64
    %v2482 = vpop.permute.xlu0 %2481
    %v2483 = vsel %vm400, %v2482, 0
    %2485 = vmatpush.msra.mxu0 0.0
    %2486 = vmatpush.msra.mxu0 0.0
    %2487 = vmatpush.msra.mxu0 0.0
    %2488 = vmatpush.msra.mxu0 0.0
    %2489 = vmatpush.msra.mxu0 0.0
    %2490 = vmatpush.msra.mxu0 0.0
    %2491 = vmatpush.msra.mxu0 0.0
    %2492 = vmatpush.msra.mxu0 0.0
    %2493 = vmatpush.msra.mxu0 %v1869
    %2494 = vmatpush.msra.mxu0 %v1867
    %2495 = vmatpush.msra.mxu0 %v1865
    %2496 = vmatpush.msra.mxu0 %v1863
    %2497 = vmatpush.msra.mxu0 %v1861
    %2498 = vmatpush.msra.mxu0 %v1859
    %2499 = vmatpush.msra.mxu0 %v1857
    %2500 = vmatpush.msra.mxu0 %v1855
    %2501 = vmatmul.f32.gmra.mxu0 %v2483
    %v2502 = vpop.f32.mrf.mxu0
    %v2503 = vadd.f32 0.0, %v2502
    %2504 = vdwg.mxu0
    %2505 = vmatpush.msra.mxu0 0.0
    %2506 = vmatpush.msra.mxu0 0.0
    %2507 = vmatpush.msra.mxu0 0.0
    %2508 = vmatpush.msra.mxu0 0.0
    %2509 = vmatpush.msra.mxu0 0.0
    %2510 = vmatpush.msra.mxu0 0.0
    %2511 = vmatpush.msra.mxu0 0.0
    %2512 = vmatpush.msra.mxu0 0.0
    %2513 = vmatpush.msra.mxu0 %v1870
    %2514 = vmatpush.msra.mxu0 %v1868
    %2515 = vmatpush.msra.mxu0 %v1866
    %2516 = vmatpush.msra.mxu0 %v1864
    %2517 = vmatpush.msra.mxu0 %v1862
    %2518 = vmatpush.msra.mxu0 %v1860
    %2519 = vmatpush.msra.mxu0 %v1858
    %2520 = vmatpush.msra.mxu0 %v1856
    %2521 = vmatmul.f32.gmra.mxu0 %v2483
    %v2522 = vpop.f32.mrf.mxu0
    %v2523 = vadd.f32 0.0, %v2522
    %2524 = vdwg.mxu0
    %v2525 = vadd.f32 %v2478, %v2503
    %v2526 = vadd.f32 %v2479, %v2523
    %v2527 = vtanh.pop %v2525
    %v2528 = vtanh.pop %v2526
    %v2529 = vxor.u32 %v2525, 2147483648
    %v2530 = vxor.u32 %v2526, 2147483648
    %v2531 = vmul.f32 %v2529, 1.442695
    %v2532 = vpow.pop %v2531
    %v2533 = vmul.f32 %v2530, 1.442695
    %v2534 = vpow.pop %v2533
    %v2535 = vadd.f32 %v2532, 1.0
    %v2536 = vadd.f32 %v2534, 1.0
    %v2537 = vrcp.pop %v2535
    %v2538 = vmul.f32 %v2535, %v2537
    %v2539 = vsub.f32 1.0, %v2538
    %v2540 = vmul.f32 %v2537, %v2539
    %v2541 = vadd.f32 %v2537, %v2540
    %vm2542 = vweird.f32 %v2535
    %vm2543 = vweird.f32 %v2537
    %vm2544 = vmor %vm2542, %vm2543
    %v2545 = vsel %vm2544, %v2537, %v2541
    %v2546 = vand.u32 2147483647, %v2535
    %vm2547 = vcmp.eq.f32.partialorder %v2546, 8.507059e+37
    %v2548 = vand.u32 %v2535, 2147483648
    %v2549 = vor.u32 1.1754944e-38, %v2548
    %v2550 = vsel %vm2547, %v2549, %v2545
    %v2551 = vmul.f32 1.0, %v2550
    %v2552 = vrcp.pop %v2536
    %v2553 = vmul.f32 %v2536, %v2552
    %v2554 = vsub.f32 1.0, %v2553
    %v2555 = vmul.f32 %v2552, %v2554
    %v2556 = vadd.f32 %v2552, %v2555
    %vm2557 = vweird.f32 %v2536
    %vm2558 = vweird.f32 %v2552
    %vm2559 = vmor %vm2557, %vm2558
    %v2560 = vsel %vm2559, %v2552, %v2556
    %v2561 = vand.u32 2147483647, %v2536
    %vm2562 = vcmp.eq.f32.partialorder %v2561, 8.507059e+37
    %v2563 = vand.u32 %v2536, 2147483648
    %v2564 = vor.u32 1.1754944e-38, %v2563
    %v2565 = vsel %vm2562, %v2564, %v2560
    %v2566 = vmul.f32 1.0, %v2565
    %v2567 = vsel %vm376, %v2527, %v2551
    %v2568 = vsel %vm377, %v2528, %v2566
    %v2569 = vmul.f32 %v2567, %v2476
    %v2570 = vmul.f32 %v2567, %v2568
    %2572 = vrot.lane.b32.xlu0 %v2570, 64
    %v2573 = vpop.permute.xlu0 %2572
    %v2575 = vadd.f32 %v2569, %v2573
    %v2576 = vtanh.pop %v2575
    %v2577 = vmul.f32 %v2568, %v2576
    %v2578 = vsel %vm368, %v2575, %v2476
    %v2579 = vsel %vm368, %v2577, %v2477
    %v2580 = vld [vmem:[#allocation2 + $0x70] sm:$0xff]
    %v2581 = vld [vmem:[#allocation2 + $0x78] sm:$0xff]
    %2583 = vrot.lane.b32.xlu0 %v2579, 64
    %v2584 = vpop.permute.xlu0 %2583
    %v2585 = vsel %vm400, %v2584, 0
    %2587 = vmatpush.msra.mxu0 0.0
    %2588 = vmatpush.msra.mxu0 0.0
    %2589 = vmatpush.msra.mxu0 0.0
    %2590 = vmatpush.msra.mxu0 0.0
    %2591 = vmatpush.msra.mxu0 0.0
    %2592 = vmatpush.msra.mxu0 0.0
    %2593 = vmatpush.msra.mxu0 0.0
    %2594 = vmatpush.msra.mxu0 0.0
    %2595 = vmatpush.msra.mxu0 %v1869
    %2596 = vmatpush.msra.mxu0 %v1867
    %2597 = vmatpush.msra.mxu0 %v1865
    %2598 = vmatpush.msra.mxu0 %v1863
    %2599 = vmatpush.msra.mxu0 %v1861
    %2600 = vmatpush.msra.mxu0 %v1859
    %2601 = vmatpush.msra.mxu0 %v1857
    %2602 = vmatpush.msra.mxu0 %v1855
    %2603 = vmatmul.f32.gmra.mxu0 %v2585
    %v2604 = vpop.f32.mrf.mxu0
    %v2605 = vadd.f32 0.0, %v2604
    %2606 = vdwg.mxu0
    %2607 = vmatpush.msra.mxu0 0.0
    %2608 = vmatpush.msra.mxu0 0.0
    %2609 = vmatpush.msra.mxu0 0.0
    %2610 = vmatpush.msra.mxu0 0.0
    %2611 = vmatpush.msra.mxu0 0.0
    %2612 = vmatpush.msra.mxu0 0.0
    %2613 = vmatpush.msra.mxu0 0.0
    %2614 = vmatpush.msra.mxu0 0.0
    %2615 = vmatpush.msra.mxu0 %v1870
    %2616 = vmatpush.msra.mxu0 %v1868
    %2617 = vmatpush.msra.mxu0 %v1866
    %2618 = vmatpush.msra.mxu0 %v1864
    %2619 = vmatpush.msra.mxu0 %v1862
    %2620 = vmatpush.msra.mxu0 %v1860
    %2621 = vmatpush.msra.mxu0 %v1858
    %2622 = vmatpush.msra.mxu0 %v1856
    %2623 = vmatmul.f32.gmra.mxu0 %v2585
    %v2624 = vpop.f32.mrf.mxu0
    %v2625 = vadd.f32 0.0, %v2624
    %2626 = vdwg.mxu0
    %v2627 = vadd.f32 %v2580, %v2605
    %v2628 = vadd.f32 %v2581, %v2625
    %v2629 = vtanh.pop %v2627
    %v2630 = vtanh.pop %v2628
    %v2631 = vxor.u32 %v2627, 2147483648
    %v2632 = vxor.u32 %v2628, 2147483648
    %v2633 = vmul.f32 %v2631, 1.442695
    %v2634 = vpow.pop %v2633
    %v2635 = vmul.f32 %v2632, 1.442695
    %v2636 = vpow.pop %v2635
    %v2637 = vadd.f32 %v2634, 1.0
    %v2638 = vadd.f32 %v2636, 1.0
    %v2639 = vrcp.pop %v2637
    %v2640 = vmul.f32 %v2637, %v2639
    %v2641 = vsub.f32 1.0, %v2640
    %v2642 = vmul.f32 %v2639, %v2641
    %v2643 = vadd.f32 %v2639, %v2642
    %vm2644 = vweird.f32 %v2637
    %vm2645 = vweird.f32 %v2639
    %vm2646 = vmor %vm2644, %vm2645
    %v2647 = vsel %vm2646, %v2639, %v2643
    %v2648 = vand.u32 2147483647, %v2637
    %vm2649 = vcmp.eq.f32.partialorder %v2648, 8.507059e+37
    %v2650 = vand.u32 %v2637, 2147483648
    %v2651 = vor.u32 1.1754944e-38, %v2650
    %v2652 = vsel %vm2649, %v2651, %v2647
    %v2653 = vmul.f32 1.0, %v2652
    %v2654 = vrcp.pop %v2638
    %v2655 = vmul.f32 %v2638, %v2654
    %v2656 = vsub.f32 1.0, %v2655
    %v2657 = vmul.f32 %v2654, %v2656
    %v2658 = vadd.f32 %v2654, %v2657
    %vm2659 = vweird.f32 %v2638
    %vm2660 = vweird.f32 %v2654
    %vm2661 = vmor %vm2659, %vm2660
    %v2662 = vsel %vm2661, %v2654, %v2658
    %v2663 = vand.u32 2147483647, %v2638
    %vm2664 = vcmp.eq.f32.partialorder %v2663, 8.507059e+37
    %v2665 = vand.u32 %v2638, 2147483648
    %v2666 = vor.u32 1.1754944e-38, %v2665
    %v2667 = vsel %vm2664, %v2666, %v2662
    %v2668 = vmul.f32 1.0, %v2667
    %v2669 = vsel %vm376, %v2629, %v2653
    %v2670 = vsel %vm377, %v2630, %v2668
    %v2671 = vmul.f32 %v2669, %v2578
    %v2672 = vmul.f32 %v2669, %v2670
    %2674 = vrot.lane.b32.xlu0 %v2672, 64
    %v2675 = vpop.permute.xlu0 %2674
    %v2677 = vadd.f32 %v2671, %v2675
    %v2678 = vtanh.pop %v2677
    %v2679 = vmul.f32 %v2670, %v2678
    %v2680 = vsel %vm369, %v2677, %v2578
    %v2681 = vsel %vm369, %v2679, %v2579
    %v2682 = vld [vmem:[#allocation2 + $0x80] sm:$0xff]
    %v2683 = vld [vmem:[#allocation2 + $0x88] sm:$0xff]
    %2685 = vrot.lane.b32.xlu0 %v2681, 64
    %v2686 = vpop.permute.xlu0 %2685
    %v2687 = vsel %vm400, %v2686, 0
    %2689 = vmatpush.msra.mxu0 0.0
    %2690 = vmatpush.msra.mxu0 0.0
    %2691 = vmatpush.msra.mxu0 0.0
    %2692 = vmatpush.msra.mxu0 0.0
    %2693 = vmatpush.msra.mxu0 0.0
    %2694 = vmatpush.msra.mxu0 0.0
    %2695 = vmatpush.msra.mxu0 0.0
    %2696 = vmatpush.msra.mxu0 0.0
    %2697 = vmatpush.msra.mxu0 %v1869
    %2698 = vmatpush.msra.mxu0 %v1867
    %2699 = vmatpush.msra.mxu0 %v1865
    %2700 = vmatpush.msra.mxu0 %v1863
    %2701 = vmatpush.msra.mxu0 %v1861
    %2702 = vmatpush.msra.mxu0 %v1859
    %2703 = vmatpush.msra.mxu0 %v1857
    %2704 = vmatpush.msra.mxu0 %v1855
    %2705 = vmatmul.f32.gmra.mxu0 %v2687
    %v2706 = vpop.f32.mrf.mxu0
    %v2707 = vadd.f32 0.0, %v2706
    %2708 = vdwg.mxu0
    %2709 = vmatpush.msra.mxu0 0.0
    %2710 = vmatpush.msra.mxu0 0.0
    %2711 = vmatpush.msra.mxu0 0.0
    %2712 = vmatpush.msra.mxu0 0.0
    %2713 = vmatpush.msra.mxu0 0.0
    %2714 = vmatpush.msra.mxu0 0.0
    %2715 = vmatpush.msra.mxu0 0.0
    %2716 = vmatpush.msra.mxu0 0.0
    %2717 = vmatpush.msra.mxu0 %v1870
    %2718 = vmatpush.msra.mxu0 %v1868
    %2719 = vmatpush.msra.mxu0 %v1866
    %2720 = vmatpush.msra.mxu0 %v1864
    %2721 = vmatpush.msra.mxu0 %v1862
    %2722 = vmatpush.msra.mxu0 %v1860
    %2723 = vmatpush.msra.mxu0 %v1858
    %2724 = vmatpush.msra.mxu0 %v1856
    %2725 = vmatmul.f32.gmra.mxu0 %v2687
    %v2726 = vpop.f32.mrf.mxu0
    %v2727 = vadd.f32 0.0, %v2726
    %2728 = vdwg.mxu0
    %v2729 = vadd.f32 %v2682, %v2707
    %v2730 = vadd.f32 %v2683, %v2727
    %v2731 = vtanh.pop %v2729
    %v2732 = vtanh.pop %v2730
    %v2733 = vxor.u32 %v2729, 2147483648
    %v2734 = vxor.u32 %v2730, 2147483648
    %v2735 = vmul.f32 %v2733, 1.442695
    %v2736 = vpow.pop %v2735
    %v2737 = vmul.f32 %v2734, 1.442695
    %v2738 = vpow.pop %v2737
    %v2739 = vadd.f32 %v2736, 1.0
    %v2740 = vadd.f32 %v2738, 1.0
    %v2741 = vrcp.pop %v2739
    %v2742 = vmul.f32 %v2739, %v2741
    %v2743 = vsub.f32 1.0, %v2742
    %v2744 = vmul.f32 %v2741, %v2743
    %v2745 = vadd.f32 %v2741, %v2744
    %vm2746 = vweird.f32 %v2739
    %vm2747 = vweird.f32 %v2741
    %vm2748 = vmor %vm2746, %vm2747
    %v2749 = vsel %vm2748, %v2741, %v2745
    %v2750 = vand.u32 2147483647, %v2739
    %vm2751 = vcmp.eq.f32.partialorder %v2750, 8.507059e+37
    %v2752 = vand.u32 %v2739, 2147483648
    %v2753 = vor.u32 1.1754944e-38, %v2752
    %v2754 = vsel %vm2751, %v2753, %v2749
    %v2755 = vmul.f32 1.0, %v2754
    %v2756 = vrcp.pop %v2740
    %v2757 = vmul.f32 %v2740, %v2756
    %v2758 = vsub.f32 1.0, %v2757
    %v2759 = vmul.f32 %v2756, %v2758
    %v2760 = vadd.f32 %v2756, %v2759
    %vm2761 = vweird.f32 %v2740
    %vm2762 = vweird.f32 %v2756
    %vm2763 = vmor %vm2761, %vm2762
    %v2764 = vsel %vm2763, %v2756, %v2760
    %v2765 = vand.u32 2147483647, %v2740
    %vm2766 = vcmp.eq.f32.partialorder %v2765, 8.507059e+37
    %v2767 = vand.u32 %v2740, 2147483648
    %v2768 = vor.u32 1.1754944e-38, %v2767
    %v2769 = vsel %vm2766, %v2768, %v2764
    %v2770 = vmul.f32 1.0, %v2769
    %v2771 = vsel %vm376, %v2731, %v2755
    %v2772 = vsel %vm377, %v2732, %v2770
    %v2773 = vmul.f32 %v2771, %v2680
    %v2774 = vmul.f32 %v2771, %v2772
    %2776 = vrot.lane.b32.xlu0 %v2774, 64
    %v2777 = vpop.permute.xlu0 %2776
    %v2779 = vadd.f32 %v2773, %v2777
    %v2780 = vtanh.pop %v2779
    %v2781 = vmul.f32 %v2772, %v2780
    %v2782 = vsel %vm370, %v2779, %v2680
    %v2783 = vsel %vm370, %v2781, %v2681
    %v2784 = vld [vmem:[#allocation2 + $0x90] sm:$0xff]
    %v2785 = vld [vmem:[#allocation2 + $0x98] sm:$0xff]
    %2787 = vrot.lane.b32.xlu0 %v2783, 64
    %v2788 = vpop.permute.xlu0 %2787
    %v2789 = vsel %vm400, %v2788, 0
    %2791 = vmatpush.msra.mxu0 0.0
    %2792 = vmatpush.msra.mxu0 0.0
    %2793 = vmatpush.msra.mxu0 0.0
    %2794 = vmatpush.msra.mxu0 0.0
    %2795 = vmatpush.msra.mxu0 0.0
    %2796 = vmatpush.msra.mxu0 0.0
    %2797 = vmatpush.msra.mxu0 0.0
    %2798 = vmatpush.msra.mxu0 0.0
    %2799 = vmatpush.msra.mxu0 %v1869
    %2800 = vmatpush.msra.mxu0 %v1867
    %2801 = vmatpush.msra.mxu0 %v1865
    %2802 = vmatpush.msra.mxu0 %v1863
    %2803 = vmatpush.msra.mxu0 %v1861
    %2804 = vmatpush.msra.mxu0 %v1859
    %2805 = vmatpush.msra.mxu0 %v1857
    %2806 = vmatpush.msra.mxu0 %v1855
    %2807 = vmatmul.f32.gmra.mxu0 %v2789
    %v2808 = vpop.f32.mrf.mxu0
    %v2809 = vadd.f32 0.0, %v2808
    %2810 = vdwg.mxu0
    %2811 = vmatpush.msra.mxu0 0.0
    %2812 = vmatpush.msra.mxu0 0.0
    %2813 = vmatpush.msra.mxu0 0.0
    %2814 = vmatpush.msra.mxu0 0.0
    %2815 = vmatpush.msra.mxu0 0.0
    %2816 = vmatpush.msra.mxu0 0.0
    %2817 = vmatpush.msra.mxu0 0.0
    %2818 = vmatpush.msra.mxu0 0.0
    %2819 = vmatpush.msra.mxu0 %v1870
    %2820 = vmatpush.msra.mxu0 %v1868
    %2821 = vmatpush.msra.mxu0 %v1866
    %2822 = vmatpush.msra.mxu0 %v1864
    %2823 = vmatpush.msra.mxu0 %v1862
    %2824 = vmatpush.msra.mxu0 %v1860
    %2825 = vmatpush.msra.mxu0 %v1858
    %2826 = vmatpush.msra.mxu0 %v1856
    %2827 = vmatmul.f32.gmra.mxu0 %v2789
    %v2828 = vpop.f32.mrf.mxu0
    %v2829 = vadd.f32 0.0, %v2828
    %2830 = vdwg.mxu0
    %v2831 = vadd.f32 %v2784, %v2809
    %v2832 = vadd.f32 %v2785, %v2829
    %v2833 = vtanh.pop %v2831
    %v2834 = vtanh.pop %v2832
    %v2835 = vxor.u32 %v2831, 2147483648
    %v2836 = vxor.u32 %v2832, 2147483648
    %v2837 = vmul.f32 %v2835, 1.442695
    %v2838 = vpow.pop %v2837
    %v2839 = vmul.f32 %v2836, 1.442695
    %v2840 = vpow.pop %v2839
    %v2841 = vadd.f32 %v2838, 1.0
    %v2842 = vadd.f32 %v2840, 1.0
    %v2843 = vrcp.pop %v2841
    %v2844 = vmul.f32 %v2841, %v2843
    %v2845 = vsub.f32 1.0, %v2844
    %v2846 = vmul.f32 %v2843, %v2845
    %v2847 = vadd.f32 %v2843, %v2846
    %vm2848 = vweird.f32 %v2841
    %vm2849 = vweird.f32 %v2843
    %vm2850 = vmor %vm2848, %vm2849
    %v2851 = vsel %vm2850, %v2843, %v2847
    %v2852 = vand.u32 2147483647, %v2841
    %vm2853 = vcmp.eq.f32.partialorder %v2852, 8.507059e+37
    %v2854 = vand.u32 %v2841, 2147483648
    %v2855 = vor.u32 1.1754944e-38, %v2854
    %v2856 = vsel %vm2853, %v2855, %v2851
    %v2857 = vmul.f32 1.0, %v2856
    %v2858 = vrcp.pop %v2842
    %v2859 = vmul.f32 %v2842, %v2858
    %v2860 = vsub.f32 1.0, %v2859
    %v2861 = vmul.f32 %v2858, %v2860
    %v2862 = vadd.f32 %v2858, %v2861
    %vm2863 = vweird.f32 %v2842
    %vm2864 = vweird.f32 %v2858
    %vm2865 = vmor %vm2863, %vm2864
    %v2866 = vsel %vm2865, %v2858, %v2862
    %v2867 = vand.u32 2147483647, %v2842
    %vm2868 = vcmp.eq.f32.partialorder %v2867, 8.507059e+37
    %v2869 = vand.u32 %v2842, 2147483648
    %v2870 = vor.u32 1.1754944e-38, %v2869
    %v2871 = vsel %vm2868, %v2870, %v2866
    %v2872 = vmul.f32 1.0, %v2871
    %v2873 = vsel %vm376, %v2833, %v2857
    %v2874 = vsel %vm377, %v2834, %v2872
    %v2875 = vmul.f32 %v2873, %v2782
    %v2876 = vmul.f32 %v2873, %v2874
    %2878 = vrot.lane.b32.xlu0 %v2876, 64
    %v2879 = vpop.permute.xlu0 %2878
    %v2881 = vadd.f32 %v2875, %v2879
    %v2882 = vtanh.pop %v2881
    %v2883 = vmul.f32 %v2874, %v2882
    %v2884 = vsel %vm371, %v2883, %v2783
    %v2885 = vld [vmem:[%s7] sm:$0xff]
    %v2886 = vld [vmem:[%s7 + $0x8] sm:$0xff]
    %v2887 = vld [vmem:[%s7 + $0x10] sm:$0xff]
    %v2888 = vld [vmem:[%s7 + $0x18] sm:$0xff]
    %v2889 = vld [vmem:[%s7 + $0x20] sm:$0xff]
    %v2890 = vld [vmem:[%s7 + $0x28] sm:$0xff]
    %v2891 = vld [vmem:[%s7 + $0x30] sm:$0xff]
    %v2892 = vld [vmem:[%s7 + $0x38] sm:$0xff]
    %v2893 = vld [vmem:[%s7 + $0x40] sm:$0xff]
    %v2894 = vld [vmem:[%s7 + $0x48] sm:$0xff]
    %v2895 = vld [vmem:[%s7 + $0x50] sm:$0xff]
    %v2896 = vld [vmem:[%s7 + $0x58] sm:$0xff]
    %2898 = vrot.lane.b32.xlu0 %v2884, 64
    %v2899 = vpop.permute.xlu0 %2898
    %v2900 = vsel %vm400, %v2899, 0
    %2902 = vmatpush.msra.mxu0 0.0
    %2903 = vmatpush.msra.mxu0 0.0
    %2904 = vmatpush.msra.mxu0 0.0
    %2905 = vmatpush.msra.mxu0 0.0
    %2906 = vmatpush.msra.mxu0 0.0
    %2907 = vmatpush.msra.mxu0 0.0
    %2908 = vmatpush.msra.mxu0 0.0
    %2909 = vmatpush.msra.mxu0 0.0
    %2910 = vmatpush.msra.mxu0 %v2896
    %2911 = vmatpush.msra.mxu0 %v2895
    %2912 = vmatpush.msra.mxu0 %v2894
    %2913 = vmatpush.msra.mxu0 %v2893
    %2914 = vmatpush.msra.mxu0 %v2892
    %2915 = vmatpush.msra.mxu0 %v2891
    %2916 = vmatpush.msra.mxu0 %v2890
    %2917 = vmatpush.msra.mxu0 %v2889
    %2918 = vmatmul.f32.gmra.mxu0 %v2900
    %v2919 = vpop.f32.mrf.mxu0
    %v2920 = vadd.f32 0.0, %v2919
    %2921 = vdwg.mxu0
    %vm2922 = vcmask 261120
    %v2923 = vsel %vm2922, %v329, 0
    %2925 = vmatpush.msra.mxu0 0.0
    %2926 = vmatpush.msra.mxu0 0.0
    %2927 = vmatpush.msra.mxu0 0.0
    %2928 = vmatpush.msra.mxu0 0.0
    %2929 = vmatpush.msra.mxu0 0.0
    %2930 = vmatpush.msra.mxu0 0.0
    %2931 = vmatpush.msra.mxu0 0.0
    %2932 = vmatpush.msra.mxu0 0.0
    %2933 = vmatpush.msra.mxu0 0.0
    %2934 = vmatpush.msra.mxu0 0.0
    %2935 = vmatpush.msra.mxu0 0.0
    %2936 = vmatpush.msra.mxu0 0.0
    %2937 = vmatpush.msra.mxu0 %v2888
    %2938 = vmatpush.msra.mxu0 %v2887
    %2939 = vmatpush.msra.mxu0 %v2886
    %2940 = vmatpush.msra.mxu0 %v2885
    %2941 = vmatmul.f32.gmra.mxu0 %v2923
    %v2942 = vpop.f32.mrf.mxu0
    %v2943 = vadd.f32 %v2920, %v2942
    %2944 = vdwg.mxu0
    %v2945 = vld [vmem:[%s7 + $0x60] sm:$0xff]
    %v2946 = vld [vmem:[%s7 + $0x68] sm:$0xff]
    %v2947 = vld [vmem:[%s7 + $0x70] sm:$0xff]
    %v2948 = vld [vmem:[%s7 + $0x78] sm:$0xff]
    %2949 = vrot.lane.b32.xlu0 %v329, 96
    %v2950 = vpop.permute.xlu0 %2949
    %v2951 = vsel %vm2922, %v2950, 0
    %2953 = vmatpush.msra.mxu0 0.0
    %2954 = vmatpush.msra.mxu0 0.0
    %2955 = vmatpush.msra.mxu0 0.0
    %2956 = vmatpush.msra.mxu0 0.0
    %2957 = vmatpush.msra.mxu0 0.0
    %2958 = vmatpush.msra.mxu0 0.0
    %2959 = vmatpush.msra.mxu0 0.0
    %2960 = vmatpush.msra.mxu0 0.0
    %2961 = vmatpush.msra.mxu0 0.0
    %2962 = vmatpush.msra.mxu0 0.0
    %2963 = vmatpush.msra.mxu0 0.0
    %2964 = vmatpush.msra.mxu0 0.0
    %2965 = vmatpush.msra.mxu0 %v2948
    %2966 = vmatpush.msra.mxu0 %v2947
    %2967 = vmatpush.msra.mxu0 %v2946
    %2968 = vmatpush.msra.mxu0 %v2945
    %2969 = vmatmul.f32.gmra.mxu0 %v2951
    %v2970 = vpop.f32.mrf.mxu0
    %v2971 = vadd.f32 0.0, %v2970
    %2972 = vdwg.mxu0
    %v2973 = vadd.f32 %v2943, %v2971
    %v2974 = vld [vmem:[%s8] sm:$0x1]
    %v2976 = vperm.slane %v2974, 0
    %v2978 = vadd.f32 %v2973, %v2976
    %v2979 = vtanh.pop %v2978
    %2980 = vst.msk [vmem:[#allocation7] sm:$0xff] %vm2922, %v2979
    // Predicated region
    $region42: #{tpu_custom_call.1} parent=1 // pred_check
      _
    $region43: #{tpu_custom_call.1} parent=1 // pred_check_branch
      %2982 = sbr.rel (0) target = $region45
    $region44: #{tpu_custom_call.1} parent=1 // pred_region
      %2984 = vsyncadd [#allocation6], 0
      %s2986 = sshll.u32 [#allocation7], 4
      %s2987 = int_to_ptr.vmem [resolvable:$true] %s2986
      %s2988 = sshll.u32 %s9, 4
      %s2989 = int_to_ptr.hbm [resolvable:$true] %s2988
      %2991 = dma.vmem_to_hbm [thread:$0]  %s2987, 128, %s2989, [#allocation6]
    $region45: #{tpu_custom_call.1} parent=1 // pred_fallthru
      _
    // Predicated region
    $region46: #{tpu_custom_call.1} parent=1 // pred_check
      _
    $region47: #{tpu_custom_call.1} parent=1 // pred_check_branch
      %2993 = sbr.rel (0) target = $region49
    $region48: #{tpu_custom_call.1} parent=1 // pred_region
      %2995 = dma.done [#allocation6], 128
    $region49: #{tpu_custom_call.1} parent=1 // pred_fallthru
      _
    %2996 = vsyncpa [#allocation5], 1
    %2997 = vsyncpa [#allocation6], 1

</llo_original>
